<compile_context>
chip_gen: v7x
topology: tpu7x:2x2x1
jax: 0.10.0
libtpu: 0.0.40
codegen_flags: <defaults>
</compile_context>

<pallas_src>
import jax
import jax.numpy as jnp
from jax import lax
from jax.experimental import pallas as pl
from jax.experimental.pallas import tpu as pltpu

# ---- synthetic hyper-parameters (small, consistent with the module) ----
SC = 16                                            # sphere_channels
LMAX, MMAX = 2, 1
M0 = LMAX + 1                                      # mappingReduced.m_size[0]          -> 3
MALL = sum(2 * min(l, MMAX) + 1 for l in range(LMAX + 1))   # len(l_harmonic)          -> 7
SPH = (LMAX + 1) ** 2                              # rows of wigner_and_M_mapping_inv  -> 9
C0, C1, C2 = 8, 32, 32                             # edge_channels_list
C3 = M0 * SC                                       # appended last channel (48)
CUTOFF = 5.0
RESCALE = 2.0
LN_EPS = 1e-5
# PolynomialEnvelope(exponent=5)
P = 5.0
ENV_A = -(P + 1.0) * (P + 2.0) / 2.0               # -21
ENV_B = P * (P + 2.0)                              #  35
ENV_C = -P * (P + 1.0) / 2.0                       # -15

N_NODES = 6
E_EDGES = 200                                      # deliberately not a multiple of TE
TE = 128                                           # edge tile (grid step)


def _layernorm(h, g, b):
    mu = jnp.mean(h, axis=-1, keepdims=True)
    var = jnp.mean((h - mu) ** 2, axis=-1, keepdims=True)
    return (h - mu) * lax.rsqrt(var + LN_EPS) * g + b


def _silu(h):
    return h * jax.nn.sigmoid(h)


def edge_degree_kernel(x_node_ref,               # (N, SPH*SC) flattened node state
                       nidx_ref,                 # (1, TE) int32 destination node per edge
                       x_edge_ref,               # (TE, C0)
                       dist_ref,                 # (1, TE) edge distances (lane row)
                       wig_ref,                  # (TE, SPH*M0) pre-sliced wigner
                       w1_ref, b1_ref, g1_ref, be1_ref,
                       w2_ref, b2_ref, g2_ref, be2_ref,
                       w3_ref, b3_ref,
                       out_ref,                  # (N, SPH*SC) resident accumulator
                       res_scratch):             # VMEM (TE, SPH*SC)
    t = pl.program_id(0)

    @pl.when(t == 0)
    def _():
        out_ref[...] = x_node_ref[...]

    # --- RadialMLP: Linear -> LayerNorm -> SiLU -> Linear -> LayerNorm -> SiLU -> Linear ---
    h = jnp.dot(x_edge_ref[...], w1_ref[...], preferred_element_type=jnp.float32) + b1_ref[...]
    h = _silu(_layernorm(h, g1_ref[...], be1_ref[...]))
    h = jnp.dot(h, w2_ref[...], preferred_element_type=jnp.float32) + b2_ref[...]
    h = _silu(_layernorm(h, g2_ref[...], be2_ref[...]))
    emb = jnp.dot(h, w3_ref[...], preferred_element_type=jnp.float32) + b3_ref[...]   # (TE, M0*SC)

    # --- per-edge wigner contraction (only first M0 columns contribute), staged lane-dense ---
    wig = wig_ref[...]                                           # (TE, SPH*M0)
    for s in range(SPH):
        acc = wig[:, s * M0:s * M0 + 1] * emb[:, 0:SC]           # (TE, SC)
        for m in range(1, M0):
            acc = acc + wig[:, s * M0 + m:s * M0 + m + 1] * emb[:, m * SC:(m + 1) * SC]
        res_scratch[:, s * SC:(s + 1) * SC] = acc                # stage into (TE, SPH*SC) scratch

    # --- polynomial envelope on scaled distance, folded into the scatter weights (1 vreg) ---
    d = dist_ref[...] * (1.0 / CUTOFF)                           # (1, TE)
    d2 = d * d
    d5 = d2 * d2 * d
    d6 = d5 * d
    d7 = d6 * d
    env = jnp.where(d < 1.0, 1.0 + ENV_A * d5 + ENV_B * d6 + ENV_C * d7, 0.0)   # (1, TE)
    scale = env * (1.0 / RESCALE)                                # (1, TE)

    # --- index_add as one MXU matmul: out(N, SPH*SC) += scatter(N,TE) @ res(TE, SPH*SC)
    #     with scatter[n, e] = (n == dst[e]) * env[e] / rescale ---
    node_iota = lax.broadcasted_iota(jnp.int32, (N_NODES, TE), 0)
    scatter = jnp.where(node_iota == nidx_ref[...], scale, 0.0)  # (N, TE)
    out_ref[...] = out_ref[...] + jnp.dot(scatter, res_scratch[...],
                                          preferred_element_type=jnp.float32)


def edge_degree_embedding(x, x_edge, edge_distance, edge_dst, wigner_inv, params):
    n_nodes, sph, sc = x.shape
    e = x_edge.shape[0]

    # Host-side padding to a multiple of TE with env==0 edges (distance > cutoff, node 0, zero wigner).
    e_pad = ((e + TE - 1) // TE) * TE
    pad = e_pad - e
    if pad:
        x_edge = jnp.concatenate([x_edge, jnp.zeros((pad, x_edge.shape[1]), x_edge.dtype)], axis=0)
        edge_distance = jnp.concatenate(
            [edge_distance, jnp.full((pad,), 2.0 * CUTOFF, edge_distance.dtype)], axis=0)
        edge_dst = jnp.concatenate([edge_dst, jnp.zeros((pad,), edge_dst.dtype)], axis=0)
        wigner_inv = jnp.concatenate(
            [wigner_inv, jnp.zeros((pad,) + wigner_inv.shape[1:], wigner_inv.dtype)], axis=0)

    # Lane-dense node state, pre-sliced + flattened wigner, lane-row node indices / distances.
    x_flat = x.reshape(n_nodes, sph * sc)
    wig2 = wigner_inv[:, :, :M0].reshape(e_pad, sph * M0)
    nidx_row = edge_dst.astype(jnp.int32).reshape(1, e_pad)
    dist_row = edge_distance.reshape(1, e_pad)

    in_specs = [
        pl.BlockSpec((n_nodes, sph * sc), lambda t: (0, 0)),   # x (resident)
        pl.BlockSpec((1, TE),             lambda t: (0, t)),   # edge destination indices (lane row)
        pl.BlockSpec((TE, C0),            lambda t: (t, 0)),   # x_edge tile
        pl.BlockSpec((1, TE),             lambda t: (0, t)),   # edge_distance tile (lane row)
        pl.BlockSpec((TE, sph * M0),      lambda t: (t, 0)),   # wigner tile (pre-sliced)
    ] + [pl.BlockSpec(p.shape, lambda t: (0, 0)) for p in params]   # resident weights

    out_flat = pl.pallas_call(
        edge_degree_kernel,
        out_shape=jax.ShapeDtypeStruct((n_nodes, sph * sc), jnp.float32),
        grid_spec=pltpu.PrefetchScalarGridSpec(
            num_scalar_prefetch=0,
            grid=(e_pad // TE,),
            in_specs=in_specs,
            out_specs=pl.BlockSpec((n_nodes, sph * sc), lambda t: (0, 0)),
            scratch_shapes=[pltpu.VMEM((TE, sph * sc), jnp.float32)],
        ),
        compiler_params=pltpu.CompilerParams(dimension_semantics=("arbitrary",)),
    )(x_flat, nidx_row, x_edge, dist_row, wig2, *params)

    return out_flat.reshape(n_nodes, sph, sc)


def reference(x, x_edge, edge_distance, edge_dst, wigner_inv, params):
    (w1, b1, g1, be1, w2, b2, g2, be2, w3, b3) = params
    h = x_edge @ w1 + b1
    h = _silu(_layernorm(h, g1, be1))
    h = h @ w2 + b2
    h = _silu(_layernorm(h, g2, be2))
    h = h @ w3 + b3                                       # (E, M0*SC)
    emb0 = h.reshape(-1, M0, SC)
    padz = jnp.zeros((h.shape[0], MALL - M0, SC), h.dtype)
    emb = jnp.concatenate([emb0, padz], axis=1)           # (E, MALL, SC)
    res = jnp.einsum('esm,emc->esc', wigner_inv, emb)     # (E, SPH, SC)
    d = edge_distance / CUTOFF
    d2 = d * d
    d5 = d2 * d2 * d
    d6 = d5 * d
    d7 = d6 * d
    env = jnp.where(d < 1.0, 1.0 + ENV_A * d5 + ENV_B * d6 + ENV_C * d7, 0.0)
    res = res * env[:, None, None]
    return x.at[edge_dst].add(res / RESCALE)


if __name__ == "__main__":
    key = jax.random.PRNGKey(0)
    ks = jax.random.split(key, 12)

    x = jax.random.normal(ks[0], (N_NODES, SPH, SC), jnp.float32)
    x_edge = jax.random.normal(ks[1], (E_EDGES, C0), jnp.float32)
    edge_distance = jax.random.uniform(ks[2], (E_EDGES,), jnp.float32, 0.1, 6.0)
    edge_dst = jax.random.randint(ks[3], (E_EDGES,), 0, N_NODES, jnp.int32)  # edge_index[1] (node_offset=0)
    wigner_inv = jax.random.normal(ks[4], (E_EDGES, SPH, MALL), jnp.float32) * 0.5

    # Deterministic RadialMLP parameters (LayerNorm init: gamma=1, beta=0 as in nn.LayerNorm)
    params = (
        (jax.random.normal(ks[5], (C0, C1)) * 0.2).astype(jnp.float32),
        (jax.random.normal(ks[6], (1, C1)) * 0.1).astype(jnp.float32),
        jnp.ones((1, C1), jnp.float32), jnp.zeros((1, C1), jnp.float32),
        (jax.random.normal(ks[7], (C1, C2)) * 0.2).astype(jnp.float32),
        (jax.random.normal(ks[8], (1, C2)) * 0.1).astype(jnp.float32),
        jnp.ones((1, C2), jnp.float32), jnp.zeros((1, C2), jnp.float32),
        (jax.random.normal(ks[9], (C2, C3)) * 0.2).astype(jnp.float32),
        (jax.random.normal(ks[10], (1, C3)) * 0.1).astype(jnp.float32),
    )

    out = edge_degree_embedding(x, x_edge, edge_distance, edge_dst, wigner_inv, params)
    jax.block_until_ready(out)

    ref = reference(x, x_edge, edge_distance, edge_dst, wigner_inv, params)
    err = float(jnp.max(jnp.abs(out - ref)))
    assert err < 1e-3, f"max abs error too large: {err}"
    print("KERNEL_OK")
</pallas_src>

<mosaic_0001>
module attributes {stable_mosaic.version = 11 : i64} {
  func.func @edge_degree_kernel(%arg0: i32, %arg1: memref<6x144xf32, #tpu.memory_space<vmem>>, %arg2: memref<1x128xi32, #tpu.memory_space<vmem>>, %arg3: memref<128x8xf32, #tpu.memory_space<vmem>>, %arg4: memref<1x128xf32, #tpu.memory_space<vmem>>, %arg5: memref<128x27xf32, #tpu.memory_space<vmem>>, %arg6: memref<8x32xf32, #tpu.memory_space<vmem>>, %arg7: memref<1x32xf32, #tpu.memory_space<vmem>>, %arg8: memref<1x32xf32, #tpu.memory_space<vmem>>, %arg9: memref<1x32xf32, #tpu.memory_space<vmem>>, %arg10: memref<32x32xf32, #tpu.memory_space<vmem>>, %arg11: memref<1x32xf32, #tpu.memory_space<vmem>>, %arg12: memref<1x32xf32, #tpu.memory_space<vmem>>, %arg13: memref<1x32xf32, #tpu.memory_space<vmem>>, %arg14: memref<32x48xf32, #tpu.memory_space<vmem>>, %arg15: memref<1x48xf32, #tpu.memory_space<vmem>>, %arg16: memref<6x144xf32, #tpu.memory_space<vmem>>, %arg17: memref<128x144xf32, #tpu.memory_space<vmem>>) attributes {dimension_semantics = [#tpu.dimension_semantics<arbitrary>], iteration_bounds = array<i64: 2>, scalar_prefetch = 0 : i64, scratch_operands = 1 : i64, tpu.core_type = #tpu.core_type<tc>, window_params = [{pipeline_mode = #tpu.pipeline_mode<synchronous>, transform_indices = @transform_0, window_bounds = array<i64: 6, 144>}, {transform_indices = @transform_1, window_bounds = array<i64: 1, 128>}, {transform_indices = @transform_2, window_bounds = array<i64: 128, 8>}, {transform_indices = @transform_3, window_bounds = array<i64: 1, 128>}, {transform_indices = @transform_4, window_bounds = array<i64: 128, 27>}, {pipeline_mode = #tpu.pipeline_mode<synchronous>, transform_indices = @transform_5, window_bounds = array<i64: 8, 32>}, {pipeline_mode = #tpu.pipeline_mode<synchronous>, transform_indices = @transform_6, window_bounds = array<i64: 1, 32>}, {pipeline_mode = #tpu.pipeline_mode<synchronous>, transform_indices = @transform_7, window_bounds = array<i64: 1, 32>}, {pipeline_mode = #tpu.pipeline_mode<synchronous>, transform_indices = @transform_8, window_bounds = array<i64: 1, 32>}, {pipeline_mode = #tpu.pipeline_mode<synchronous>, transform_indices = @transform_9, window_bounds = array<i64: 32, 32>}, {pipeline_mode = #tpu.pipeline_mode<synchronous>, transform_indices = @transform_10, window_bounds = array<i64: 1, 32>}, {pipeline_mode = #tpu.pipeline_mode<synchronous>, transform_indices = @transform_11, window_bounds = array<i64: 1, 32>}, {pipeline_mode = #tpu.pipeline_mode<synchronous>, transform_indices = @transform_12, window_bounds = array<i64: 1, 32>}, {pipeline_mode = #tpu.pipeline_mode<synchronous>, transform_indices = @transform_13, window_bounds = array<i64: 32, 48>}, {pipeline_mode = #tpu.pipeline_mode<synchronous>, transform_indices = @transform_14, window_bounds = array<i64: 1, 48>}, {pipeline_mode = #tpu.pipeline_mode<synchronous>, transform_indices = @transform_15, window_bounds = array<i64: 6, 144>}]} {
    %c0_i32 = arith.constant 0 : i32
    %0 = arith.cmpi eq, %arg0, %c0_i32 : i32
    %1 = arith.extui %0 : i1 to i32
    %c0_i32_0 = arith.constant 0 : i32
    %2 = arith.cmpi ne, %1, %c0_i32_0 : i32
    scf.if %2 {
      %c0_68 = arith.constant 0 : index
      %c0_69 = arith.constant 0 : index
      %252 = vector.load %arg1[%c0_68, %c0_69] : memref<6x144xf32, #tpu.memory_space<vmem>>, vector<6x144xf32>
      %c0_70 = arith.constant 0 : index
      %c0_71 = arith.constant 0 : index
      %253 = vector.load %arg16[%c0_70, %c0_71] : memref<6x144xf32, #tpu.memory_space<vmem>>, vector<6x144xf32>
      tpu.vector_store %arg16[%c0_70, %c0_71], %252 {strides = array<i32>} : memref<6x144xf32, #tpu.memory_space<vmem>>, vector<6x144xf32>,
    } else {
    }
    %c0 = arith.constant 0 : index
    %c0_1 = arith.constant 0 : index
    %3 = vector.load %arg3[%c0, %c0_1] : memref<128x8xf32, #tpu.memory_space<vmem>>, vector<128x8xf32>
    %c0_2 = arith.constant 0 : index
    %c0_3 = arith.constant 0 : index
    %4 = vector.load %arg6[%c0_2, %c0_3] : memref<8x32xf32, #tpu.memory_space<vmem>>, vector<8x32xf32>
    %cst = arith.constant dense<0.000000e+00> : vector<128x32xf32>
    %5 = tpu.matmul %3, %4, %cst {dimension_numbers = #tpu.dot_dimension_numbers<[1], [0], [0], [1], [0, 0, 1, 1], [], []>} : vector<128x8xf32>, vector<8x32xf32>, vector<128x32xf32> -> vector<128x32xf32>
    %c0_4 = arith.constant 0 : index
    %c0_5 = arith.constant 0 : index
    %6 = vector.load %arg7[%c0_4, %c0_5] : memref<1x32xf32, #tpu.memory_space<vmem>>, vector<1x32xf32>
    %7 = vector.broadcast %6 : vector<1x32xf32> to vector<128x32xf32>
    %8 = arith.addf %5, %7 : vector<128x32xf32>
    %c0_6 = arith.constant 0 : index
    %c0_7 = arith.constant 0 : index
    %9 = vector.load %arg8[%c0_6, %c0_7] : memref<1x32xf32, #tpu.memory_space<vmem>>, vector<1x32xf32>
    %c0_8 = arith.constant 0 : index
    %c0_9 = arith.constant 0 : index
    %10 = vector.load %arg9[%c0_8, %c0_9] : memref<1x32xf32, #tpu.memory_space<vmem>>, vector<1x32xf32>
    %cst_10 = arith.constant dense<0.000000e+00> : vector<128xf32>
    %11 = vector.multi_reduction <add>, %8, %cst_10 [1] : vector<128x32xf32> to vector<128xf32>
    %12 = vector.shape_cast %11 : vector<128xf32> to vector<128x1xf32>
    %cst_11 = arith.constant 3.200000e+01 : f32
    %13 = vector.broadcast %cst_11 : f32 to vector<128x1xf32>
    %14 = arith.divf %12, %13 : vector<128x1xf32>
    %15 = vector.broadcast %14 : vector<128x1xf32> to vector<128x32xf32>
    %16 = arith.subf %8, %15 : vector<128x32xf32>
    %17 = arith.mulf %16, %16 : vector<128x32xf32>
    %cst_12 = arith.constant dense<0.000000e+00> : vector<128xf32>
    %18 = vector.multi_reduction <add>, %17, %cst_12 [1] : vector<128x32xf32> to vector<128xf32>
    %19 = vector.shape_cast %18 : vector<128xf32> to vector<128x1xf32>
    %cst_13 = arith.constant 3.200000e+01 : f32
    %20 = vector.broadcast %cst_13 : f32 to vector<128x1xf32>
    %21 = arith.divf %19, %20 : vector<128x1xf32>
    %22 = vector.broadcast %14 : vector<128x1xf32> to vector<128x32xf32>
    %23 = arith.subf %8, %22 : vector<128x32xf32>
    %cst_14 = arith.constant 9.99999974E-6 : f32
    %24 = vector.broadcast %cst_14 : f32 to vector<128x1xf32>
    %25 = arith.addf %21, %24 : vector<128x1xf32>
    %26 = math.rsqrt %25 : vector<128x1xf32>
    %27 = vector.broadcast %26 : vector<128x1xf32> to vector<128x32xf32>
    %28 = arith.mulf %23, %27 : vector<128x32xf32>
    %29 = vector.broadcast %9 : vector<1x32xf32> to vector<128x32xf32>
    %30 = arith.mulf %28, %29 : vector<128x32xf32>
    %31 = vector.broadcast %10 : vector<1x32xf32> to vector<128x32xf32>
    %32 = arith.addf %30, %31 : vector<128x32xf32>
    %33 = arith.negf %32 : vector<128x32xf32>
    %34 = math.exp %33 : vector<128x32xf32>
    %cst_15 = arith.constant 1.000000e+00 : f32
    %35 = vector.broadcast %cst_15 : f32 to vector<128x32xf32>
    %36 = arith.addf %35, %34 : vector<128x32xf32>
    %37 = arith.divf %35, %36 : vector<128x32xf32>
    %38 = arith.mulf %32, %37 : vector<128x32xf32>
    %c0_16 = arith.constant 0 : index
    %c0_17 = arith.constant 0 : index
    %39 = vector.load %arg10[%c0_16, %c0_17] : memref<32x32xf32, #tpu.memory_space<vmem>>, vector<32x32xf32>
    %cst_18 = arith.constant dense<0.000000e+00> : vector<128x32xf32>
    %40 = tpu.matmul %38, %39, %cst_18 {dimension_numbers = #tpu.dot_dimension_numbers<[1], [0], [0], [1], [0, 0, 1, 1], [], []>} : vector<128x32xf32>, vector<32x32xf32>, vector<128x32xf32> -> vector<128x32xf32>
    %c0_19 = arith.constant 0 : index
    %c0_20 = arith.constant 0 : index
    %41 = vector.load %arg11[%c0_19, %c0_20] : memref<1x32xf32, #tpu.memory_space<vmem>>, vector<1x32xf32>
    %42 = vector.broadcast %41 : vector<1x32xf32> to vector<128x32xf32>
    %43 = arith.addf %40, %42 : vector<128x32xf32>
    %c0_21 = arith.constant 0 : index
    %c0_22 = arith.constant 0 : index
    %44 = vector.load %arg12[%c0_21, %c0_22] : memref<1x32xf32, #tpu.memory_space<vmem>>, vector<1x32xf32>
    %c0_23 = arith.constant 0 : index
    %c0_24 = arith.constant 0 : index
    %45 = vector.load %arg13[%c0_23, %c0_24] : memref<1x32xf32, #tpu.memory_space<vmem>>, vector<1x32xf32>
    %cst_25 = arith.constant dense<0.000000e+00> : vector<128xf32>
    %46 = vector.multi_reduction <add>, %43, %cst_25 [1] : vector<128x32xf32> to vector<128xf32>
    %47 = vector.shape_cast %46 : vector<128xf32> to vector<128x1xf32>
    %cst_26 = arith.constant 3.200000e+01 : f32
    %48 = vector.broadcast %cst_26 : f32 to vector<128x1xf32>
    %49 = arith.divf %47, %48 : vector<128x1xf32>
    %50 = vector.broadcast %49 : vector<128x1xf32> to vector<128x32xf32>
    %51 = arith.subf %43, %50 : vector<128x32xf32>
    %52 = arith.mulf %51, %51 : vector<128x32xf32>
    %cst_27 = arith.constant dense<0.000000e+00> : vector<128xf32>
    %53 = vector.multi_reduction <add>, %52, %cst_27 [1] : vector<128x32xf32> to vector<128xf32>
    %54 = vector.shape_cast %53 : vector<128xf32> to vector<128x1xf32>
    %cst_28 = arith.constant 3.200000e+01 : f32
    %55 = vector.broadcast %cst_28 : f32 to vector<128x1xf32>
    %56 = arith.divf %54, %55 : vector<128x1xf32>
    %57 = vector.broadcast %49 : vector<128x1xf32> to vector<128x32xf32>
    %58 = arith.subf %43, %57 : vector<128x32xf32>
    %cst_29 = arith.constant 9.99999974E-6 : f32
    %59 = vector.broadcast %cst_29 : f32 to vector<128x1xf32>
    %60 = arith.addf %56, %59 : vector<128x1xf32>
    %61 = math.rsqrt %60 : vector<128x1xf32>
    %62 = vector.broadcast %61 : vector<128x1xf32> to vector<128x32xf32>
    %63 = arith.mulf %58, %62 : vector<128x32xf32>
    %64 = vector.broadcast %44 : vector<1x32xf32> to vector<128x32xf32>
    %65 = arith.mulf %63, %64 : vector<128x32xf32>
    %66 = vector.broadcast %45 : vector<1x32xf32> to vector<128x32xf32>
    %67 = arith.addf %65, %66 : vector<128x32xf32>
    %68 = arith.negf %67 : vector<128x32xf32>
    %69 = math.exp %68 : vector<128x32xf32>
    %cst_30 = arith.constant 1.000000e+00 : f32
    %70 = vector.broadcast %cst_30 : f32 to vector<128x32xf32>
    %71 = arith.addf %70, %69 : vector<128x32xf32>
    %72 = arith.divf %70, %71 : vector<128x32xf32>
    %73 = arith.mulf %67, %72 : vector<128x32xf32>
    %c0_31 = arith.constant 0 : index
    %c0_32 = arith.constant 0 : index
    %74 = vector.load %arg14[%c0_31, %c0_32] : memref<32x48xf32, #tpu.memory_space<vmem>>, vector<32x48xf32>
    %cst_33 = arith.constant dense<0.000000e+00> : vector<128x48xf32>
    %75 = tpu.matmul %73, %74, %cst_33 {dimension_numbers = #tpu.dot_dimension_numbers<[1], [0], [0], [1], [0, 0, 1, 1], [], []>} : vector<128x32xf32>, vector<32x48xf32>, vector<128x48xf32> -> vector<128x48xf32>
    %c0_34 = arith.constant 0 : index
    %c0_35 = arith.constant 0 : index
    %76 = vector.load %arg15[%c0_34, %c0_35] : memref<1x48xf32, #tpu.memory_space<vmem>>, vector<1x48xf32>
    %77 = vector.broadcast %76 : vector<1x48xf32> to vector<128x48xf32>
    %78 = arith.addf %75, %77 : vector<128x48xf32>
    %c0_36 = arith.constant 0 : index
    %c0_37 = arith.constant 0 : index
    %79 = vector.load %arg5[%c0_36, %c0_37] : memref<128x27xf32, #tpu.memory_space<vmem>>, vector<128x27xf32>
    %80 = vector.extract_strided_slice %79 {offsets = [0, 0], sizes = [128, 1], strides = [1, 1]} : vector<128x27xf32> to vector<128x1xf32>
    %81 = vector.extract_strided_slice %78 {offsets = [0, 0], sizes = [128, 16], strides = [1, 1]} : vector<128x48xf32> to vector<128x16xf32>
    %82 = vector.broadcast %80 : vector<128x1xf32> to vector<128x16xf32>
    %83 = arith.mulf %82, %81 : vector<128x16xf32>
    %84 = vector.extract_strided_slice %79 {offsets = [0, 1], sizes = [128, 1], strides = [1, 1]} : vector<128x27xf32> to vector<128x1xf32>
    %85 = vector.extract_strided_slice %78 {offsets = [0, 16], sizes = [128, 16], strides = [1, 1]} : vector<128x48xf32> to vector<128x16xf32>
    %86 = vector.broadcast %84 : vector<128x1xf32> to vector<128x16xf32>
    %87 = arith.mulf %86, %85 : vector<128x16xf32>
    %88 = arith.addf %83, %87 : vector<128x16xf32>
    %89 = vector.extract_strided_slice %79 {offsets = [0, 2], sizes = [128, 1], strides = [1, 1]} : vector<128x27xf32> to vector<128x1xf32>
    %90 = vector.extract_strided_slice %78 {offsets = [0, 32], sizes = [128, 16], strides = [1, 1]} : vector<128x48xf32> to vector<128x16xf32>
    %91 = vector.broadcast %89 : vector<128x1xf32> to vector<128x16xf32>
    %92 = arith.mulf %91, %90 : vector<128x16xf32>
    %93 = arith.addf %88, %92 : vector<128x16xf32>
    %c0_38 = arith.constant 0 : index
    %c0_39 = arith.constant 0 : index
    %94 = vector.load %arg17[%c0_38, %c0_39] : memref<128x144xf32, #tpu.memory_space<vmem>>, vector<128x16xf32>
    tpu.vector_store %arg17[%c0_38, %c0_39], %93 {strides = array<i32>} : memref<128x144xf32, #tpu.memory_space<vmem>>, vector<128x16xf32>,
    %95 = vector.extract_strided_slice %79 {offsets = [0, 3], sizes = [128, 1], strides = [1, 1]} : vector<128x27xf32> to vector<128x1xf32>
    %96 = vector.extract_strided_slice %78 {offsets = [0, 0], sizes = [128, 16], strides = [1, 1]} : vector<128x48xf32> to vector<128x16xf32>
    %97 = vector.broadcast %95 : vector<128x1xf32> to vector<128x16xf32>
    %98 = arith.mulf %97, %96 : vector<128x16xf32>
    %99 = vector.extract_strided_slice %79 {offsets = [0, 4], sizes = [128, 1], strides = [1, 1]} : vector<128x27xf32> to vector<128x1xf32>
    %100 = vector.extract_strided_slice %78 {offsets = [0, 16], sizes = [128, 16], strides = [1, 1]} : vector<128x48xf32> to vector<128x16xf32>
    %101 = vector.broadcast %99 : vector<128x1xf32> to vector<128x16xf32>
    %102 = arith.mulf %101, %100 : vector<128x16xf32>
    %103 = arith.addf %98, %102 : vector<128x16xf32>
    %104 = vector.extract_strided_slice %79 {offsets = [0, 5], sizes = [128, 1], strides = [1, 1]} : vector<128x27xf32> to vector<128x1xf32>
    %105 = vector.extract_strided_slice %78 {offsets = [0, 32], sizes = [128, 16], strides = [1, 1]} : vector<128x48xf32> to vector<128x16xf32>
    %106 = vector.broadcast %104 : vector<128x1xf32> to vector<128x16xf32>
    %107 = arith.mulf %106, %105 : vector<128x16xf32>
    %108 = arith.addf %103, %107 : vector<128x16xf32>
    %c0_40 = arith.constant 0 : index
    %c16 = arith.constant 16 : index
    %109 = vector.load %arg17[%c0_40, %c16] : memref<128x144xf32, #tpu.memory_space<vmem>>, vector<128x16xf32>
    tpu.vector_store %arg17[%c0_40, %c16], %108 {strides = array<i32>} : memref<128x144xf32, #tpu.memory_space<vmem>>, vector<128x16xf32>,
    %110 = vector.extract_strided_slice %79 {offsets = [0, 6], sizes = [128, 1], strides = [1, 1]} : vector<128x27xf32> to vector<128x1xf32>
    %111 = vector.extract_strided_slice %78 {offsets = [0, 0], sizes = [128, 16], strides = [1, 1]} : vector<128x48xf32> to vector<128x16xf32>
    %112 = vector.broadcast %110 : vector<128x1xf32> to vector<128x16xf32>
    %113 = arith.mulf %112, %111 : vector<128x16xf32>
    %114 = vector.extract_strided_slice %79 {offsets = [0, 7], sizes = [128, 1], strides = [1, 1]} : vector<128x27xf32> to vector<128x1xf32>
    %115 = vector.extract_strided_slice %78 {offsets = [0, 16], sizes = [128, 16], strides = [1, 1]} : vector<128x48xf32> to vector<128x16xf32>
    %116 = vector.broadcast %114 : vector<128x1xf32> to vector<128x16xf32>
    %117 = arith.mulf %116, %115 : vector<128x16xf32>
    %118 = arith.addf %113, %117 : vector<128x16xf32>
    %119 = vector.extract_strided_slice %79 {offsets = [0, 8], sizes = [128, 1], strides = [1, 1]} : vector<128x27xf32> to vector<128x1xf32>
    %120 = vector.extract_strided_slice %78 {offsets = [0, 32], sizes = [128, 16], strides = [1, 1]} : vector<128x48xf32> to vector<128x16xf32>
    %121 = vector.broadcast %119 : vector<128x1xf32> to vector<128x16xf32>
    %122 = arith.mulf %121, %120 : vector<128x16xf32>
    %123 = arith.addf %118, %122 : vector<128x16xf32>
    %c0_41 = arith.constant 0 : index
    %c32 = arith.constant 32 : index
    %124 = vector.load %arg17[%c0_41, %c32] : memref<128x144xf32, #tpu.memory_space<vmem>>, vector<128x16xf32>
    tpu.vector_store %arg17[%c0_41, %c32], %123 {strides = array<i32>} : memref<128x144xf32, #tpu.memory_space<vmem>>, vector<128x16xf32>,
    %125 = vector.extract_strided_slice %79 {offsets = [0, 9], sizes = [128, 1], strides = [1, 1]} : vector<128x27xf32> to vector<128x1xf32>
    %126 = vector.extract_strided_slice %78 {offsets = [0, 0], sizes = [128, 16], strides = [1, 1]} : vector<128x48xf32> to vector<128x16xf32>
    %127 = vector.broadcast %125 : vector<128x1xf32> to vector<128x16xf32>
    %128 = arith.mulf %127, %126 : vector<128x16xf32>
    %129 = vector.extract_strided_slice %79 {offsets = [0, 10], sizes = [128, 1], strides = [1, 1]} : vector<128x27xf32> to vector<128x1xf32>
    %130 = vector.extract_strided_slice %78 {offsets = [0, 16], sizes = [128, 16], strides = [1, 1]} : vector<128x48xf32> to vector<128x16xf32>
    %131 = vector.broadcast %129 : vector<128x1xf32> to vector<128x16xf32>
    %132 = arith.mulf %131, %130 : vector<128x16xf32>
    %133 = arith.addf %128, %132 : vector<128x16xf32>
    %134 = vector.extract_strided_slice %79 {offsets = [0, 11], sizes = [128, 1], strides = [1, 1]} : vector<128x27xf32> to vector<128x1xf32>
    %135 = vector.extract_strided_slice %78 {offsets = [0, 32], sizes = [128, 16], strides = [1, 1]} : vector<128x48xf32> to vector<128x16xf32>
    %136 = vector.broadcast %134 : vector<128x1xf32> to vector<128x16xf32>
    %137 = arith.mulf %136, %135 : vector<128x16xf32>
    %138 = arith.addf %133, %137 : vector<128x16xf32>
    %c0_42 = arith.constant 0 : index
    %c48 = arith.constant 48 : index
    %139 = vector.load %arg17[%c0_42, %c48] : memref<128x144xf32, #tpu.memory_space<vmem>>, vector<128x16xf32>
    tpu.vector_store %arg17[%c0_42, %c48], %138 {strides = array<i32>} : memref<128x144xf32, #tpu.memory_space<vmem>>, vector<128x16xf32>,
    %140 = vector.extract_strided_slice %79 {offsets = [0, 12], sizes = [128, 1], strides = [1, 1]} : vector<128x27xf32> to vector<128x1xf32>
    %141 = vector.extract_strided_slice %78 {offsets = [0, 0], sizes = [128, 16], strides = [1, 1]} : vector<128x48xf32> to vector<128x16xf32>
    %142 = vector.broadcast %140 : vector<128x1xf32> to vector<128x16xf32>
    %143 = arith.mulf %142, %141 : vector<128x16xf32>
    %144 = vector.extract_strided_slice %79 {offsets = [0, 13], sizes = [128, 1], strides = [1, 1]} : vector<128x27xf32> to vector<128x1xf32>
    %145 = vector.extract_strided_slice %78 {offsets = [0, 16], sizes = [128, 16], strides = [1, 1]} : vector<128x48xf32> to vector<128x16xf32>
    %146 = vector.broadcast %144 : vector<128x1xf32> to vector<128x16xf32>
    %147 = arith.mulf %146, %145 : vector<128x16xf32>
    %148 = arith.addf %143, %147 : vector<128x16xf32>
    %149 = vector.extract_strided_slice %79 {offsets = [0, 14], sizes = [128, 1], strides = [1, 1]} : vector<128x27xf32> to vector<128x1xf32>
    %150 = vector.extract_strided_slice %78 {offsets = [0, 32], sizes = [128, 16], strides = [1, 1]} : vector<128x48xf32> to vector<128x16xf32>
    %151 = vector.broadcast %149 : vector<128x1xf32> to vector<128x16xf32>
    %152 = arith.mulf %151, %150 : vector<128x16xf32>
    %153 = arith.addf %148, %152 : vector<128x16xf32>
    %c0_43 = arith.constant 0 : index
    %c64 = arith.constant 64 : index
    %154 = vector.load %arg17[%c0_43, %c64] : memref<128x144xf32, #tpu.memory_space<vmem>>, vector<128x16xf32>
    tpu.vector_store %arg17[%c0_43, %c64], %153 {strides = array<i32>} : memref<128x144xf32, #tpu.memory_space<vmem>>, vector<128x16xf32>,
    %155 = vector.extract_strided_slice %79 {offsets = [0, 15], sizes = [128, 1], strides = [1, 1]} : vector<128x27xf32> to vector<128x1xf32>
    %156 = vector.extract_strided_slice %78 {offsets = [0, 0], sizes = [128, 16], strides = [1, 1]} : vector<128x48xf32> to vector<128x16xf32>
    %157 = vector.broadcast %155 : vector<128x1xf32> to vector<128x16xf32>
    %158 = arith.mulf %157, %156 : vector<128x16xf32>
    %159 = vector.extract_strided_slice %79 {offsets = [0, 16], sizes = [128, 1], strides = [1, 1]} : vector<128x27xf32> to vector<128x1xf32>
    %160 = vector.extract_strided_slice %78 {offsets = [0, 16], sizes = [128, 16], strides = [1, 1]} : vector<128x48xf32> to vector<128x16xf32>
    %161 = vector.broadcast %159 : vector<128x1xf32> to vector<128x16xf32>
    %162 = arith.mulf %161, %160 : vector<128x16xf32>
    %163 = arith.addf %158, %162 : vector<128x16xf32>
    %164 = vector.extract_strided_slice %79 {offsets = [0, 17], sizes = [128, 1], strides = [1, 1]} : vector<128x27xf32> to vector<128x1xf32>
    %165 = vector.extract_strided_slice %78 {offsets = [0, 32], sizes = [128, 16], strides = [1, 1]} : vector<128x48xf32> to vector<128x16xf32>
    %166 = vector.broadcast %164 : vector<128x1xf32> to vector<128x16xf32>
    %167 = arith.mulf %166, %165 : vector<128x16xf32>
    %168 = arith.addf %163, %167 : vector<128x16xf32>
    %c0_44 = arith.constant 0 : index
    %c80 = arith.constant 80 : index
    %169 = vector.load %arg17[%c0_44, %c80] : memref<128x144xf32, #tpu.memory_space<vmem>>, vector<128x16xf32>
    tpu.vector_store %arg17[%c0_44, %c80], %168 {strides = array<i32>} : memref<128x144xf32, #tpu.memory_space<vmem>>, vector<128x16xf32>,
    %170 = vector.extract_strided_slice %79 {offsets = [0, 18], sizes = [128, 1], strides = [1, 1]} : vector<128x27xf32> to vector<128x1xf32>
    %171 = vector.extract_strided_slice %78 {offsets = [0, 0], sizes = [128, 16], strides = [1, 1]} : vector<128x48xf32> to vector<128x16xf32>
    %172 = vector.broadcast %170 : vector<128x1xf32> to vector<128x16xf32>
    %173 = arith.mulf %172, %171 : vector<128x16xf32>
    %174 = vector.extract_strided_slice %79 {offsets = [0, 19], sizes = [128, 1], strides = [1, 1]} : vector<128x27xf32> to vector<128x1xf32>
    %175 = vector.extract_strided_slice %78 {offsets = [0, 16], sizes = [128, 16], strides = [1, 1]} : vector<128x48xf32> to vector<128x16xf32>
    %176 = vector.broadcast %174 : vector<128x1xf32> to vector<128x16xf32>
    %177 = arith.mulf %176, %175 : vector<128x16xf32>
    %178 = arith.addf %173, %177 : vector<128x16xf32>
    %179 = vector.extract_strided_slice %79 {offsets = [0, 20], sizes = [128, 1], strides = [1, 1]} : vector<128x27xf32> to vector<128x1xf32>
    %180 = vector.extract_strided_slice %78 {offsets = [0, 32], sizes = [128, 16], strides = [1, 1]} : vector<128x48xf32> to vector<128x16xf32>
    %181 = vector.broadcast %179 : vector<128x1xf32> to vector<128x16xf32>
    %182 = arith.mulf %181, %180 : vector<128x16xf32>
    %183 = arith.addf %178, %182 : vector<128x16xf32>
    %c0_45 = arith.constant 0 : index
    %c96 = arith.constant 96 : index
    %184 = vector.load %arg17[%c0_45, %c96] : memref<128x144xf32, #tpu.memory_space<vmem>>, vector<128x16xf32>
    tpu.vector_store %arg17[%c0_45, %c96], %183 {strides = array<i32>} : memref<128x144xf32, #tpu.memory_space<vmem>>, vector<128x16xf32>,
    %185 = vector.extract_strided_slice %79 {offsets = [0, 21], sizes = [128, 1], strides = [1, 1]} : vector<128x27xf32> to vector<128x1xf32>
    %186 = vector.extract_strided_slice %78 {offsets = [0, 0], sizes = [128, 16], strides = [1, 1]} : vector<128x48xf32> to vector<128x16xf32>
    %187 = vector.broadcast %185 : vector<128x1xf32> to vector<128x16xf32>
    %188 = arith.mulf %187, %186 : vector<128x16xf32>
    %189 = vector.extract_strided_slice %79 {offsets = [0, 22], sizes = [128, 1], strides = [1, 1]} : vector<128x27xf32> to vector<128x1xf32>
    %190 = vector.extract_strided_slice %78 {offsets = [0, 16], sizes = [128, 16], strides = [1, 1]} : vector<128x48xf32> to vector<128x16xf32>
    %191 = vector.broadcast %189 : vector<128x1xf32> to vector<128x16xf32>
    %192 = arith.mulf %191, %190 : vector<128x16xf32>
    %193 = arith.addf %188, %192 : vector<128x16xf32>
    %194 = vector.extract_strided_slice %79 {offsets = [0, 23], sizes = [128, 1], strides = [1, 1]} : vector<128x27xf32> to vector<128x1xf32>
    %195 = vector.extract_strided_slice %78 {offsets = [0, 32], sizes = [128, 16], strides = [1, 1]} : vector<128x48xf32> to vector<128x16xf32>
    %196 = vector.broadcast %194 : vector<128x1xf32> to vector<128x16xf32>
    %197 = arith.mulf %196, %195 : vector<128x16xf32>
    %198 = arith.addf %193, %197 : vector<128x16xf32>
    %c0_46 = arith.constant 0 : index
    %c112 = arith.constant 112 : index
    %199 = vector.load %arg17[%c0_46, %c112] : memref<128x144xf32, #tpu.memory_space<vmem>>, vector<128x16xf32>
    tpu.vector_store %arg17[%c0_46, %c112], %198 {strides = array<i32>} : memref<128x144xf32, #tpu.memory_space<vmem>>, vector<128x16xf32>,
    %200 = vector.extract_strided_slice %79 {offsets = [0, 24], sizes = [128, 1], strides = [1, 1]} : vector<128x27xf32> to vector<128x1xf32>
    %201 = vector.extract_strided_slice %78 {offsets = [0, 0], sizes = [128, 16], strides = [1, 1]} : vector<128x48xf32> to vector<128x16xf32>
    %202 = vector.broadcast %200 : vector<128x1xf32> to vector<128x16xf32>
    %203 = arith.mulf %202, %201 : vector<128x16xf32>
    %204 = vector.extract_strided_slice %79 {offsets = [0, 25], sizes = [128, 1], strides = [1, 1]} : vector<128x27xf32> to vector<128x1xf32>
    %205 = vector.extract_strided_slice %78 {offsets = [0, 16], sizes = [128, 16], strides = [1, 1]} : vector<128x48xf32> to vector<128x16xf32>
    %206 = vector.broadcast %204 : vector<128x1xf32> to vector<128x16xf32>
    %207 = arith.mulf %206, %205 : vector<128x16xf32>
    %208 = arith.addf %203, %207 : vector<128x16xf32>
    %209 = vector.extract_strided_slice %79 {offsets = [0, 26], sizes = [128, 1], strides = [1, 1]} : vector<128x27xf32> to vector<128x1xf32>
    %210 = vector.extract_strided_slice %78 {offsets = [0, 32], sizes = [128, 16], strides = [1, 1]} : vector<128x48xf32> to vector<128x16xf32>
    %211 = vector.broadcast %209 : vector<128x1xf32> to vector<128x16xf32>
    %212 = arith.mulf %211, %210 : vector<128x16xf32>
    %213 = arith.addf %208, %212 : vector<128x16xf32>
    %c0_47 = arith.constant 0 : index
    %c128 = arith.constant 128 : index
    %214 = vector.load %arg17[%c0_47, %c128] : memref<128x144xf32, #tpu.memory_space<vmem>>, vector<128x16xf32>
    tpu.vector_store %arg17[%c0_47, %c128], %213 {strides = array<i32>} : memref<128x144xf32, #tpu.memory_space<vmem>>, vector<128x16xf32>,
    %c0_48 = arith.constant 0 : index
    %c0_49 = arith.constant 0 : index
    %215 = vector.load %arg4[%c0_48, %c0_49] : memref<1x128xf32, #tpu.memory_space<vmem>>, vector<1x128xf32>
    %cst_50 = arith.constant 2.000000e-01 : f32
    %216 = vector.broadcast %cst_50 : f32 to vector<1x128xf32>
    %217 = arith.mulf %215, %216 : vector<1x128xf32>
    %218 = arith.mulf %217, %217 : vector<1x128xf32>
    %219 = arith.mulf %218, %218 : vector<1x128xf32>
    %220 = arith.mulf %219, %217 : vector<1x128xf32>
    %221 = arith.mulf %220, %217 : vector<1x128xf32>
    %222 = arith.mulf %221, %217 : vector<1x128xf32>
    %cst_51 = arith.constant 1.000000e+00 : f32
    %223 = vector.broadcast %cst_51 : f32 to vector<1x128xf32>
    %224 = arith.cmpf olt, %217, %223 : vector<1x128xf32>
    %cst_52 = arith.constant -2.100000e+01 : f32
    %225 = vector.broadcast %cst_52 : f32 to vector<1x128xf32>
    %226 = arith.mulf %225, %220 : vector<1x128xf32>
    %cst_53 = arith.constant 1.000000e+00 : f32
    %227 = vector.broadcast %cst_53 : f32 to vector<1x128xf32>
    %228 = arith.addf %227, %226 : vector<1x128xf32>
    %cst_54 = arith.constant 3.500000e+01 : f32
    %229 = vector.broadcast %cst_54 : f32 to vector<1x128xf32>
    %230 = arith.mulf %229, %221 : vector<1x128xf32>
    %231 = arith.addf %228, %230 : vector<1x128xf32>
    %cst_55 = arith.constant -1.500000e+01 : f32
    %232 = vector.broadcast %cst_55 : f32 to vector<1x128xf32>
    %233 = arith.mulf %232, %222 : vector<1x128xf32>
    %234 = arith.addf %231, %233 : vector<1x128xf32>
    %cst_56 = arith.constant 0.000000e+00 : f32
    %235 = vector.broadcast %cst_56 : f32 to vector<1x128xf32>
    %236 = arith.select %224, %234, %235 : vector<1x128xi1>, vector<1x128xf32>
    %cst_57 = arith.constant 5.000000e-01 : f32
    %237 = vector.broadcast %cst_57 : f32 to vector<1x128xf32>
    %238 = arith.mulf %236, %237 : vector<1x128xf32>
    %239 = tpu.iota {dimensions = array<i32: 0>} : vector<6x128xi32>
    %c0_58 = arith.constant 0 : index
    %c0_59 = arith.constant 0 : index
    %240 = vector.load %arg2[%c0_58, %c0_59] : memref<1x128xi32, #tpu.memory_space<vmem>>, vector<1x128xi32>
    %241 = vector.broadcast %240 : vector<1x128xi32> to vector<6x128xi32>
    %242 = arith.cmpi eq, %239, %241 : vector<6x128xi32>
    %cst_60 = arith.constant 0.000000e+00 : f32
    %243 = vector.shape_cast %238 : vector<1x128xf32> to vector<1x128xf32>
    %244 = vector.broadcast %243 : vector<1x128xf32> to vector<6x128xf32>
    %245 = vector.broadcast %cst_60 : f32 to vector<6x128xf32>
    %246 = arith.select %242, %244, %245 : vector<6x128xi1>, vector<6x128xf32>
    %c0_61 = arith.constant 0 : index
    %c0_62 = arith.constant 0 : index
    %247 = vector.load %arg16[%c0_61, %c0_62] : memref<6x144xf32, #tpu.memory_space<vmem>>, vector<6x144xf32>
    %c0_63 = arith.constant 0 : index
    %c0_64 = arith.constant 0 : index
    %248 = vector.load %arg17[%c0_63, %c0_64] : memref<128x144xf32, #tpu.memory_space<vmem>>, vector<128x144xf32>
    %cst_65 = arith.constant dense<0.000000e+00> : vector<6x144xf32>
    %249 = tpu.matmul %246, %248, %cst_65 {dimension_numbers = #tpu.dot_dimension_numbers<[1], [0], [0], [1], [0, 0, 1, 1], [], []>} : vector<6x128xf32>, vector<128x144xf32>, vector<6x144xf32> -> vector<6x144xf32>
    %250 = arith.addf %247, %249 : vector<6x144xf32>
    %c0_66 = arith.constant 0 : index
    %c0_67 = arith.constant 0 : index
    %251 = vector.load %arg16[%c0_66, %c0_67] : memref<6x144xf32, #tpu.memory_space<vmem>>, vector<6x144xf32>
    tpu.vector_store %arg16[%c0_66, %c0_67], %250 {strides = array<i32>} : memref<6x144xf32, #tpu.memory_space<vmem>>, vector<6x144xf32>,
    return
  }
  func.func @transform_0(%arg0: i32) -> (i32, i32) {
    %c0_i32 = arith.constant 0 : i32
    %c0_i32_0 = arith.constant 0 : i32
    %c0_i32_1 = arith.constant 0 : i32
    return %c0_i32, %c0_i32_0 : i32, i32
  }
  func.func @transform_1(%arg0: i32) -> (i32, i32) {
    %c0_i32 = arith.constant 0 : i32
    %c0_i32_0 = arith.constant 0 : i32
    return %c0_i32, %arg0 : i32, i32
  }
  func.func @transform_2(%arg0: i32) -> (i32, i32) {
    %c0_i32 = arith.constant 0 : i32
    %c0_i32_0 = arith.constant 0 : i32
    return %arg0, %c0_i32 : i32, i32
  }
  func.func @transform_3(%arg0: i32) -> (i32, i32) {
    %c0_i32 = arith.constant 0 : i32
    %c0_i32_0 = arith.constant 0 : i32
    return %c0_i32, %arg0 : i32, i32
  }
  func.func @transform_4(%arg0: i32) -> (i32, i32) {
    %c0_i32 = arith.constant 0 : i32
    %c0_i32_0 = arith.constant 0 : i32
    return %arg0, %c0_i32 : i32, i32
  }
  func.func @transform_5(%arg0: i32) -> (i32, i32) {
    %c0_i32 = arith.constant 0 : i32
    %c0_i32_0 = arith.constant 0 : i32
    %c0_i32_1 = arith.constant 0 : i32
    return %c0_i32, %c0_i32_0 : i32, i32
  }
  func.func @transform_6(%arg0: i32) -> (i32, i32) {
    %c0_i32 = arith.constant 0 : i32
    %c0_i32_0 = arith.constant 0 : i32
    %c0_i32_1 = arith.constant 0 : i32
    return %c0_i32, %c0_i32_0 : i32, i32
  }
  func.func @transform_7(%arg0: i32) -> (i32, i32) {
    %c0_i32 = arith.constant 0 : i32
    %c0_i32_0 = arith.constant 0 : i32
    %c0_i32_1 = arith.constant 0 : i32
    return %c0_i32, %c0_i32_0 : i32, i32
  }
  func.func @transform_8(%arg0: i32) -> (i32, i32) {
    %c0_i32 = arith.constant 0 : i32
    %c0_i32_0 = arith.constant 0 : i32
    %c0_i32_1 = arith.constant 0 : i32
    return %c0_i32, %c0_i32_0 : i32, i32
  }
  func.func @transform_9(%arg0: i32) -> (i32, i32) {
    %c0_i32 = arith.constant 0 : i32
    %c0_i32_0 = arith.constant 0 : i32
    %c0_i32_1 = arith.constant 0 : i32
    return %c0_i32, %c0_i32_0 : i32, i32
  }
  func.func @transform_10(%arg0: i32) -> (i32, i32) {
    %c0_i32 = arith.constant 0 : i32
    %c0_i32_0 = arith.constant 0 : i32
    %c0_i32_1 = arith.constant 0 : i32
    return %c0_i32, %c0_i32_0 : i32, i32
  }
  func.func @transform_11(%arg0: i32) -> (i32, i32) {
    %c0_i32 = arith.constant 0 : i32
    %c0_i32_0 = arith.constant 0 : i32
    %c0_i32_1 = arith.constant 0 : i32
    return %c0_i32, %c0_i32_0 : i32, i32
  }
  func.func @transform_12(%arg0: i32) -> (i32, i32) {
    %c0_i32 = arith.constant 0 : i32
    %c0_i32_0 = arith.constant 0 : i32
    %c0_i32_1 = arith.constant 0 : i32
    return %c0_i32, %c0_i32_0 : i32, i32
  }
  func.func @transform_13(%arg0: i32) -> (i32, i32) {
    %c0_i32 = arith.constant 0 : i32
    %c0_i32_0 = arith.constant 0 : i32
    %c0_i32_1 = arith.constant 0 : i32
    return %c0_i32, %c0_i32_0 : i32, i32
  }
  func.func @transform_14(%arg0: i32) -> (i32, i32) {
    %c0_i32 = arith.constant 0 : i32
    %c0_i32_0 = arith.constant 0 : i32
    %c0_i32_1 = arith.constant 0 : i32
    return %c0_i32, %c0_i32_0 : i32, i32
  }
  func.func @transform_15(%arg0: i32) -> (i32, i32) {
    %c0_i32 = arith.constant 0 : i32
    %c0_i32_0 = arith.constant 0 : i32
    %c0_i32_1 = arith.constant 0 : i32
    return %c0_i32, %c0_i32_0 : i32, i32
  }
}

</mosaic_0001>

<llo_original>
// kernel: tpu_custom_call.1
$region0: #{tpu_custom_call.1}
  #allocation0 [shape = 'u32[]', space=smem, size = 0x4, offset = 0x4, fixed_abs, tag = 'smem constant byte address 0x4 - core index']
  #allocation1 [shape = 'u32[144,128]{1,0:T(1,128)}', space=vmem, size = 0x12000, scoped, tag = 'internal scratch']
  #allocation2 [shape = 'f32[128,144]{1,0:T(8,128)}', space=vmem, size = 0x20000, scoped, tag = 'scratch operand']
  %s0 = inlined_call_operand.vmem [shape: f32[6,144], index: 0, kind: input, shape index: {}]
  %s1 = inlined_call_operand.vmem [shape: s32[1,256], index: 1, kind: input, shape index: {}]
  %s2 = inlined_call_operand.vmem [shape: f32[256,8], index: 2, kind: input, shape index: {}]
  %s3 = inlined_call_operand.vmem [shape: f32[1,256], index: 3, kind: input, shape index: {}]
  %s4 = inlined_call_operand.vmem [shape: f32[256,27], index: 4, kind: input, shape index: {}]
  %s5 = inlined_call_operand.vmem [shape: f32[8,32], index: 5, kind: input, shape index: {}]
  %s6 = inlined_call_operand.vmem [shape: f32[1,32], index: 6, kind: input, shape index: {}]
  %s7 = inlined_call_operand.vmem [shape: f32[1,32], index: 7, kind: input, shape index: {}]
  %s8 = inlined_call_operand.vmem [shape: f32[1,32], index: 8, kind: input, shape index: {}]
  %s9 = inlined_call_operand.vmem [shape: f32[32,32], index: 9, kind: input, shape index: {}]
  %s10 = inlined_call_operand.vmem [shape: f32[1,32], index: 10, kind: input, shape index: {}]
  %s11 = inlined_call_operand.vmem [shape: f32[1,32], index: 11, kind: input, shape index: {}]
  %s12 = inlined_call_operand.vmem [shape: f32[1,32], index: 12, kind: input, shape index: {}]
  %s13 = inlined_call_operand.vmem [shape: f32[32,48], index: 13, kind: input, shape index: {}]
  %s14 = inlined_call_operand.vmem [shape: f32[1,48], index: 14, kind: input, shape index: {}]
  %s15 = inlined_call_operand.hbm [shape: f32[6,144], index: 15, kind: output, shape index: {}]
  %s16 = sld [smem:[#allocation0]]
  $region97: #{tpu_custom_call.1} parent=0
    _
  %s18 = ssub.s32 1, %s16
  %s19 = scalar_select 0, %s18, %s16
  $region1: #{tpu_custom_call.1} parent=0
    #allocation3 [shape = 'u8[8192]{0}', space=vmem, size = 0x2000, scoped, tag = 'output window, operand 0, single buffered']
    #allocation4 [shape = 's32[2]{0}', space=sflag, size = 0x8, scoped, tag = 'scoped memory for tpu_custom_call.1']
    %20 = vsyncpa [#allocation4], 0
    loop: start=0, step=1, limit=4
    $region2: #{tpu_custom_call.1} parent=1 // loop_pre_header
      _
    $region3: #{tpu_custom_call.1} parent=1 // loop_header
      %s22 = sphi 0, %s26
      %p23 = scmp.ge.s32.totalorder %s22, 4
      %s30 = sphi 0, %s30
      %s32 = sphi 0, %s30
      %s33 = sphi 0, %s32
      %s47 = sphi 0, %s33
      %s53 = sphi 0, %s55
      %s56 = sphi 0, %s53
      %s57 = sphi 0, %s56
      %s73 = sphi 0, %s57
      %s79 = sphi 0, %s81
      %s82 = sphi 0, %s79
      %s83 = sphi 0, %s82
      %s99 = sphi 0, %s83
      %s105 = sphi 0, %s107
      %s108 = sphi 0, %s105
      %s109 = sphi 0, %s108
      %s125 = sphi 0, %s109
      %s131 = sphi 0, %s133
      %s134 = sphi 0, %s131
      %s135 = sphi 0, %s134
      %s151 = sphi 0, %s135
      %s155 = sphi 0, %s155
      %s157 = sphi 0, %s155
      %s158 = sphi 0, %s157
      %s172 = sphi 0, %s158
      %s176 = sphi 0, %s176
      %s178 = sphi 0, %s176
      %s179 = sphi 0, %s178
      %s193 = sphi 0, %s179
      %s197 = sphi 0, %s197
      %s199 = sphi 0, %s197
      %s200 = sphi 0, %s199
      %s214 = sphi 0, %s200
      %s218 = sphi 0, %s218
      %s220 = sphi 0, %s218
      %s221 = sphi 0, %s220
      %s235 = sphi 0, %s221
      %s239 = sphi 0, %s239
      %s241 = sphi 0, %s239
      %s242 = sphi 0, %s241
      %s256 = sphi 0, %s242
      %s260 = sphi 0, %s260
      %s262 = sphi 0, %s260
      %s263 = sphi 0, %s262
      %s277 = sphi 0, %s263
      %s281 = sphi 0, %s281
      %s283 = sphi 0, %s281
      %s284 = sphi 0, %s283
      %s298 = sphi 0, %s284
      %s302 = sphi 0, %s302
      %s304 = sphi 0, %s302
      %s305 = sphi 0, %s304
      %s319 = sphi 0, %s305
      %s323 = sphi 0, %s323
      %s325 = sphi 0, %s323
      %s326 = sphi 0, %s325
      %s340 = sphi 0, %s326
      %s344 = sphi 0, %s344
      %s346 = sphi 0, %s344
      %s347 = sphi 0, %s346
      %s361 = sphi 0, %s347
      %s365 = sphi 0, %s365
      %s367 = sphi 0, %s365
      %s368 = sphi 0, %s367
      %s382 = sphi 0, %s368
    $region4: #{tpu_custom_call.1} parent=1 // loop_header_branch
      %25 = sbr.rel (%p23) target = $region8
    $region5: #{tpu_custom_call.1} parent=1 // loop_body
      %s27 = ssub.s32 %s22, 1
      %s28 = ssub.s32 %s22, 2
      %s29 = sadd.s32 %s22, 1
      %s31 = sadd.s32 %s30, 1
      %p34 = scmp.eq.s32.totalorder %s22, 1
      %p35 = scmp.ne.s32.totalorder %s30, %s32
      %p36 = scmp.eq.s32.totalorder %s22, 0
      %p37 = por %p35, %p36
      %p38 = scmp.ne.s32.totalorder %s30, %s32
      %p39 = scmp.eq.s32.totalorder %s27, 1
      %p40 = por %p38, %p39
      %p41 = scmp.ne.s32.totalorder %s32, %s33
      %p42 = scmp.eq.s32.totalorder %s27, 0
      %p43 = por %p41, %p42
      %p44 = scmp.ne.s32.totalorder %s32, %s33
      %p45 = scmp.eq.s32.totalorder %s28, 1
      %p46 = por %p44, %p45
      %p48 = scmp.ne.s32.totalorder %s33, %s47
      %p49 = scmp.eq.s32.totalorder %s28, 0
      %p50 = por %p48, %p49
      %s51 = ssub.s32 %s22, %s29
      %p52 = scmp.eq.s32.totalorder %s51, 0
      %s54 = sadd.s32 %s53, 1
      %s55 = scalar_select %p52, %s53, %s54
      %p58 = pneg %p52
      %p59 = scmp.eq.s32.totalorder %s22, 1
      %p60 = por %p58, %p59
      %p61 = scmp.ne.s32.totalorder %s53, %s56
      %p62 = scmp.eq.s32.totalorder %s22, 0
      %p63 = por %p61, %p62
      %p64 = scmp.ne.s32.totalorder %s53, %s56
      %p65 = scmp.eq.s32.totalorder %s27, 1
      %p66 = por %p64, %p65
      %p67 = scmp.ne.s32.totalorder %s56, %s57
      %p68 = scmp.eq.s32.totalorder %s27, 0
      %p69 = por %p67, %p68
      %p70 = scmp.ne.s32.totalorder %s56, %s57
      %p71 = scmp.eq.s32.totalorder %s28, 1
      %p72 = por %p70, %p71
      %p74 = scmp.ne.s32.totalorder %s57, %s73
      %p75 = scmp.eq.s32.totalorder %s28, 0
      %p76 = por %p74, %p75
      %s77 = ssub.s32 %s22, %s29
      %p78 = scmp.eq.s32.totalorder %s77, 0
      %s80 = sadd.s32 %s79, 1
      %s81 = scalar_select %p78, %s79, %s80
      %p84 = pneg %p78
      %p85 = scmp.eq.s32.totalorder %s22, 1
      %p86 = por %p84, %p85
      %p87 = scmp.ne.s32.totalorder %s79, %s82
      %p88 = scmp.eq.s32.totalorder %s22, 0
      %p89 = por %p87, %p88
      %p90 = scmp.ne.s32.totalorder %s79, %s82
      %p91 = scmp.eq.s32.totalorder %s27, 1
      %p92 = por %p90, %p91
      %p93 = scmp.ne.s32.totalorder %s82, %s83
      %p94 = scmp.eq.s32.totalorder %s27, 0
      %p95 = por %p93, %p94
      %p96 = scmp.ne.s32.totalorder %s82, %s83
      %p97 = scmp.eq.s32.totalorder %s28, 1
      %p98 = por %p96, %p97
      %p100 = scmp.ne.s32.totalorder %s83, %s99
      %p101 = scmp.eq.s32.totalorder %s28, 0
      %p102 = por %p100, %p101
      %s103 = ssub.s32 %s22, %s29
      %p104 = scmp.eq.s32.totalorder %s103, 0
      %s106 = sadd.s32 %s105, 1
      %s107 = scalar_select %p104, %s105, %s106
      %p110 = pneg %p104
      %p111 = scmp.eq.s32.totalorder %s22, 1
      %p112 = por %p110, %p111
      %p113 = scmp.ne.s32.totalorder %s105, %s108
      %p114 = scmp.eq.s32.totalorder %s22, 0
      %p115 = por %p113, %p114
      %p116 = scmp.ne.s32.totalorder %s105, %s108
      %p117 = scmp.eq.s32.totalorder %s27, 1
      %p118 = por %p116, %p117
      %p119 = scmp.ne.s32.totalorder %s108, %s109
      %p120 = scmp.eq.s32.totalorder %s27, 0
      %p121 = por %p119, %p120
      %p122 = scmp.ne.s32.totalorder %s108, %s109
      %p123 = scmp.eq.s32.totalorder %s28, 1
      %p124 = por %p122, %p123
      %p126 = scmp.ne.s32.totalorder %s109, %s125
      %p127 = scmp.eq.s32.totalorder %s28, 0
      %p128 = por %p126, %p127
      %s129 = ssub.s32 %s22, %s29
      %p130 = scmp.eq.s32.totalorder %s129, 0
      %s132 = sadd.s32 %s131, 1
      %s133 = scalar_select %p130, %s131, %s132
      %p136 = pneg %p130
      %p137 = scmp.eq.s32.totalorder %s22, 1
      %p138 = por %p136, %p137
      %p139 = scmp.ne.s32.totalorder %s131, %s134
      %p140 = scmp.eq.s32.totalorder %s22, 0
      %p141 = por %p139, %p140
      %p142 = scmp.ne.s32.totalorder %s131, %s134
      %p143 = scmp.eq.s32.totalorder %s27, 1
      %p144 = por %p142, %p143
      %p145 = scmp.ne.s32.totalorder %s134, %s135
      %p146 = scmp.eq.s32.totalorder %s27, 0
      %p147 = por %p145, %p146
      %p148 = scmp.ne.s32.totalorder %s134, %s135
      %p149 = scmp.eq.s32.totalorder %s28, 1
      %p150 = por %p148, %p149
      %p152 = scmp.ne.s32.totalorder %s135, %s151
      %p153 = scmp.eq.s32.totalorder %s28, 0
      %p154 = por %p152, %p153
      %s156 = sadd.s32 %s155, 1
      %p159 = scmp.eq.s32.totalorder %s22, 1
      %p160 = scmp.ne.s32.totalorder %s155, %s157
      %p161 = scmp.eq.s32.totalorder %s22, 0
      %p162 = por %p160, %p161
      %p163 = scmp.ne.s32.totalorder %s155, %s157
      %p164 = scmp.eq.s32.totalorder %s27, 1
      %p165 = por %p163, %p164
      %p166 = scmp.ne.s32.totalorder %s157, %s158
      %p167 = scmp.eq.s32.totalorder %s27, 0
      %p168 = por %p166, %p167
      %p169 = scmp.ne.s32.totalorder %s157, %s158
      %p170 = scmp.eq.s32.totalorder %s28, 1
      %p171 = por %p169, %p170
      %p173 = scmp.ne.s32.totalorder %s158, %s172
      %p174 = scmp.eq.s32.totalorder %s28, 0
      %p175 = por %p173, %p174
      %s177 = sadd.s32 %s176, 1
      %p180 = scmp.eq.s32.totalorder %s22, 1
      %p181 = scmp.ne.s32.totalorder %s176, %s178
      %p182 = scmp.eq.s32.totalorder %s22, 0
      %p183 = por %p181, %p182
      %p184 = scmp.ne.s32.totalorder %s176, %s178
      %p185 = scmp.eq.s32.totalorder %s27, 1
      %p186 = por %p184, %p185
      %p187 = scmp.ne.s32.totalorder %s178, %s179
      %p188 = scmp.eq.s32.totalorder %s27, 0
      %p189 = por %p187, %p188
      %p190 = scmp.ne.s32.totalorder %s178, %s179
      %p191 = scmp.eq.s32.totalorder %s28, 1
      %p192 = por %p190, %p191
      %p194 = scmp.ne.s32.totalorder %s179, %s193
      %p195 = scmp.eq.s32.totalorder %s28, 0
      %p196 = por %p194, %p195
      %s198 = sadd.s32 %s197, 1
      %p201 = scmp.eq.s32.totalorder %s22, 1
      %p202 = scmp.ne.s32.totalorder %s197, %s199
      %p203 = scmp.eq.s32.totalorder %s22, 0
      %p204 = por %p202, %p203
      %p205 = scmp.ne.s32.totalorder %s197, %s199
      %p206 = scmp.eq.s32.totalorder %s27, 1
      %p207 = por %p205, %p206
      %p208 = scmp.ne.s32.totalorder %s199, %s200
      %p209 = scmp.eq.s32.totalorder %s27, 0
      %p210 = por %p208, %p209
      %p211 = scmp.ne.s32.totalorder %s199, %s200
      %p212 = scmp.eq.s32.totalorder %s28, 1
      %p213 = por %p211, %p212
      %p215 = scmp.ne.s32.totalorder %s200, %s214
      %p216 = scmp.eq.s32.totalorder %s28, 0
      %p217 = por %p215, %p216
      %s219 = sadd.s32 %s218, 1
      %p222 = scmp.eq.s32.totalorder %s22, 1
      %p223 = scmp.ne.s32.totalorder %s218, %s220
      %p224 = scmp.eq.s32.totalorder %s22, 0
      %p225 = por %p223, %p224
      %p226 = scmp.ne.s32.totalorder %s218, %s220
      %p227 = scmp.eq.s32.totalorder %s27, 1
      %p228 = por %p226, %p227
      %p229 = scmp.ne.s32.totalorder %s220, %s221
      %p230 = scmp.eq.s32.totalorder %s27, 0
      %p231 = por %p229, %p230
      %p232 = scmp.ne.s32.totalorder %s220, %s221
      %p233 = scmp.eq.s32.totalorder %s28, 1
      %p234 = por %p232, %p233
      %p236 = scmp.ne.s32.totalorder %s221, %s235
      %p237 = scmp.eq.s32.totalorder %s28, 0
      %p238 = por %p236, %p237
      %s240 = sadd.s32 %s239, 1
      %p243 = scmp.eq.s32.totalorder %s22, 1
      %p244 = scmp.ne.s32.totalorder %s239, %s241
      %p245 = scmp.eq.s32.totalorder %s22, 0
      %p246 = por %p244, %p245
      %p247 = scmp.ne.s32.totalorder %s239, %s241
      %p248 = scmp.eq.s32.totalorder %s27, 1
      %p249 = por %p247, %p248
      %p250 = scmp.ne.s32.totalorder %s241, %s242
      %p251 = scmp.eq.s32.totalorder %s27, 0
      %p252 = por %p250, %p251
      %p253 = scmp.ne.s32.totalorder %s241, %s242
      %p254 = scmp.eq.s32.totalorder %s28, 1
      %p255 = por %p253, %p254
      %p257 = scmp.ne.s32.totalorder %s242, %s256
      %p258 = scmp.eq.s32.totalorder %s28, 0
      %p259 = por %p257, %p258
      %s261 = sadd.s32 %s260, 1
      %p264 = scmp.eq.s32.totalorder %s22, 1
      %p265 = scmp.ne.s32.totalorder %s260, %s262
      %p266 = scmp.eq.s32.totalorder %s22, 0
      %p267 = por %p265, %p266
      %p268 = scmp.ne.s32.totalorder %s260, %s262
      %p269 = scmp.eq.s32.totalorder %s27, 1
      %p270 = por %p268, %p269
      %p271 = scmp.ne.s32.totalorder %s262, %s263
      %p272 = scmp.eq.s32.totalorder %s27, 0
      %p273 = por %p271, %p272
      %p274 = scmp.ne.s32.totalorder %s262, %s263
      %p275 = scmp.eq.s32.totalorder %s28, 1
      %p276 = por %p274, %p275
      %p278 = scmp.ne.s32.totalorder %s263, %s277
      %p279 = scmp.eq.s32.totalorder %s28, 0
      %p280 = por %p278, %p279
      %s282 = sadd.s32 %s281, 1
      %p285 = scmp.eq.s32.totalorder %s22, 1
      %p286 = scmp.ne.s32.totalorder %s281, %s283
      %p287 = scmp.eq.s32.totalorder %s22, 0
      %p288 = por %p286, %p287
      %p289 = scmp.ne.s32.totalorder %s281, %s283
      %p290 = scmp.eq.s32.totalorder %s27, 1
      %p291 = por %p289, %p290
      %p292 = scmp.ne.s32.totalorder %s283, %s284
      %p293 = scmp.eq.s32.totalorder %s27, 0
      %p294 = por %p292, %p293
      %p295 = scmp.ne.s32.totalorder %s283, %s284
      %p296 = scmp.eq.s32.totalorder %s28, 1
      %p297 = por %p295, %p296
      %p299 = scmp.ne.s32.totalorder %s284, %s298
      %p300 = scmp.eq.s32.totalorder %s28, 0
      %p301 = por %p299, %p300
      %s303 = sadd.s32 %s302, 1
      %p306 = scmp.eq.s32.totalorder %s22, 1
      %p307 = scmp.ne.s32.totalorder %s302, %s304
      %p308 = scmp.eq.s32.totalorder %s22, 0
      %p309 = por %p307, %p308
      %p310 = scmp.ne.s32.totalorder %s302, %s304
      %p311 = scmp.eq.s32.totalorder %s27, 1
      %p312 = por %p310, %p311
      %p313 = scmp.ne.s32.totalorder %s304, %s305
      %p314 = scmp.eq.s32.totalorder %s27, 0
      %p315 = por %p313, %p314
      %p316 = scmp.ne.s32.totalorder %s304, %s305
      %p317 = scmp.eq.s32.totalorder %s28, 1
      %p318 = por %p316, %p317
      %p320 = scmp.ne.s32.totalorder %s305, %s319
      %p321 = scmp.eq.s32.totalorder %s28, 0
      %p322 = por %p320, %p321
      %s324 = sadd.s32 %s323, 1
      %p327 = scmp.eq.s32.totalorder %s22, 1
      %p328 = scmp.ne.s32.totalorder %s323, %s325
      %p329 = scmp.eq.s32.totalorder %s22, 0
      %p330 = por %p328, %p329
      %p331 = scmp.ne.s32.totalorder %s323, %s325
      %p332 = scmp.eq.s32.totalorder %s27, 1
      %p333 = por %p331, %p332
      %p334 = scmp.ne.s32.totalorder %s325, %s326
      %p335 = scmp.eq.s32.totalorder %s27, 0
      %p336 = por %p334, %p335
      %p337 = scmp.ne.s32.totalorder %s325, %s326
      %p338 = scmp.eq.s32.totalorder %s28, 1
      %p339 = por %p337, %p338
      %p341 = scmp.ne.s32.totalorder %s326, %s340
      %p342 = scmp.eq.s32.totalorder %s28, 0
      %p343 = por %p341, %p342
      %s345 = sadd.s32 %s344, 1
      %p348 = scmp.eq.s32.totalorder %s22, 1
      %p349 = scmp.ne.s32.totalorder %s344, %s346
      %p350 = scmp.eq.s32.totalorder %s22, 0
      %p351 = por %p349, %p350
      %p352 = scmp.ne.s32.totalorder %s344, %s346
      %p353 = scmp.eq.s32.totalorder %s27, 1
      %p354 = por %p352, %p353
      %p355 = scmp.ne.s32.totalorder %s346, %s347
      %p356 = scmp.eq.s32.totalorder %s27, 0
      %p357 = por %p355, %p356
      %p358 = scmp.ne.s32.totalorder %s346, %s347
      %p359 = scmp.eq.s32.totalorder %s28, 1
      %p360 = por %p358, %p359
      %p362 = scmp.ne.s32.totalorder %s347, %s361
      %p363 = scmp.eq.s32.totalorder %s28, 0
      %p364 = por %p362, %p363
      %s366 = sadd.s32 %s365, 1
      %p369 = scmp.eq.s32.totalorder %s22, 1
      %p370 = scmp.ne.s32.totalorder %s365, %s367
      %p371 = scmp.eq.s32.totalorder %s22, 0
      %p372 = por %p370, %p371
      %p373 = scmp.ne.s32.totalorder %s365, %s367
      %p374 = scmp.eq.s32.totalorder %s27, 1
      %p375 = por %p373, %p374
      %p376 = scmp.ne.s32.totalorder %s367, %s368
      %p377 = scmp.eq.s32.totalorder %s27, 0
      %p378 = por %p376, %p377
      %p379 = scmp.ne.s32.totalorder %s367, %s368
      %p380 = scmp.eq.s32.totalorder %s28, 1
      %p381 = por %p379, %p380
      %p383 = scmp.ne.s32.totalorder %s368, %s382
      %p384 = scmp.eq.s32.totalorder %s28, 0
      %p385 = por %p383, %p384
      %p386 = scmp.le.s32.totalorder 1, %s22
      %p387 = scmp.lt.s32.totalorder %s22, 3
      %p388 = pnand %p386, %p387
      %p389 = pneg %p388
      // Predicated region
      $region9: #{tpu_custom_call.1} parent=5 // pred_check
        _
      $region10: #{tpu_custom_call.1} parent=5 // pred_check_branch
        %391 = sbr.rel (%p388) target = $region12
      $region11: #{tpu_custom_call.1} parent=5 // pred_region
        %s392 = ssub.s32 %s22, 1
        // Predicated region
        $region13: #{tpu_custom_call.1} parent=11 // pred_check
          %p393 = pneg %p43
        $region14: #{tpu_custom_call.1} parent=11 // pred_check_branch
          %395 = sbr.rel (%p393) target = $region16
        $region15: #{tpu_custom_call.1} parent=11 // pred_region
          _
        $region16: #{tpu_custom_call.1} parent=11 // pred_fallthru
          _
        // Predicated region
        $region17: #{tpu_custom_call.1} parent=11 // pred_check
          %p396 = pneg %p168
        $region18: #{tpu_custom_call.1} parent=11 // pred_check_branch
          %398 = sbr.rel (%p396) target = $region20
        $region19: #{tpu_custom_call.1} parent=11 // pred_region
          _
        $region20: #{tpu_custom_call.1} parent=11 // pred_fallthru
          _
        // Predicated region
        $region21: #{tpu_custom_call.1} parent=11 // pred_check
          %p399 = pneg %p189
        $region22: #{tpu_custom_call.1} parent=11 // pred_check_branch
          %401 = sbr.rel (%p399) target = $region24
        $region23: #{tpu_custom_call.1} parent=11 // pred_region
          _
        $region24: #{tpu_custom_call.1} parent=11 // pred_fallthru
          _
        // Predicated region
        $region25: #{tpu_custom_call.1} parent=11 // pred_check
          %p402 = pneg %p210
        $region26: #{tpu_custom_call.1} parent=11 // pred_check_branch
          %404 = sbr.rel (%p402) target = $region28
        $region27: #{tpu_custom_call.1} parent=11 // pred_region
          _
        $region28: #{tpu_custom_call.1} parent=11 // pred_fallthru
          _
        // Predicated region
        $region29: #{tpu_custom_call.1} parent=11 // pred_check
          %p405 = pneg %p231
        $region30: #{tpu_custom_call.1} parent=11 // pred_check_branch
          %407 = sbr.rel (%p405) target = $region32
        $region31: #{tpu_custom_call.1} parent=11 // pred_region
          _
        $region32: #{tpu_custom_call.1} parent=11 // pred_fallthru
          _
        // Predicated region
        $region33: #{tpu_custom_call.1} parent=11 // pred_check
          %p408 = pneg %p252
        $region34: #{tpu_custom_call.1} parent=11 // pred_check_branch
          %410 = sbr.rel (%p408) target = $region36
        $region35: #{tpu_custom_call.1} parent=11 // pred_region
          _
        $region36: #{tpu_custom_call.1} parent=11 // pred_fallthru
          _
        // Predicated region
        $region37: #{tpu_custom_call.1} parent=11 // pred_check
          %p411 = pneg %p273
        $region38: #{tpu_custom_call.1} parent=11 // pred_check_branch
          %413 = sbr.rel (%p411) target = $region40
        $region39: #{tpu_custom_call.1} parent=11 // pred_region
          _
        $region40: #{tpu_custom_call.1} parent=11 // pred_fallthru
          _
        // Predicated region
        $region41: #{tpu_custom_call.1} parent=11 // pred_check
          %p414 = pneg %p294
        $region42: #{tpu_custom_call.1} parent=11 // pred_check_branch
          %416 = sbr.rel (%p414) target = $region44
        $region43: #{tpu_custom_call.1} parent=11 // pred_region
          _
        $region44: #{tpu_custom_call.1} parent=11 // pred_fallthru
          _
        // Predicated region
        $region45: #{tpu_custom_call.1} parent=11 // pred_check
          %p417 = pneg %p315
        $region46: #{tpu_custom_call.1} parent=11 // pred_check_branch
          %419 = sbr.rel (%p417) target = $region48
        $region47: #{tpu_custom_call.1} parent=11 // pred_region
          _
        $region48: #{tpu_custom_call.1} parent=11 // pred_fallthru
          _
        // Predicated region
        $region49: #{tpu_custom_call.1} parent=11 // pred_check
          %p420 = pneg %p336
        $region50: #{tpu_custom_call.1} parent=11 // pred_check_branch
          %422 = sbr.rel (%p420) target = $region52
        $region51: #{tpu_custom_call.1} parent=11 // pred_region
          _
        $region52: #{tpu_custom_call.1} parent=11 // pred_fallthru
          _
        // Predicated region
        $region53: #{tpu_custom_call.1} parent=11 // pred_check
          %p423 = pneg %p357
        $region54: #{tpu_custom_call.1} parent=11 // pred_check_branch
          %425 = sbr.rel (%p423) target = $region56
        $region55: #{tpu_custom_call.1} parent=11 // pred_region
          _
        $region56: #{tpu_custom_call.1} parent=11 // pred_fallthru
          _
      $region12: #{tpu_custom_call.1} parent=5 // pred_fallthru
        _
      %p426 = scmp.lt.s32.totalorder %s22, 2
      // Predicated region
      $region57: #{tpu_custom_call.1} parent=5 // pred_check
        %p427 = pneg %p426
      $region58: #{tpu_custom_call.1} parent=5 // pred_check_branch
        %429 = sbr.rel (%p427) target = $region60
      $region59: #{tpu_custom_call.1} parent=5 // pred_region
        // Predicated region
        $region61: #{tpu_custom_call.1} parent=59 // pred_check
          %p430 = pneg %p63
        $region62: #{tpu_custom_call.1} parent=59 // pred_check_branch
          %432 = sbr.rel (%p430) target = $region64
        $region63: #{tpu_custom_call.1} parent=59 // pred_region
          %p433 = scmp.lt.s32.totalorder %s22, 1
          %s434 = scalar_select %p433, %s22, 1
          %s435 = scalar_lea.vmem %s1, %s434
        $region64: #{tpu_custom_call.1} parent=59 // pred_fallthru
          _
        // Predicated region
        $region65: #{tpu_custom_call.1} parent=59 // pred_check
          %p436 = pneg %p89
        $region66: #{tpu_custom_call.1} parent=59 // pred_check_branch
          %438 = sbr.rel (%p436) target = $region68
        $region67: #{tpu_custom_call.1} parent=59 // pred_region
          %s439 = smul.u32 16, %s22
          %p440 = scmp.lt.s32.totalorder %s439, 31
          %s441 = scalar_select %p440, %s439, 31
          %s442 = smul.addr %s441, 8
          %s443 = scalar_lea.vmem %s2, %s442
          %s444 = smul.u32 16, %s22
        $region68: #{tpu_custom_call.1} parent=59 // pred_fallthru
          _
        // Predicated region
        $region69: #{tpu_custom_call.1} parent=59 // pred_check
          %p445 = pneg %p115
        $region70: #{tpu_custom_call.1} parent=59 // pred_check_branch
          %447 = sbr.rel (%p445) target = $region72
        $region71: #{tpu_custom_call.1} parent=59 // pred_region
          %p448 = scmp.lt.s32.totalorder %s22, 1
          %s449 = scalar_select %p448, %s22, 1
          %s450 = scalar_lea.vmem %s3, %s449
        $region72: #{tpu_custom_call.1} parent=59 // pred_fallthru
          _
        // Predicated region
        $region73: #{tpu_custom_call.1} parent=59 // pred_check
          %p451 = pneg %p141
        $region74: #{tpu_custom_call.1} parent=59 // pred_check_branch
          %453 = sbr.rel (%p451) target = $region76
        $region75: #{tpu_custom_call.1} parent=59 // pred_region
          %s454 = smul.u32 16, %s22
          %p455 = scmp.lt.s32.totalorder %s454, 31
          %s456 = scalar_select %p455, %s454, 31
          %s457 = smul.addr %s456, 8
          %s458 = scalar_lea.vmem %s4, %s457
          %s459 = smul.u32 16, %s22
        $region76: #{tpu_custom_call.1} parent=59 // pred_fallthru
          _
      $region60: #{tpu_custom_call.1} parent=5 // pred_fallthru
        _
      %p460 = scmp.le.s32.totalorder 1, %s22
      %p461 = scmp.lt.s32.totalorder %s22, 3
      %p462 = pnand %p460, %p461
      %p463 = pneg %p462
      // Predicated region
      $region77: #{tpu_custom_call.1} parent=5 // pred_check
        _
      $region78: #{tpu_custom_call.1} parent=5 // pred_check_branch
        %465 = sbr.rel (%p462) target = $region80
      $region79: #{tpu_custom_call.1} parent=5 // pred_region
        %s466 = ssub.s32 %s22, 1
        %p467 = pneg %p43
        %p468 = pneg %p40
        %p469 = scmp.lt.s32.totalorder %s27, 1
        %s470 = scalar_select %p469, %s27, 1
        %s471 = scalar_lea.vmem %s1, %s470
        %p472 = pneg %p69
        %p473 = pneg %p66
        %s474 = smul.u32 16, %s27
        %p475 = scmp.lt.s32.totalorder %s474, 31
        %s476 = scalar_select %p475, %s474, 31
        %s477 = smul.addr %s476, 8
        %s478 = scalar_lea.vmem %s2, %s477
        %p479 = pneg %p95
        %p480 = pneg %p92
        %p481 = scmp.lt.s32.totalorder %s27, 1
        %s482 = scalar_select %p481, %s27, 1
        %s483 = scalar_lea.vmem %s3, %s482
        %p484 = pneg %p121
        %p485 = pneg %p118
        %s486 = smul.u32 16, %s27
        %p487 = scmp.lt.s32.totalorder %s486, 31
        %s488 = scalar_select %p487, %s486, 31
        %s489 = smul.addr %s488, 8
        %s490 = scalar_lea.vmem %s4, %s489
        %p491 = pneg %p147
        %p492 = pneg %p144
        %p493 = pneg %p168
        %p494 = pneg %p165
        %p495 = pneg %p189
        %p496 = pneg %p186
        %p497 = pneg %p210
        %p498 = pneg %p207
        %p499 = pneg %p231
        %p500 = pneg %p228
        %p501 = pneg %p252
        %p502 = pneg %p249
        %p503 = pneg %p273
        %p504 = pneg %p270
        %p505 = pneg %p294
        %p506 = pneg %p291
        %p507 = pneg %p315
        %p508 = pneg %p312
        %p509 = pneg %p336
        %p510 = pneg %p333
        %p511 = pneg %p357
        %p512 = pneg %p354
        %p513 = pneg %p378
        %p514 = pneg %p375
        %p515 = scmp.lt.s32.totalorder %s27, 1
        %s516 = scalar_select %p515, %s27, 1
        %s517 = scalar_lea.vmem %s1, %s516
        %s518 = smul.u32 16, %s27
        %p519 = scmp.lt.s32.totalorder %s518, 31
        %s520 = scalar_select %p519, %s518, 31
        %s521 = smul.addr %s520, 8
        %s522 = scalar_lea.vmem %s2, %s521
        %s523 = smul.u32 16, %s27
        %p524 = scmp.lt.s32.totalorder %s27, 1
        %s525 = scalar_select %p524, %s27, 1
        %s526 = scalar_lea.vmem %s3, %s525
        %s527 = smul.u32 16, %s27
        %p528 = scmp.lt.s32.totalorder %s527, 31
        %s529 = scalar_select %p528, %s527, 31
        %s530 = smul.addr %s529, 8
        %s531 = scalar_lea.vmem %s4, %s530
        %s532 = smul.u32 16, %s27
        %p533 = scmp.eq.s32.totalorder %s27, 0
        // Predicated region
        $region81: #{tpu_custom_call.1} parent=79 // pred_check
          %p534 = pneg %p533
        $region82: #{tpu_custom_call.1} parent=79 // pred_check_branch
          %536 = sbr.rel (%p534) target = $region84
        $region83: #{tpu_custom_call.1} parent=79 // pred_region
          %v537 = vld [vmem:[%s0] sm:$0x3f]
          %v538 = vld [vmem:[%s0 + $0x8] sm:$0x3f]
          %539 = vst [vmem:[#allocation3] sm:$0x3f] %v537
          %vm540 = vcmask 128000
          %541 = vst.msk [vmem:[#allocation3 + $0x8] sm:$0x3f] %vm540, %v538
        $region84: #{tpu_custom_call.1} parent=79 // pred_fallthru
          _
        %v542 = vld [vmem:[%s522] sm:$0xff]
        %v543 = vld [vmem:[%s522 + $0x8] sm:$0xff]
        %v544 = vld [vmem:[%s522 + $0x10] sm:$0xff]
        %v545 = vld [vmem:[%s522 + $0x18] sm:$0xff]
        %v546 = vld [vmem:[%s522 + $0x20] sm:$0xff]
        %v547 = vld [vmem:[%s522 + $0x28] sm:$0xff]
        %v548 = vld [vmem:[%s522 + $0x30] sm:$0xff]
        %v549 = vld [vmem:[%s522 + $0x38] sm:$0xff]
        %v550 = vld [vmem:[%s522 + $0x40] sm:$0xff]
        %v551 = vld [vmem:[%s522 + $0x48] sm:$0xff]
        %v552 = vld [vmem:[%s522 + $0x50] sm:$0xff]
        %v553 = vld [vmem:[%s522 + $0x58] sm:$0xff]
        %v554 = vld [vmem:[%s522 + $0x60] sm:$0xff]
        %v555 = vld [vmem:[%s522 + $0x68] sm:$0xff]
        %v556 = vld [vmem:[%s522 + $0x70] sm:$0xff]
        %v557 = vld [vmem:[%s522 + $0x78] sm:$0xff]
        %v558 = vld [vmem:[%s5] sm:$0xff]
        %v559 = vld [vmem:[%s6] sm:$0x1]
        %v561 = vlaneseq
        %v562 = vshrl.u32 %v561, 7
        %v563 = vsub.s32 0, %v562
        %v564 = vrot.slane %v559, %v563
        %vm566 = vcmask 64512
        %v568 = vsel %vm566, %v542, 0
        %v571 = vsel %vm566, %v543, 0
        %v574 = vsel %vm566, %v544, 0
        %v577 = vsel %vm566, %v545, 0
        %v580 = vsel %vm566, %v546, 0
        %v583 = vsel %vm566, %v547, 0
        %v586 = vsel %vm566, %v548, 0
        %v589 = vsel %vm566, %v549, 0
        %v592 = vsel %vm566, %v550, 0
        %v595 = vsel %vm566, %v551, 0
        %v598 = vsel %vm566, %v552, 0
        %v601 = vsel %vm566, %v553, 0
        %v604 = vsel %vm566, %v554, 0
        %v607 = vsel %vm566, %v555, 0
        %v610 = vsel %vm566, %v556, 0
        %v613 = vsel %vm566, %v557, 0
        %615 = vmatprep.subr.mxu0 0.0
        %616 = vmatpush1.msra.mxu0 %v558
        %617 = vmatprep.subr.mxu0 0.0
        %618 = vmatpush1.msra.mxu0 0.0
        %619 = vmatprep.subr.mxu0 0.0
        %620 = vmatpush1.msra.mxu0 0.0
        %621 = vmatprep.subr.mxu0 0.0
        %622 = vmatpush1.msra.mxu0 0.0
        %623 = vmatprep.subr.mxu0 0.0
        %624 = vmatpush1.msra.mxu0 0.0
        %625 = vmatprep.subr.mxu0 0.0
        %626 = vmatpush1.msra.mxu0 0.0
        %627 = vmatprep.subr.mxu0 0.0
        %628 = vmatpush1.msra.mxu0 0.0
        %629 = vmatprep.subr.mxu0 0.0
        %630 = vmatpush1.msra.mxu0 0.0
        %631 = vmatprep.subr.mxu0 0.0
        %632 = vmatpush1.msra.mxu0 0.0
        %633 = vmatprep.subr.mxu0 0.0
        %634 = vmatpush1.msra.mxu0 0.0
        %635 = vmatprep.subr.mxu0 0.0
        %636 = vmatpush1.msra.mxu0 0.0
        %637 = vmatprep.subr.mxu0 0.0
        %638 = vmatpush1.msra.mxu0 0.0
        %639 = vmatprep.subr.mxu0 0.0
        %640 = vmatpush1.msra.mxu0 0.0
        %641 = vmatprep.subr.mxu0 0.0
        %642 = vmatpush1.msra.mxu0 0.0
        %643 = vmatprep.subr.mxu0 0.0
        %644 = vmatpush1.msra.mxu0 0.0
        %645 = vmatprep.subr.mxu0 0.0
        %646 = vmatpush1.msra.mxu0 0.0
        %647 = vmatprep.subr.mxu0 0.0
        %648 = vmatpush1.msra.mxu0 0.0
        %649 = vmatprep.subr.mxu0 0.0
        %650 = vmatpush1.msra.mxu0 0.0
        %651 = vmatprep.subr.mxu0 0.0
        %652 = vmatpush1.msra.mxu0 0.0
        %653 = vmatprep.subr.mxu0 0.0
        %654 = vmatpush1.msra.mxu0 0.0
        %655 = vmatprep.subr.mxu0 0.0
        %656 = vmatpush1.msra.mxu0 0.0
        %657 = vmatprep.subr.mxu0 0.0
        %658 = vmatpush1.msra.mxu0 0.0
        %659 = vmatprep.subr.mxu0 0.0
        %660 = vmatpush1.msra.mxu0 0.0
        %661 = vmatprep.subr.mxu0 0.0
        %662 = vmatpush1.msra.mxu0 0.0
        %663 = vmatprep.subr.mxu0 0.0
        %664 = vmatpush1.msra.mxu0 0.0
        %665 = vmatprep.subr.mxu0 0.0
        %666 = vmatpush1.msra.mxu0 0.0
        %667 = vmatprep.subr.mxu0 0.0
        %668 = vmatpush1.msra.mxu0 0.0
        %669 = vmatprep.subr.mxu0 0.0
        %670 = vmatpush1.msra.mxu0 0.0
        %671 = vmatprep.subr.mxu0 0.0
        %672 = vmatpush1.msra.mxu0 0.0
        %673 = vmatprep.subr.mxu0 0.0
        %674 = vmatpush1.msra.mxu0 0.0
        %675 = vmatprep.subr.mxu0 0.0
        %676 = vmatpush1.msra.mxu0 0.0
        %677 = vmatprep.subr.mxu0 0.0
        %678 = vmatpush1.msra.mxu0 0.0
        %679 = vmatprep.mubr.f32.mxu0 0.0
        %680 = vmatmul.mubr.f32.gmra.mrb[0].mxu0 %v568
        %v681 = vpop.f32.mrb[0].mxu0
        %v682 = vadd.f32 %v564, %v681
        %v683 = vpop.f32.mrb[0].mxu0
        %684 = vmatprep.mubr.f32.mxu0 0.0
        %685 = vmatmul.mubr.f32.gmra.mrb[0].mxu0 %v571
        %v686 = vpop.f32.mrb[0].mxu0
        %v687 = vadd.f32 %v564, %v686
        %v688 = vpop.f32.mrb[0].mxu0
        %689 = vmatprep.mubr.f32.mxu0 0.0
        %690 = vmatmul.mubr.f32.gmra.mrb[0].mxu0 %v574
        %v691 = vpop.f32.mrb[0].mxu0
        %v692 = vadd.f32 %v564, %v691
        %v693 = vpop.f32.mrb[0].mxu0
        %694 = vmatprep.mubr.f32.mxu0 0.0
        %695 = vmatmul.mubr.f32.gmra.mrb[0].mxu0 %v577
        %v696 = vpop.f32.mrb[0].mxu0
        %v697 = vadd.f32 %v564, %v696
        %v698 = vpop.f32.mrb[0].mxu0
        %699 = vmatprep.mubr.f32.mxu0 0.0
        %700 = vmatmul.mubr.f32.gmra.mrb[0].mxu0 %v580
        %v701 = vpop.f32.mrb[0].mxu0
        %v702 = vadd.f32 %v564, %v701
        %v703 = vpop.f32.mrb[0].mxu0
        %704 = vmatprep.mubr.f32.mxu0 0.0
        %705 = vmatmul.mubr.f32.gmra.mrb[0].mxu0 %v583
        %v706 = vpop.f32.mrb[0].mxu0
        %v707 = vadd.f32 %v564, %v706
        %v708 = vpop.f32.mrb[0].mxu0
        %709 = vmatprep.mubr.f32.mxu0 0.0
        %710 = vmatmul.mubr.f32.gmra.mrb[0].mxu0 %v586
        %v711 = vpop.f32.mrb[0].mxu0
        %v712 = vadd.f32 %v564, %v711
        %v713 = vpop.f32.mrb[0].mxu0
        %714 = vmatprep.mubr.f32.mxu0 0.0
        %715 = vmatmul.mubr.f32.gmra.mrb[0].mxu0 %v589
        %v716 = vpop.f32.mrb[0].mxu0
        %v717 = vadd.f32 %v564, %v716
        %v718 = vpop.f32.mrb[0].mxu0
        %719 = vmatprep.mubr.f32.mxu0 0.0
        %720 = vmatmul.mubr.f32.gmra.mrb[0].mxu0 %v592
        %v721 = vpop.f32.mrb[0].mxu0
        %v722 = vadd.f32 %v564, %v721
        %v723 = vpop.f32.mrb[0].mxu0
        %724 = vmatprep.mubr.f32.mxu0 0.0
        %725 = vmatmul.mubr.f32.gmra.mrb[0].mxu0 %v595
        %v726 = vpop.f32.mrb[0].mxu0
        %v727 = vadd.f32 %v564, %v726
        %v728 = vpop.f32.mrb[0].mxu0
        %729 = vmatprep.mubr.f32.mxu0 0.0
        %730 = vmatmul.mubr.f32.gmra.mrb[0].mxu0 %v598
        %v731 = vpop.f32.mrb[0].mxu0
        %v732 = vadd.f32 %v564, %v731
        %v733 = vpop.f32.mrb[0].mxu0
        %734 = vmatprep.mubr.f32.mxu0 0.0
        %735 = vmatmul.mubr.f32.gmra.mrb[0].mxu0 %v601
        %v736 = vpop.f32.mrb[0].mxu0
        %v737 = vadd.f32 %v564, %v736
        %v738 = vpop.f32.mrb[0].mxu0
        %739 = vmatprep.mubr.f32.mxu0 0.0
        %740 = vmatmul.mubr.f32.gmra.mrb[0].mxu0 %v604
        %v741 = vpop.f32.mrb[0].mxu0
        %v742 = vadd.f32 %v564, %v741
        %v743 = vpop.f32.mrb[0].mxu0
        %744 = vmatprep.mubr.f32.mxu0 0.0
        %745 = vmatmul.mubr.f32.gmra.mrb[0].mxu0 %v607
        %v746 = vpop.f32.mrb[0].mxu0
        %v747 = vadd.f32 %v564, %v746
        %v748 = vpop.f32.mrb[0].mxu0
        %749 = vmatprep.mubr.f32.mxu0 0.0
        %750 = vmatmul.mubr.f32.gmra.mrb[0].mxu0 %v610
        %v751 = vpop.f32.mrb[0].mxu0
        %v752 = vadd.f32 %v564, %v751
        %v753 = vpop.f32.mrb[0].mxu0
        %754 = vmatprep.mubr.f32.mxu0 0.0
        %755 = vmatmul.mubr.f32.gmra.mrb[0].mxu0 %v613
        %v756 = vpop.f32.mrb[0].mxu0
        %v757 = vadd.f32 %v564, %v756
        %v758 = vpop.f32.mrb[0].mxu0
        %759 = vdwg.mxu0
        %v760 = vld [vmem:[%s7] sm:$0x1]
        %v761 = vld [vmem:[%s8] sm:$0x1]
        %vm762 = vcmask 261120
        %v763 = vsel %vm762, %v682, 0.0
        %764 = vadd.xlane.f32.xlu0 %v763
        %v765 = vpop.xlane.xlu0 %764
        %v766 = vsel %vm762, %v687, 0.0
        %767 = vadd.xlane.f32.xlu0 %v766
        %v768 = vpop.xlane.xlu0 %767
        %v769 = vsel %vm762, %v692, 0.0
        %770 = vadd.xlane.f32.xlu0 %v769
        %v771 = vpop.xlane.xlu0 %770
        %v772 = vsel %vm762, %v697, 0.0
        %773 = vadd.xlane.f32.xlu0 %v772
        %v774 = vpop.xlane.xlu0 %773
        %v775 = vsel %vm762, %v702, 0.0
        %776 = vadd.xlane.f32.xlu0 %v775
        %v777 = vpop.xlane.xlu0 %776
        %v778 = vsel %vm762, %v707, 0.0
        %779 = vadd.xlane.f32.xlu0 %v778
        %v780 = vpop.xlane.xlu0 %779
        %v781 = vsel %vm762, %v712, 0.0
        %782 = vadd.xlane.f32.xlu0 %v781
        %v783 = vpop.xlane.xlu0 %782
        %v784 = vsel %vm762, %v717, 0.0
        %785 = vadd.xlane.f32.xlu0 %v784
        %v786 = vpop.xlane.xlu0 %785
        %v787 = vsel %vm762, %v722, 0.0
        %788 = vadd.xlane.f32.xlu0 %v787
        %v789 = vpop.xlane.xlu0 %788
        %v790 = vsel %vm762, %v727, 0.0
        %791 = vadd.xlane.f32.xlu0 %v790
        %v792 = vpop.xlane.xlu0 %791
        %v793 = vsel %vm762, %v732, 0.0
        %794 = vadd.xlane.f32.xlu0 %v793
        %v795 = vpop.xlane.xlu0 %794
        %v796 = vsel %vm762, %v737, 0.0
        %797 = vadd.xlane.f32.xlu0 %v796
        %v798 = vpop.xlane.xlu0 %797
        %v799 = vsel %vm762, %v742, 0.0
        %800 = vadd.xlane.f32.xlu0 %v799
        %v801 = vpop.xlane.xlu0 %800
        %v802 = vsel %vm762, %v747, 0.0
        %803 = vadd.xlane.f32.xlu0 %v802
        %v804 = vpop.xlane.xlu0 %803
        %v805 = vsel %vm762, %v752, 0.0
        %806 = vadd.xlane.f32.xlu0 %v805
        %v807 = vpop.xlane.xlu0 %806
        %v808 = vsel %vm762, %v757, 0.0
        %809 = vadd.xlane.f32.xlu0 %v808
        %v810 = vpop.xlane.xlu0 %809
        %v811 = vrcp.pop 32.0
        %v812 = vmul.f32 %v765, %v811
        %v813 = vmul.f32 %v768, %v811
        %v814 = vmul.f32 %v771, %v811
        %v815 = vmul.f32 %v774, %v811
        %v816 = vmul.f32 %v777, %v811
        %v817 = vmul.f32 %v780, %v811
        %v818 = vmul.f32 %v783, %v811
        %v819 = vmul.f32 %v786, %v811
        %v820 = vmul.f32 %v789, %v811
        %v821 = vmul.f32 %v792, %v811
        %v822 = vmul.f32 %v795, %v811
        %v823 = vmul.f32 %v798, %v811
        %v824 = vmul.f32 %v801, %v811
        %v825 = vmul.f32 %v804, %v811
        %v826 = vmul.f32 %v807, %v811
        %v827 = vmul.f32 %v810, %v811
        %v828 = vsub.f32 %v682, %v812
        %v829 = vsub.f32 %v687, %v813
        %v830 = vsub.f32 %v692, %v814
        %v831 = vsub.f32 %v697, %v815
        %v832 = vsub.f32 %v702, %v816
        %v833 = vsub.f32 %v707, %v817
        %v834 = vsub.f32 %v712, %v818
        %v835 = vsub.f32 %v717, %v819
        %v836 = vsub.f32 %v722, %v820
        %v837 = vsub.f32 %v727, %v821
        %v838 = vsub.f32 %v732, %v822
        %v839 = vsub.f32 %v737, %v823
        %v840 = vsub.f32 %v742, %v824
        %v841 = vsub.f32 %v747, %v825
        %v842 = vsub.f32 %v752, %v826
        %v843 = vsub.f32 %v757, %v827
        %v844 = vmul.f32 %v828, %v828
        %v845 = vmul.f32 %v829, %v829
        %v846 = vmul.f32 %v830, %v830
        %v847 = vmul.f32 %v831, %v831
        %v848 = vmul.f32 %v832, %v832
        %v849 = vmul.f32 %v833, %v833
        %v850 = vmul.f32 %v834, %v834
        %v851 = vmul.f32 %v835, %v835
        %v852 = vmul.f32 %v836, %v836
        %v853 = vmul.f32 %v837, %v837
        %v854 = vmul.f32 %v838, %v838
        %v855 = vmul.f32 %v839, %v839
        %v856 = vmul.f32 %v840, %v840
        %v857 = vmul.f32 %v841, %v841
        %v858 = vmul.f32 %v842, %v842
        %v859 = vmul.f32 %v843, %v843
        %v860 = vsel %vm762, %v844, 0.0
        %861 = vadd.xlane.f32.xlu0 %v860
        %v862 = vpop.xlane.xlu0 %861
        %v863 = vsel %vm762, %v845, 0.0
        %864 = vadd.xlane.f32.xlu0 %v863
        %v865 = vpop.xlane.xlu0 %864
        %v866 = vsel %vm762, %v846, 0.0
        %867 = vadd.xlane.f32.xlu0 %v866
        %v868 = vpop.xlane.xlu0 %867
        %v869 = vsel %vm762, %v847, 0.0
        %870 = vadd.xlane.f32.xlu0 %v869
        %v871 = vpop.xlane.xlu0 %870
        %v872 = vsel %vm762, %v848, 0.0
        %873 = vadd.xlane.f32.xlu0 %v872
        %v874 = vpop.xlane.xlu0 %873
        %v875 = vsel %vm762, %v849, 0.0
        %876 = vadd.xlane.f32.xlu0 %v875
        %v877 = vpop.xlane.xlu0 %876
        %v878 = vsel %vm762, %v850, 0.0
        %879 = vadd.xlane.f32.xlu0 %v878
        %v880 = vpop.xlane.xlu0 %879
        %v881 = vsel %vm762, %v851, 0.0
        %882 = vadd.xlane.f32.xlu0 %v881
        %v883 = vpop.xlane.xlu0 %882
        %v884 = vsel %vm762, %v852, 0.0
        %885 = vadd.xlane.f32.xlu0 %v884
        %v886 = vpop.xlane.xlu0 %885
        %v887 = vsel %vm762, %v853, 0.0
        %888 = vadd.xlane.f32.xlu0 %v887
        %v889 = vpop.xlane.xlu0 %888
        %v890 = vsel %vm762, %v854, 0.0
        %891 = vadd.xlane.f32.xlu0 %v890
        %v892 = vpop.xlane.xlu0 %891
        %v893 = vsel %vm762, %v855, 0.0
        %894 = vadd.xlane.f32.xlu0 %v893
        %v895 = vpop.xlane.xlu0 %894
        %v896 = vsel %vm762, %v856, 0.0
        %897 = vadd.xlane.f32.xlu0 %v896
        %v898 = vpop.xlane.xlu0 %897
        %v899 = vsel %vm762, %v857, 0.0
        %900 = vadd.xlane.f32.xlu0 %v899
        %v901 = vpop.xlane.xlu0 %900
        %v902 = vsel %vm762, %v858, 0.0
        %903 = vadd.xlane.f32.xlu0 %v902
        %v904 = vpop.xlane.xlu0 %903
        %v905 = vsel %vm762, %v859, 0.0
        %906 = vadd.xlane.f32.xlu0 %v905
        %v907 = vpop.xlane.xlu0 %906
        %v908 = vmul.f32 %v862, %v811
        %v909 = vmul.f32 %v865, %v811
        %v910 = vmul.f32 %v868, %v811
        %v911 = vmul.f32 %v871, %v811
        %v912 = vmul.f32 %v874, %v811
        %v913 = vmul.f32 %v877, %v811
        %v914 = vmul.f32 %v880, %v811
        %v915 = vmul.f32 %v883, %v811
        %v916 = vmul.f32 %v886, %v811
        %v917 = vmul.f32 %v889, %v811
        %v918 = vmul.f32 %v892, %v811
        %v919 = vmul.f32 %v895, %v811
        %v920 = vmul.f32 %v898, %v811
        %v921 = vmul.f32 %v901, %v811
        %v922 = vmul.f32 %v904, %v811
        %v923 = vmul.f32 %v907, %v811
        %v924 = vadd.f32 %v908, 1e-05
        %v925 = vadd.f32 %v909, 1e-05
        %v926 = vadd.f32 %v910, 1e-05
        %v927 = vadd.f32 %v911, 1e-05
        %v928 = vadd.f32 %v912, 1e-05
        %v929 = vadd.f32 %v913, 1e-05
        %v930 = vadd.f32 %v914, 1e-05
        %v931 = vadd.f32 %v915, 1e-05
        %v932 = vadd.f32 %v916, 1e-05
        %v933 = vadd.f32 %v917, 1e-05
        %v934 = vadd.f32 %v918, 1e-05
        %v935 = vadd.f32 %v919, 1e-05
        %v936 = vadd.f32 %v920, 1e-05
        %v937 = vadd.f32 %v921, 1e-05
        %v938 = vadd.f32 %v922, 1e-05
        %v939 = vadd.f32 %v923, 1e-05
        %v940 = vrsqrt.pop %v924
        %v941 = vrsqrt.pop %v925
        %v942 = vrsqrt.pop %v926
        %v943 = vrsqrt.pop %v927
        %v944 = vrsqrt.pop %v928
        %v945 = vrsqrt.pop %v929
        %v946 = vrsqrt.pop %v930
        %v947 = vrsqrt.pop %v931
        %v948 = vrsqrt.pop %v932
        %v949 = vrsqrt.pop %v933
        %v950 = vrsqrt.pop %v934
        %v951 = vrsqrt.pop %v935
        %v952 = vrsqrt.pop %v936
        %v953 = vrsqrt.pop %v937
        %v954 = vrsqrt.pop %v938
        %v955 = vrsqrt.pop %v939
        %v956 = vmul.f32 %v828, %v940
        %v957 = vmul.f32 %v829, %v941
        %v958 = vmul.f32 %v830, %v942
        %v959 = vmul.f32 %v831, %v943
        %v960 = vmul.f32 %v832, %v944
        %v961 = vmul.f32 %v833, %v945
        %v962 = vmul.f32 %v834, %v946
        %v963 = vmul.f32 %v835, %v947
        %v964 = vmul.f32 %v836, %v948
        %v965 = vmul.f32 %v837, %v949
        %v966 = vmul.f32 %v838, %v950
        %v967 = vmul.f32 %v839, %v951
        %v968 = vmul.f32 %v840, %v952
        %v969 = vmul.f32 %v841, %v953
        %v970 = vmul.f32 %v842, %v954
        %v971 = vmul.f32 %v843, %v955
        %v973 = vlaneseq
        %v974 = vshrl.u32 %v973, 7
        %v975 = vsub.s32 0, %v974
        %v976 = vrot.slane %v760, %v975
        %v978 = vmul.f32 %v956, %v976
        %v979 = vmul.f32 %v957, %v976
        %v980 = vmul.f32 %v958, %v976
        %v981 = vmul.f32 %v959, %v976
        %v982 = vmul.f32 %v960, %v976
        %v983 = vmul.f32 %v961, %v976
        %v984 = vmul.f32 %v962, %v976
        %v985 = vmul.f32 %v963, %v976
        %v986 = vmul.f32 %v964, %v976
        %v987 = vmul.f32 %v965, %v976
        %v988 = vmul.f32 %v966, %v976
        %v989 = vmul.f32 %v967, %v976
        %v990 = vmul.f32 %v968, %v976
        %v991 = vmul.f32 %v969, %v976
        %v992 = vmul.f32 %v970, %v976
        %v993 = vmul.f32 %v971, %v976
        %v995 = vlaneseq
        %v996 = vshrl.u32 %v995, 7
        %v997 = vsub.s32 0, %v996
        %v998 = vrot.slane %v761, %v997
        %v1000 = vadd.f32 %v978, %v998
        %v1001 = vadd.f32 %v979, %v998
        %v1002 = vadd.f32 %v980, %v998
        %v1003 = vadd.f32 %v981, %v998
        %v1004 = vadd.f32 %v982, %v998
        %v1005 = vadd.f32 %v983, %v998
        %v1006 = vadd.f32 %v984, %v998
        %v1007 = vadd.f32 %v985, %v998
        %v1008 = vadd.f32 %v986, %v998
        %v1009 = vadd.f32 %v987, %v998
        %v1010 = vadd.f32 %v988, %v998
        %v1011 = vadd.f32 %v989, %v998
        %v1012 = vadd.f32 %v990, %v998
        %v1013 = vadd.f32 %v991, %v998
        %v1014 = vadd.f32 %v992, %v998
        %v1015 = vadd.f32 %v993, %v998
        %v1016 = vxor.u32 %v1000, 2147483648
        %v1017 = vxor.u32 %v1001, 2147483648
        %v1018 = vxor.u32 %v1002, 2147483648
        %v1019 = vxor.u32 %v1003, 2147483648
        %v1020 = vxor.u32 %v1004, 2147483648
        %v1021 = vxor.u32 %v1005, 2147483648
        %v1022 = vxor.u32 %v1006, 2147483648
        %v1023 = vxor.u32 %v1007, 2147483648
        %v1024 = vxor.u32 %v1008, 2147483648
        %v1025 = vxor.u32 %v1009, 2147483648
        %v1026 = vxor.u32 %v1010, 2147483648
        %v1027 = vxor.u32 %v1011, 2147483648
        %v1028 = vxor.u32 %v1012, 2147483648
        %v1029 = vxor.u32 %v1013, 2147483648
        %v1030 = vxor.u32 %v1014, 2147483648
        %v1031 = vxor.u32 %v1015, 2147483648
        %v1032 = vmul.f32 %v1016, 1.442695
        %v1033 = vpow.pop %v1032
        %v1034 = vmul.f32 %v1017, 1.442695
        %v1035 = vpow.pop %v1034
        %v1036 = vmul.f32 %v1018, 1.442695
        %v1037 = vpow.pop %v1036
        %v1038 = vmul.f32 %v1019, 1.442695
        %v1039 = vpow.pop %v1038
        %v1040 = vmul.f32 %v1020, 1.442695
        %v1041 = vpow.pop %v1040
        %v1042 = vmul.f32 %v1021, 1.442695
        %v1043 = vpow.pop %v1042
        %v1044 = vmul.f32 %v1022, 1.442695
        %v1045 = vpow.pop %v1044
        %v1046 = vmul.f32 %v1023, 1.442695
        %v1047 = vpow.pop %v1046
        %v1048 = vmul.f32 %v1024, 1.442695
        %v1049 = vpow.pop %v1048
        %v1050 = vmul.f32 %v1025, 1.442695
        %v1051 = vpow.pop %v1050
        %v1052 = vmul.f32 %v1026, 1.442695
        %v1053 = vpow.pop %v1052
        %v1054 = vmul.f32 %v1027, 1.442695
        %v1055 = vpow.pop %v1054
        %v1056 = vmul.f32 %v1028, 1.442695
        %v1057 = vpow.pop %v1056
        %v1058 = vmul.f32 %v1029, 1.442695
        %v1059 = vpow.pop %v1058
        %v1060 = vmul.f32 %v1030, 1.442695
        %v1061 = vpow.pop %v1060
        %v1062 = vmul.f32 %v1031, 1.442695
        %v1063 = vpow.pop %v1062
        %v1064 = vadd.f32 %v1033, 1.0
        %v1065 = vadd.f32 %v1035, 1.0
        %v1066 = vadd.f32 %v1037, 1.0
        %v1067 = vadd.f32 %v1039, 1.0
        %v1068 = vadd.f32 %v1041, 1.0
        %v1069 = vadd.f32 %v1043, 1.0
        %v1070 = vadd.f32 %v1045, 1.0
        %v1071 = vadd.f32 %v1047, 1.0
        %v1072 = vadd.f32 %v1049, 1.0
        %v1073 = vadd.f32 %v1051, 1.0
        %v1074 = vadd.f32 %v1053, 1.0
        %v1075 = vadd.f32 %v1055, 1.0
        %v1076 = vadd.f32 %v1057, 1.0
        %v1077 = vadd.f32 %v1059, 1.0
        %v1078 = vadd.f32 %v1061, 1.0
        %v1079 = vadd.f32 %v1063, 1.0
        %v1080 = vrcp.pop %v1064
        %v1081 = vmul.f32 1.0, %v1080
        %v1082 = vrcp.pop %v1065
        %v1083 = vmul.f32 1.0, %v1082
        %v1084 = vrcp.pop %v1066
        %v1085 = vmul.f32 1.0, %v1084
        %v1086 = vrcp.pop %v1067
        %v1087 = vmul.f32 1.0, %v1086
        %v1088 = vrcp.pop %v1068
        %v1089 = vmul.f32 1.0, %v1088
        %v1090 = vrcp.pop %v1069
        %v1091 = vmul.f32 1.0, %v1090
        %v1092 = vrcp.pop %v1070
        %v1093 = vmul.f32 1.0, %v1092
        %v1094 = vrcp.pop %v1071
        %v1095 = vmul.f32 1.0, %v1094
        %v1096 = vrcp.pop %v1072
        %v1097 = vmul.f32 1.0, %v1096
        %v1098 = vrcp.pop %v1073
        %v1099 = vmul.f32 1.0, %v1098
        %v1100 = vrcp.pop %v1074
        %v1101 = vmul.f32 1.0, %v1100
        %v1102 = vrcp.pop %v1075
        %v1103 = vmul.f32 1.0, %v1102
        %v1104 = vrcp.pop %v1076
        %v1105 = vmul.f32 1.0, %v1104
        %v1106 = vrcp.pop %v1077
        %v1107 = vmul.f32 1.0, %v1106
        %v1108 = vrcp.pop %v1078
        %v1109 = vmul.f32 1.0, %v1108
        %v1110 = vrcp.pop %v1079
        %v1111 = vmul.f32 1.0, %v1110
        %v1112 = vmul.f32 %v1000, %v1081
        %v1113 = vmul.f32 %v1001, %v1083
        %v1114 = vmul.f32 %v1002, %v1085
        %v1115 = vmul.f32 %v1003, %v1087
        %v1116 = vmul.f32 %v1004, %v1089
        %v1117 = vmul.f32 %v1005, %v1091
        %v1118 = vmul.f32 %v1006, %v1093
        %v1119 = vmul.f32 %v1007, %v1095
        %v1120 = vmul.f32 %v1008, %v1097
        %v1121 = vmul.f32 %v1009, %v1099
        %v1122 = vmul.f32 %v1010, %v1101
        %v1123 = vmul.f32 %v1011, %v1103
        %v1124 = vmul.f32 %v1012, %v1105
        %v1125 = vmul.f32 %v1013, %v1107
        %v1126 = vmul.f32 %v1014, %v1109
        %v1127 = vmul.f32 %v1015, %v1111
        %v1128 = vld [vmem:[%s9] sm:$0xff]
        %v1129 = vld [vmem:[%s9 + $0x8] sm:$0xff]
        %v1130 = vld [vmem:[%s9 + $0x10] sm:$0xff]
        %v1131 = vld [vmem:[%s9 + $0x18] sm:$0xff]
        %v1132 = vld [vmem:[%s10] sm:$0x1]
        %v1134 = vlaneseq
        %v1135 = vshrl.u32 %v1134, 7
        %v1136 = vsub.s32 0, %v1135
        %v1137 = vrot.slane %v1132, %v1136
        %v1140 = vsel %vm762, %v1112, 0
        %v1143 = vsel %vm762, %v1113, 0
        %v1146 = vsel %vm762, %v1114, 0
        %v1149 = vsel %vm762, %v1115, 0
        %v1152 = vsel %vm762, %v1116, 0
        %v1155 = vsel %vm762, %v1117, 0
        %v1158 = vsel %vm762, %v1118, 0
        %v1161 = vsel %vm762, %v1119, 0
        %v1164 = vsel %vm762, %v1120, 0
        %v1167 = vsel %vm762, %v1121, 0
        %v1170 = vsel %vm762, %v1122, 0
        %v1173 = vsel %vm762, %v1123, 0
        %v1176 = vsel %vm762, %v1124, 0
        %v1179 = vsel %vm762, %v1125, 0
        %v1182 = vsel %vm762, %v1126, 0
        %v1185 = vsel %vm762, %v1127, 0
        %1187 = vmatprep.subr.mxu0 0.0
        %1188 = vmatpush1.msra.mxu0 %v1128
        %1189 = vmatprep.subr.mxu0 0.0
        %1190 = vmatpush1.msra.mxu0 %v1129
        %1191 = vmatprep.subr.mxu0 0.0
        %1192 = vmatpush1.msra.mxu0 %v1130
        %1193 = vmatprep.subr.mxu0 0.0
        %1194 = vmatpush1.msra.mxu0 %v1131
        %1195 = vmatprep.subr.mxu0 0.0
        %1196 = vmatpush1.msra.mxu0 0.0
        %1197 = vmatprep.subr.mxu0 0.0
        %1198 = vmatpush1.msra.mxu0 0.0
        %1199 = vmatprep.subr.mxu0 0.0
        %1200 = vmatpush1.msra.mxu0 0.0
        %1201 = vmatprep.subr.mxu0 0.0
        %1202 = vmatpush1.msra.mxu0 0.0
        %1203 = vmatprep.subr.mxu0 0.0
        %1204 = vmatpush1.msra.mxu0 0.0
        %1205 = vmatprep.subr.mxu0 0.0
        %1206 = vmatpush1.msra.mxu0 0.0
        %1207 = vmatprep.subr.mxu0 0.0
        %1208 = vmatpush1.msra.mxu0 0.0
        %1209 = vmatprep.subr.mxu0 0.0
        %1210 = vmatpush1.msra.mxu0 0.0
        %1211 = vmatprep.subr.mxu0 0.0
        %1212 = vmatpush1.msra.mxu0 0.0
        %1213 = vmatprep.subr.mxu0 0.0
        %1214 = vmatpush1.msra.mxu0 0.0
        %1215 = vmatprep.subr.mxu0 0.0
        %1216 = vmatpush1.msra.mxu0 0.0
        %1217 = vmatprep.subr.mxu0 0.0
        %1218 = vmatpush1.msra.mxu0 0.0
        %1219 = vmatprep.subr.mxu0 0.0
        %1220 = vmatpush1.msra.mxu0 0.0
        %1221 = vmatprep.subr.mxu0 0.0
        %1222 = vmatpush1.msra.mxu0 0.0
        %1223 = vmatprep.subr.mxu0 0.0
        %1224 = vmatpush1.msra.mxu0 0.0
        %1225 = vmatprep.subr.mxu0 0.0
        %1226 = vmatpush1.msra.mxu0 0.0
        %1227 = vmatprep.subr.mxu0 0.0
        %1228 = vmatpush1.msra.mxu0 0.0
        %1229 = vmatprep.subr.mxu0 0.0
        %1230 = vmatpush1.msra.mxu0 0.0
        %1231 = vmatprep.subr.mxu0 0.0
        %1232 = vmatpush1.msra.mxu0 0.0
        %1233 = vmatprep.subr.mxu0 0.0
        %1234 = vmatpush1.msra.mxu0 0.0
        %1235 = vmatprep.subr.mxu0 0.0
        %1236 = vmatpush1.msra.mxu0 0.0
        %1237 = vmatprep.subr.mxu0 0.0
        %1238 = vmatpush1.msra.mxu0 0.0
        %1239 = vmatprep.subr.mxu0 0.0
        %1240 = vmatpush1.msra.mxu0 0.0
        %1241 = vmatprep.subr.mxu0 0.0
        %1242 = vmatpush1.msra.mxu0 0.0
        %1243 = vmatprep.subr.mxu0 0.0
        %1244 = vmatpush1.msra.mxu0 0.0
        %1245 = vmatprep.subr.mxu0 0.0
        %1246 = vmatpush1.msra.mxu0 0.0
        %1247 = vmatprep.subr.mxu0 0.0
        %1248 = vmatpush1.msra.mxu0 0.0
        %1249 = vmatprep.subr.mxu0 0.0
        %1250 = vmatpush1.msra.mxu0 0.0
        %1251 = vmatprep.mubr.f32.mxu0 0.0
        %1252 = vmatmul.mubr.f32.gmra.mrb[0].mxu0 %v1140
        %v1253 = vpop.f32.mrb[0].mxu0
        %v1254 = vadd.f32 %v1137, %v1253
        %v1255 = vpop.f32.mrb[0].mxu0
        %1256 = vmatprep.mubr.f32.mxu0 0.0
        %1257 = vmatmul.mubr.f32.gmra.mrb[0].mxu0 %v1143
        %v1258 = vpop.f32.mrb[0].mxu0
        %v1259 = vadd.f32 %v1137, %v1258
        %v1260 = vpop.f32.mrb[0].mxu0
        %1261 = vmatprep.mubr.f32.mxu0 0.0
        %1262 = vmatmul.mubr.f32.gmra.mrb[0].mxu0 %v1146
        %v1263 = vpop.f32.mrb[0].mxu0
        %v1264 = vadd.f32 %v1137, %v1263
        %v1265 = vpop.f32.mrb[0].mxu0
        %1266 = vmatprep.mubr.f32.mxu0 0.0
        %1267 = vmatmul.mubr.f32.gmra.mrb[0].mxu0 %v1149
        %v1268 = vpop.f32.mrb[0].mxu0
        %v1269 = vadd.f32 %v1137, %v1268
        %v1270 = vpop.f32.mrb[0].mxu0
        %1271 = vmatprep.mubr.f32.mxu0 0.0
        %1272 = vmatmul.mubr.f32.gmra.mrb[0].mxu0 %v1152
        %v1273 = vpop.f32.mrb[0].mxu0
        %v1274 = vadd.f32 %v1137, %v1273
        %v1275 = vpop.f32.mrb[0].mxu0
        %1276 = vmatprep.mubr.f32.mxu0 0.0
        %1277 = vmatmul.mubr.f32.gmra.mrb[0].mxu0 %v1155
        %v1278 = vpop.f32.mrb[0].mxu0
        %v1279 = vadd.f32 %v1137, %v1278
        %v1280 = vpop.f32.mrb[0].mxu0
        %1281 = vmatprep.mubr.f32.mxu0 0.0
        %1282 = vmatmul.mubr.f32.gmra.mrb[0].mxu0 %v1158
        %v1283 = vpop.f32.mrb[0].mxu0
        %v1284 = vadd.f32 %v1137, %v1283
        %v1285 = vpop.f32.mrb[0].mxu0
        %1286 = vmatprep.mubr.f32.mxu0 0.0
        %1287 = vmatmul.mubr.f32.gmra.mrb[0].mxu0 %v1161
        %v1288 = vpop.f32.mrb[0].mxu0
        %v1289 = vadd.f32 %v1137, %v1288
        %v1290 = vpop.f32.mrb[0].mxu0
        %1291 = vmatprep.mubr.f32.mxu0 0.0
        %1292 = vmatmul.mubr.f32.gmra.mrb[0].mxu0 %v1164
        %v1293 = vpop.f32.mrb[0].mxu0
        %v1294 = vadd.f32 %v1137, %v1293
        %v1295 = vpop.f32.mrb[0].mxu0
        %1296 = vmatprep.mubr.f32.mxu0 0.0
        %1297 = vmatmul.mubr.f32.gmra.mrb[0].mxu0 %v1167
        %v1298 = vpop.f32.mrb[0].mxu0
        %v1299 = vadd.f32 %v1137, %v1298
        %v1300 = vpop.f32.mrb[0].mxu0
        %1301 = vmatprep.mubr.f32.mxu0 0.0
        %1302 = vmatmul.mubr.f32.gmra.mrb[0].mxu0 %v1170
        %v1303 = vpop.f32.mrb[0].mxu0
        %v1304 = vadd.f32 %v1137, %v1303
        %v1305 = vpop.f32.mrb[0].mxu0
        %1306 = vmatprep.mubr.f32.mxu0 0.0
        %1307 = vmatmul.mubr.f32.gmra.mrb[0].mxu0 %v1173
        %v1308 = vpop.f32.mrb[0].mxu0
        %v1309 = vadd.f32 %v1137, %v1308
        %v1310 = vpop.f32.mrb[0].mxu0
        %1311 = vmatprep.mubr.f32.mxu0 0.0
        %1312 = vmatmul.mubr.f32.gmra.mrb[0].mxu0 %v1176
        %v1313 = vpop.f32.mrb[0].mxu0
        %v1314 = vadd.f32 %v1137, %v1313
        %v1315 = vpop.f32.mrb[0].mxu0
        %1316 = vmatprep.mubr.f32.mxu0 0.0
        %1317 = vmatmul.mubr.f32.gmra.mrb[0].mxu0 %v1179
        %v1318 = vpop.f32.mrb[0].mxu0
        %v1319 = vadd.f32 %v1137, %v1318
        %v1320 = vpop.f32.mrb[0].mxu0
        %1321 = vmatprep.mubr.f32.mxu0 0.0
        %1322 = vmatmul.mubr.f32.gmra.mrb[0].mxu0 %v1182
        %v1323 = vpop.f32.mrb[0].mxu0
        %v1324 = vadd.f32 %v1137, %v1323
        %v1325 = vpop.f32.mrb[0].mxu0
        %1326 = vmatprep.mubr.f32.mxu0 0.0
        %1327 = vmatmul.mubr.f32.gmra.mrb[0].mxu0 %v1185
        %v1328 = vpop.f32.mrb[0].mxu0
        %v1329 = vadd.f32 %v1137, %v1328
        %v1330 = vpop.f32.mrb[0].mxu0
        %1331 = vdwg.mxu0
        %v1332 = vld [vmem:[%s11] sm:$0x1]
        %v1333 = vld [vmem:[%s12] sm:$0x1]
        %v1334 = vsel %vm762, %v1254, 0.0
        %1335 = vadd.xlane.f32.xlu0 %v1334
        %v1336 = vpop.xlane.xlu0 %1335
        %v1337 = vsel %vm762, %v1259, 0.0
        %1338 = vadd.xlane.f32.xlu0 %v1337
        %v1339 = vpop.xlane.xlu0 %1338
        %v1340 = vsel %vm762, %v1264, 0.0
        %1341 = vadd.xlane.f32.xlu0 %v1340
        %v1342 = vpop.xlane.xlu0 %1341
        %v1343 = vsel %vm762, %v1269, 0.0
        %1344 = vadd.xlane.f32.xlu0 %v1343
        %v1345 = vpop.xlane.xlu0 %1344
        %v1346 = vsel %vm762, %v1274, 0.0
        %1347 = vadd.xlane.f32.xlu0 %v1346
        %v1348 = vpop.xlane.xlu0 %1347
        %v1349 = vsel %vm762, %v1279, 0.0
        %1350 = vadd.xlane.f32.xlu0 %v1349
        %v1351 = vpop.xlane.xlu0 %1350
        %v1352 = vsel %vm762, %v1284, 0.0
        %1353 = vadd.xlane.f32.xlu0 %v1352
        %v1354 = vpop.xlane.xlu0 %1353
        %v1355 = vsel %vm762, %v1289, 0.0
        %1356 = vadd.xlane.f32.xlu0 %v1355
        %v1357 = vpop.xlane.xlu0 %1356
        %v1358 = vsel %vm762, %v1294, 0.0
        %1359 = vadd.xlane.f32.xlu0 %v1358
        %v1360 = vpop.xlane.xlu0 %1359
        %v1361 = vsel %vm762, %v1299, 0.0
        %1362 = vadd.xlane.f32.xlu0 %v1361
        %v1363 = vpop.xlane.xlu0 %1362
        %v1364 = vsel %vm762, %v1304, 0.0
        %1365 = vadd.xlane.f32.xlu0 %v1364
        %v1366 = vpop.xlane.xlu0 %1365
        %v1367 = vsel %vm762, %v1309, 0.0
        %1368 = vadd.xlane.f32.xlu0 %v1367
        %v1369 = vpop.xlane.xlu0 %1368
        %v1370 = vsel %vm762, %v1314, 0.0
        %1371 = vadd.xlane.f32.xlu0 %v1370
        %v1372 = vpop.xlane.xlu0 %1371
        %v1373 = vsel %vm762, %v1319, 0.0
        %1374 = vadd.xlane.f32.xlu0 %v1373
        %v1375 = vpop.xlane.xlu0 %1374
        %v1376 = vsel %vm762, %v1324, 0.0
        %1377 = vadd.xlane.f32.xlu0 %v1376
        %v1378 = vpop.xlane.xlu0 %1377
        %v1379 = vsel %vm762, %v1329, 0.0
        %1380 = vadd.xlane.f32.xlu0 %v1379
        %v1381 = vpop.xlane.xlu0 %1380
        %v1382 = vmul.f32 %v1336, %v811
        %v1383 = vmul.f32 %v1339, %v811
        %v1384 = vmul.f32 %v1342, %v811
        %v1385 = vmul.f32 %v1345, %v811
        %v1386 = vmul.f32 %v1348, %v811
        %v1387 = vmul.f32 %v1351, %v811
        %v1388 = vmul.f32 %v1354, %v811
        %v1389 = vmul.f32 %v1357, %v811
        %v1390 = vmul.f32 %v1360, %v811
        %v1391 = vmul.f32 %v1363, %v811
        %v1392 = vmul.f32 %v1366, %v811
        %v1393 = vmul.f32 %v1369, %v811
        %v1394 = vmul.f32 %v1372, %v811
        %v1395 = vmul.f32 %v1375, %v811
        %v1396 = vmul.f32 %v1378, %v811
        %v1397 = vmul.f32 %v1381, %v811
        %v1398 = vsub.f32 %v1254, %v1382
        %v1399 = vsub.f32 %v1259, %v1383
        %v1400 = vsub.f32 %v1264, %v1384
        %v1401 = vsub.f32 %v1269, %v1385
        %v1402 = vsub.f32 %v1274, %v1386
        %v1403 = vsub.f32 %v1279, %v1387
        %v1404 = vsub.f32 %v1284, %v1388
        %v1405 = vsub.f32 %v1289, %v1389
        %v1406 = vsub.f32 %v1294, %v1390
        %v1407 = vsub.f32 %v1299, %v1391
        %v1408 = vsub.f32 %v1304, %v1392
        %v1409 = vsub.f32 %v1309, %v1393
        %v1410 = vsub.f32 %v1314, %v1394
        %v1411 = vsub.f32 %v1319, %v1395
        %v1412 = vsub.f32 %v1324, %v1396
        %v1413 = vsub.f32 %v1329, %v1397
        %v1414 = vmul.f32 %v1398, %v1398
        %v1415 = vmul.f32 %v1399, %v1399
        %v1416 = vmul.f32 %v1400, %v1400
        %v1417 = vmul.f32 %v1401, %v1401
        %v1418 = vmul.f32 %v1402, %v1402
        %v1419 = vmul.f32 %v1403, %v1403
        %v1420 = vmul.f32 %v1404, %v1404
        %v1421 = vmul.f32 %v1405, %v1405
        %v1422 = vmul.f32 %v1406, %v1406
        %v1423 = vmul.f32 %v1407, %v1407
        %v1424 = vmul.f32 %v1408, %v1408
        %v1425 = vmul.f32 %v1409, %v1409
        %v1426 = vmul.f32 %v1410, %v1410
        %v1427 = vmul.f32 %v1411, %v1411
        %v1428 = vmul.f32 %v1412, %v1412
        %v1429 = vmul.f32 %v1413, %v1413
        %v1430 = vsel %vm762, %v1414, 0.0
        %1431 = vadd.xlane.f32.xlu0 %v1430
        %v1432 = vpop.xlane.xlu0 %1431
        %v1433 = vsel %vm762, %v1415, 0.0
        %1434 = vadd.xlane.f32.xlu0 %v1433
        %v1435 = vpop.xlane.xlu0 %1434
        %v1436 = vsel %vm762, %v1416, 0.0
        %1437 = vadd.xlane.f32.xlu0 %v1436
        %v1438 = vpop.xlane.xlu0 %1437
        %v1439 = vsel %vm762, %v1417, 0.0
        %1440 = vadd.xlane.f32.xlu0 %v1439
        %v1441 = vpop.xlane.xlu0 %1440
        %v1442 = vsel %vm762, %v1418, 0.0
        %1443 = vadd.xlane.f32.xlu0 %v1442
        %v1444 = vpop.xlane.xlu0 %1443
        %v1445 = vsel %vm762, %v1419, 0.0
        %1446 = vadd.xlane.f32.xlu0 %v1445
        %v1447 = vpop.xlane.xlu0 %1446
        %v1448 = vsel %vm762, %v1420, 0.0
        %1449 = vadd.xlane.f32.xlu0 %v1448
        %v1450 = vpop.xlane.xlu0 %1449
        %v1451 = vsel %vm762, %v1421, 0.0
        %1452 = vadd.xlane.f32.xlu0 %v1451
        %v1453 = vpop.xlane.xlu0 %1452
        %v1454 = vsel %vm762, %v1422, 0.0
        %1455 = vadd.xlane.f32.xlu0 %v1454
        %v1456 = vpop.xlane.xlu0 %1455
        %v1457 = vsel %vm762, %v1423, 0.0
        %1458 = vadd.xlane.f32.xlu0 %v1457
        %v1459 = vpop.xlane.xlu0 %1458
        %v1460 = vsel %vm762, %v1424, 0.0
        %1461 = vadd.xlane.f32.xlu0 %v1460
        %v1462 = vpop.xlane.xlu0 %1461
        %v1463 = vsel %vm762, %v1425, 0.0
        %1464 = vadd.xlane.f32.xlu0 %v1463
        %v1465 = vpop.xlane.xlu0 %1464
        %v1466 = vsel %vm762, %v1426, 0.0
        %1467 = vadd.xlane.f32.xlu0 %v1466
        %v1468 = vpop.xlane.xlu0 %1467
        %v1469 = vsel %vm762, %v1427, 0.0
        %1470 = vadd.xlane.f32.xlu0 %v1469
        %v1471 = vpop.xlane.xlu0 %1470
        %v1472 = vsel %vm762, %v1428, 0.0
        %1473 = vadd.xlane.f32.xlu0 %v1472
        %v1474 = vpop.xlane.xlu0 %1473
        %v1475 = vsel %vm762, %v1429, 0.0
        %1476 = vadd.xlane.f32.xlu0 %v1475
        %v1477 = vpop.xlane.xlu0 %1476
        %v1478 = vmul.f32 %v1432, %v811
        %v1479 = vmul.f32 %v1435, %v811
        %v1480 = vmul.f32 %v1438, %v811
        %v1481 = vmul.f32 %v1441, %v811
        %v1482 = vmul.f32 %v1444, %v811
        %v1483 = vmul.f32 %v1447, %v811
        %v1484 = vmul.f32 %v1450, %v811
        %v1485 = vmul.f32 %v1453, %v811
        %v1486 = vmul.f32 %v1456, %v811
        %v1487 = vmul.f32 %v1459, %v811
        %v1488 = vmul.f32 %v1462, %v811
        %v1489 = vmul.f32 %v1465, %v811
        %v1490 = vmul.f32 %v1468, %v811
        %v1491 = vmul.f32 %v1471, %v811
        %v1492 = vmul.f32 %v1474, %v811
        %v1493 = vmul.f32 %v1477, %v811
        %v1494 = vadd.f32 %v1478, 1e-05
        %v1495 = vadd.f32 %v1479, 1e-05
        %v1496 = vadd.f32 %v1480, 1e-05
        %v1497 = vadd.f32 %v1481, 1e-05
        %v1498 = vadd.f32 %v1482, 1e-05
        %v1499 = vadd.f32 %v1483, 1e-05
        %v1500 = vadd.f32 %v1484, 1e-05
        %v1501 = vadd.f32 %v1485, 1e-05
        %v1502 = vadd.f32 %v1486, 1e-05
        %v1503 = vadd.f32 %v1487, 1e-05
        %v1504 = vadd.f32 %v1488, 1e-05
        %v1505 = vadd.f32 %v1489, 1e-05
        %v1506 = vadd.f32 %v1490, 1e-05
        %v1507 = vadd.f32 %v1491, 1e-05
        %v1508 = vadd.f32 %v1492, 1e-05
        %v1509 = vadd.f32 %v1493, 1e-05
        %v1510 = vrsqrt.pop %v1494
        %v1511 = vrsqrt.pop %v1495
        %v1512 = vrsqrt.pop %v1496
        %v1513 = vrsqrt.pop %v1497
        %v1514 = vrsqrt.pop %v1498
        %v1515 = vrsqrt.pop %v1499
        %v1516 = vrsqrt.pop %v1500
        %v1517 = vrsqrt.pop %v1501
        %v1518 = vrsqrt.pop %v1502
        %v1519 = vrsqrt.pop %v1503
        %v1520 = vrsqrt.pop %v1504
        %v1521 = vrsqrt.pop %v1505
        %v1522 = vrsqrt.pop %v1506
        %v1523 = vrsqrt.pop %v1507
        %v1524 = vrsqrt.pop %v1508
        %v1525 = vrsqrt.pop %v1509
        %v1526 = vmul.f32 %v1398, %v1510
        %v1527 = vmul.f32 %v1399, %v1511
        %v1528 = vmul.f32 %v1400, %v1512
        %v1529 = vmul.f32 %v1401, %v1513
        %v1530 = vmul.f32 %v1402, %v1514
        %v1531 = vmul.f32 %v1403, %v1515
        %v1532 = vmul.f32 %v1404, %v1516
        %v1533 = vmul.f32 %v1405, %v1517
        %v1534 = vmul.f32 %v1406, %v1518
        %v1535 = vmul.f32 %v1407, %v1519
        %v1536 = vmul.f32 %v1408, %v1520
        %v1537 = vmul.f32 %v1409, %v1521
        %v1538 = vmul.f32 %v1410, %v1522
        %v1539 = vmul.f32 %v1411, %v1523
        %v1540 = vmul.f32 %v1412, %v1524
        %v1541 = vmul.f32 %v1413, %v1525
        %v1543 = vlaneseq
        %v1544 = vshrl.u32 %v1543, 7
        %v1545 = vsub.s32 0, %v1544
        %v1546 = vrot.slane %v1332, %v1545
        %v1548 = vmul.f32 %v1526, %v1546
        %v1549 = vmul.f32 %v1527, %v1546
        %v1550 = vmul.f32 %v1528, %v1546
        %v1551 = vmul.f32 %v1529, %v1546
        %v1552 = vmul.f32 %v1530, %v1546
        %v1553 = vmul.f32 %v1531, %v1546
        %v1554 = vmul.f32 %v1532, %v1546
        %v1555 = vmul.f32 %v1533, %v1546
        %v1556 = vmul.f32 %v1534, %v1546
        %v1557 = vmul.f32 %v1535, %v1546
        %v1558 = vmul.f32 %v1536, %v1546
        %v1559 = vmul.f32 %v1537, %v1546
        %v1560 = vmul.f32 %v1538, %v1546
        %v1561 = vmul.f32 %v1539, %v1546
        %v1562 = vmul.f32 %v1540, %v1546
        %v1563 = vmul.f32 %v1541, %v1546
        %v1565 = vlaneseq
        %v1566 = vshrl.u32 %v1565, 7
        %v1567 = vsub.s32 0, %v1566
        %v1568 = vrot.slane %v1333, %v1567
        %v1570 = vadd.f32 %v1548, %v1568
        %v1571 = vadd.f32 %v1549, %v1568
        %v1572 = vadd.f32 %v1550, %v1568
        %v1573 = vadd.f32 %v1551, %v1568
        %v1574 = vadd.f32 %v1552, %v1568
        %v1575 = vadd.f32 %v1553, %v1568
        %v1576 = vadd.f32 %v1554, %v1568
        %v1577 = vadd.f32 %v1555, %v1568
        %v1578 = vadd.f32 %v1556, %v1568
        %v1579 = vadd.f32 %v1557, %v1568
        %v1580 = vadd.f32 %v1558, %v1568
        %v1581 = vadd.f32 %v1559, %v1568
        %v1582 = vadd.f32 %v1560, %v1568
        %v1583 = vadd.f32 %v1561, %v1568
        %v1584 = vadd.f32 %v1562, %v1568
        %v1585 = vadd.f32 %v1563, %v1568
        %v1586 = vxor.u32 %v1570, 2147483648
        %v1587 = vxor.u32 %v1571, 2147483648
        %v1588 = vxor.u32 %v1572, 2147483648
        %v1589 = vxor.u32 %v1573, 2147483648
        %v1590 = vxor.u32 %v1574, 2147483648
        %v1591 = vxor.u32 %v1575, 2147483648
        %v1592 = vxor.u32 %v1576, 2147483648
        %v1593 = vxor.u32 %v1577, 2147483648
        %v1594 = vxor.u32 %v1578, 2147483648
        %v1595 = vxor.u32 %v1579, 2147483648
        %v1596 = vxor.u32 %v1580, 2147483648
        %v1597 = vxor.u32 %v1581, 2147483648
        %v1598 = vxor.u32 %v1582, 2147483648
        %v1599 = vxor.u32 %v1583, 2147483648
        %v1600 = vxor.u32 %v1584, 2147483648
        %v1601 = vxor.u32 %v1585, 2147483648
        %v1602 = vmul.f32 %v1586, 1.442695
        %v1603 = vpow.pop %v1602
        %v1604 = vmul.f32 %v1587, 1.442695
        %v1605 = vpow.pop %v1604
        %v1606 = vmul.f32 %v1588, 1.442695
        %v1607 = vpow.pop %v1606
        %v1608 = vmul.f32 %v1589, 1.442695
        %v1609 = vpow.pop %v1608
        %v1610 = vmul.f32 %v1590, 1.442695
        %v1611 = vpow.pop %v1610
        %v1612 = vmul.f32 %v1591, 1.442695
        %v1613 = vpow.pop %v1612
        %v1614 = vmul.f32 %v1592, 1.442695
        %v1615 = vpow.pop %v1614
        %v1616 = vmul.f32 %v1593, 1.442695
        %v1617 = vpow.pop %v1616
        %v1618 = vmul.f32 %v1594, 1.442695
        %v1619 = vpow.pop %v1618
        %v1620 = vmul.f32 %v1595, 1.442695
        %v1621 = vpow.pop %v1620
        %v1622 = vmul.f32 %v1596, 1.442695
        %v1623 = vpow.pop %v1622
        %v1624 = vmul.f32 %v1597, 1.442695
        %v1625 = vpow.pop %v1624
        %v1626 = vmul.f32 %v1598, 1.442695
        %v1627 = vpow.pop %v1626
        %v1628 = vmul.f32 %v1599, 1.442695
        %v1629 = vpow.pop %v1628
        %v1630 = vmul.f32 %v1600, 1.442695
        %v1631 = vpow.pop %v1630
        %v1632 = vmul.f32 %v1601, 1.442695
        %v1633 = vpow.pop %v1632
        %v1634 = vadd.f32 %v1603, 1.0
        %v1635 = vadd.f32 %v1605, 1.0
        %v1636 = vadd.f32 %v1607, 1.0
        %v1637 = vadd.f32 %v1609, 1.0
        %v1638 = vadd.f32 %v1611, 1.0
        %v1639 = vadd.f32 %v1613, 1.0
        %v1640 = vadd.f32 %v1615, 1.0
        %v1641 = vadd.f32 %v1617, 1.0
        %v1642 = vadd.f32 %v1619, 1.0
        %v1643 = vadd.f32 %v1621, 1.0
        %v1644 = vadd.f32 %v1623, 1.0
        %v1645 = vadd.f32 %v1625, 1.0
        %v1646 = vadd.f32 %v1627, 1.0
        %v1647 = vadd.f32 %v1629, 1.0
        %v1648 = vadd.f32 %v1631, 1.0
        %v1649 = vadd.f32 %v1633, 1.0
        %v1650 = vrcp.pop %v1634
        %v1651 = vmul.f32 1.0, %v1650
        %v1652 = vrcp.pop %v1635
        %v1653 = vmul.f32 1.0, %v1652
        %v1654 = vrcp.pop %v1636
        %v1655 = vmul.f32 1.0, %v1654
        %v1656 = vrcp.pop %v1637
        %v1657 = vmul.f32 1.0, %v1656
        %v1658 = vrcp.pop %v1638
        %v1659 = vmul.f32 1.0, %v1658
        %v1660 = vrcp.pop %v1639
        %v1661 = vmul.f32 1.0, %v1660
        %v1662 = vrcp.pop %v1640
        %v1663 = vmul.f32 1.0, %v1662
        %v1664 = vrcp.pop %v1641
        %v1665 = vmul.f32 1.0, %v1664
        %v1666 = vrcp.pop %v1642
        %v1667 = vmul.f32 1.0, %v1666
        %v1668 = vrcp.pop %v1643
        %v1669 = vmul.f32 1.0, %v1668
        %v1670 = vrcp.pop %v1644
        %v1671 = vmul.f32 1.0, %v1670
        %v1672 = vrcp.pop %v1645
        %v1673 = vmul.f32 1.0, %v1672
        %v1674 = vrcp.pop %v1646
        %v1675 = vmul.f32 1.0, %v1674
        %v1676 = vrcp.pop %v1647
        %v1677 = vmul.f32 1.0, %v1676
        %v1678 = vrcp.pop %v1648
        %v1679 = vmul.f32 1.0, %v1678
        %v1680 = vrcp.pop %v1649
        %v1681 = vmul.f32 1.0, %v1680
        %v1682 = vmul.f32 %v1570, %v1651
        %v1683 = vmul.f32 %v1571, %v1653
        %v1684 = vmul.f32 %v1572, %v1655
        %v1685 = vmul.f32 %v1573, %v1657
        %v1686 = vmul.f32 %v1574, %v1659
        %v1687 = vmul.f32 %v1575, %v1661
        %v1688 = vmul.f32 %v1576, %v1663
        %v1689 = vmul.f32 %v1577, %v1665
        %v1690 = vmul.f32 %v1578, %v1667
        %v1691 = vmul.f32 %v1579, %v1669
        %v1692 = vmul.f32 %v1580, %v1671
        %v1693 = vmul.f32 %v1581, %v1673
        %v1694 = vmul.f32 %v1582, %v1675
        %v1695 = vmul.f32 %v1583, %v1677
        %v1696 = vmul.f32 %v1584, %v1679
        %v1697 = vmul.f32 %v1585, %v1681
        %v1698 = vld [vmem:[%s13] sm:$0xff]
        %v1699 = vld [vmem:[%s13 + $0x8] sm:$0xff]
        %v1700 = vld [vmem:[%s13 + $0x10] sm:$0xff]
        %v1701 = vld [vmem:[%s13 + $0x18] sm:$0xff]
        %v1702 = vld [vmem:[%s14] sm:$0x1]
        %v1704 = vlaneseq
        %v1705 = vshrl.u32 %v1704, 7
        %v1706 = vsub.s32 0, %v1705
        %v1707 = vrot.slane %v1702, %v1706
        %v1710 = vsel %vm762, %v1682, 0
        %v1713 = vsel %vm762, %v1683, 0
        %v1716 = vsel %vm762, %v1684, 0
        %v1719 = vsel %vm762, %v1685, 0
        %v1722 = vsel %vm762, %v1686, 0
        %v1725 = vsel %vm762, %v1687, 0
        %v1728 = vsel %vm762, %v1688, 0
        %v1731 = vsel %vm762, %v1689, 0
        %v1734 = vsel %vm762, %v1690, 0
        %v1737 = vsel %vm762, %v1691, 0
        %v1740 = vsel %vm762, %v1692, 0
        %v1743 = vsel %vm762, %v1693, 0
        %v1746 = vsel %vm762, %v1694, 0
        %v1749 = vsel %vm762, %v1695, 0
        %v1752 = vsel %vm762, %v1696, 0
        %v1755 = vsel %vm762, %v1697, 0
        %1757 = vmatprep.subr.mxu0 0.0
        %1758 = vmatpush1.msra.mxu0 %v1698
        %1759 = vmatprep.subr.mxu0 0.0
        %1760 = vmatpush1.msra.mxu0 %v1699
        %1761 = vmatprep.subr.mxu0 0.0
        %1762 = vmatpush1.msra.mxu0 %v1700
        %1763 = vmatprep.subr.mxu0 0.0
        %1764 = vmatpush1.msra.mxu0 %v1701
        %1765 = vmatprep.subr.mxu0 0.0
        %1766 = vmatpush1.msra.mxu0 0.0
        %1767 = vmatprep.subr.mxu0 0.0
        %1768 = vmatpush1.msra.mxu0 0.0
        %1769 = vmatprep.subr.mxu0 0.0
        %1770 = vmatpush1.msra.mxu0 0.0
        %1771 = vmatprep.subr.mxu0 0.0
        %1772 = vmatpush1.msra.mxu0 0.0
        %1773 = vmatprep.subr.mxu0 0.0
        %1774 = vmatpush1.msra.mxu0 0.0
        %1775 = vmatprep.subr.mxu0 0.0
        %1776 = vmatpush1.msra.mxu0 0.0
        %1777 = vmatprep.subr.mxu0 0.0
        %1778 = vmatpush1.msra.mxu0 0.0
        %1779 = vmatprep.subr.mxu0 0.0
        %1780 = vmatpush1.msra.mxu0 0.0
        %1781 = vmatprep.subr.mxu0 0.0
        %1782 = vmatpush1.msra.mxu0 0.0
        %1783 = vmatprep.subr.mxu0 0.0
        %1784 = vmatpush1.msra.mxu0 0.0
        %1785 = vmatprep.subr.mxu0 0.0
        %1786 = vmatpush1.msra.mxu0 0.0
        %1787 = vmatprep.subr.mxu0 0.0
        %1788 = vmatpush1.msra.mxu0 0.0
        %1789 = vmatprep.subr.mxu0 0.0
        %1790 = vmatpush1.msra.mxu0 0.0
        %1791 = vmatprep.subr.mxu0 0.0
        %1792 = vmatpush1.msra.mxu0 0.0
        %1793 = vmatprep.subr.mxu0 0.0
        %1794 = vmatpush1.msra.mxu0 0.0
        %1795 = vmatprep.subr.mxu0 0.0
        %1796 = vmatpush1.msra.mxu0 0.0
        %1797 = vmatprep.subr.mxu0 0.0
        %1798 = vmatpush1.msra.mxu0 0.0
        %1799 = vmatprep.subr.mxu0 0.0
        %1800 = vmatpush1.msra.mxu0 0.0
        %1801 = vmatprep.subr.mxu0 0.0
        %1802 = vmatpush1.msra.mxu0 0.0
        %1803 = vmatprep.subr.mxu0 0.0
        %1804 = vmatpush1.msra.mxu0 0.0
        %1805 = vmatprep.subr.mxu0 0.0
        %1806 = vmatpush1.msra.mxu0 0.0
        %1807 = vmatprep.subr.mxu0 0.0
        %1808 = vmatpush1.msra.mxu0 0.0
        %1809 = vmatprep.subr.mxu0 0.0
        %1810 = vmatpush1.msra.mxu0 0.0
        %1811 = vmatprep.subr.mxu0 0.0
        %1812 = vmatpush1.msra.mxu0 0.0
        %1813 = vmatprep.subr.mxu0 0.0
        %1814 = vmatpush1.msra.mxu0 0.0
        %1815 = vmatprep.subr.mxu0 0.0
        %1816 = vmatpush1.msra.mxu0 0.0
        %1817 = vmatprep.subr.mxu0 0.0
        %1818 = vmatpush1.msra.mxu0 0.0
        %1819 = vmatprep.subr.mxu0 0.0
        %1820 = vmatpush1.msra.mxu0 0.0
        %1821 = vmatprep.mubr.f32.mxu0 0.0
        %1822 = vmatmul.mubr.f32.gmra.mrb[0].mxu0 %v1710
        %v1823 = vpop.f32.mrb[0].mxu0
        %v1824 = vadd.f32 %v1707, %v1823
        %v1825 = vpop.f32.mrb[0].mxu0
        %1826 = vmatprep.mubr.f32.mxu0 0.0
        %1827 = vmatmul.mubr.f32.gmra.mrb[0].mxu0 %v1713
        %v1828 = vpop.f32.mrb[0].mxu0
        %v1829 = vadd.f32 %v1707, %v1828
        %v1830 = vpop.f32.mrb[0].mxu0
        %1831 = vmatprep.mubr.f32.mxu0 0.0
        %1832 = vmatmul.mubr.f32.gmra.mrb[0].mxu0 %v1716
        %v1833 = vpop.f32.mrb[0].mxu0
        %v1834 = vadd.f32 %v1707, %v1833
        %v1835 = vpop.f32.mrb[0].mxu0
        %1836 = vmatprep.mubr.f32.mxu0 0.0
        %1837 = vmatmul.mubr.f32.gmra.mrb[0].mxu0 %v1719
        %v1838 = vpop.f32.mrb[0].mxu0
        %v1839 = vadd.f32 %v1707, %v1838
        %v1840 = vpop.f32.mrb[0].mxu0
        %1841 = vmatprep.mubr.f32.mxu0 0.0
        %1842 = vmatmul.mubr.f32.gmra.mrb[0].mxu0 %v1722
        %v1843 = vpop.f32.mrb[0].mxu0
        %v1844 = vadd.f32 %v1707, %v1843
        %v1845 = vpop.f32.mrb[0].mxu0
        %1846 = vmatprep.mubr.f32.mxu0 0.0
        %1847 = vmatmul.mubr.f32.gmra.mrb[0].mxu0 %v1725
        %v1848 = vpop.f32.mrb[0].mxu0
        %v1849 = vadd.f32 %v1707, %v1848
        %v1850 = vpop.f32.mrb[0].mxu0
        %1851 = vmatprep.mubr.f32.mxu0 0.0
        %1852 = vmatmul.mubr.f32.gmra.mrb[0].mxu0 %v1728
        %v1853 = vpop.f32.mrb[0].mxu0
        %v1854 = vadd.f32 %v1707, %v1853
        %v1855 = vpop.f32.mrb[0].mxu0
        %1856 = vmatprep.mubr.f32.mxu0 0.0
        %1857 = vmatmul.mubr.f32.gmra.mrb[0].mxu0 %v1731
        %v1858 = vpop.f32.mrb[0].mxu0
        %v1859 = vadd.f32 %v1707, %v1858
        %v1860 = vpop.f32.mrb[0].mxu0
        %1861 = vmatprep.mubr.f32.mxu0 0.0
        %1862 = vmatmul.mubr.f32.gmra.mrb[0].mxu0 %v1734
        %v1863 = vpop.f32.mrb[0].mxu0
        %v1864 = vadd.f32 %v1707, %v1863
        %v1865 = vpop.f32.mrb[0].mxu0
        %1866 = vmatprep.mubr.f32.mxu0 0.0
        %1867 = vmatmul.mubr.f32.gmra.mrb[0].mxu0 %v1737
        %v1868 = vpop.f32.mrb[0].mxu0
        %v1869 = vadd.f32 %v1707, %v1868
        %v1870 = vpop.f32.mrb[0].mxu0
        %1871 = vmatprep.mubr.f32.mxu0 0.0
        %1872 = vmatmul.mubr.f32.gmra.mrb[0].mxu0 %v1740
        %v1873 = vpop.f32.mrb[0].mxu0
        %v1874 = vadd.f32 %v1707, %v1873
        %v1875 = vpop.f32.mrb[0].mxu0
        %1876 = vmatprep.mubr.f32.mxu0 0.0
        %1877 = vmatmul.mubr.f32.gmra.mrb[0].mxu0 %v1743
        %v1878 = vpop.f32.mrb[0].mxu0
        %v1879 = vadd.f32 %v1707, %v1878
        %v1880 = vpop.f32.mrb[0].mxu0
        %1881 = vmatprep.mubr.f32.mxu0 0.0
        %1882 = vmatmul.mubr.f32.gmra.mrb[0].mxu0 %v1746
        %v1883 = vpop.f32.mrb[0].mxu0
        %v1884 = vadd.f32 %v1707, %v1883
        %v1885 = vpop.f32.mrb[0].mxu0
        %1886 = vmatprep.mubr.f32.mxu0 0.0
        %1887 = vmatmul.mubr.f32.gmra.mrb[0].mxu0 %v1749
        %v1888 = vpop.f32.mrb[0].mxu0
        %v1889 = vadd.f32 %v1707, %v1888
        %v1890 = vpop.f32.mrb[0].mxu0
        %1891 = vmatprep.mubr.f32.mxu0 0.0
        %1892 = vmatmul.mubr.f32.gmra.mrb[0].mxu0 %v1752
        %v1893 = vpop.f32.mrb[0].mxu0
        %v1894 = vadd.f32 %v1707, %v1893
        %v1895 = vpop.f32.mrb[0].mxu0
        %1896 = vmatprep.mubr.f32.mxu0 0.0
        %1897 = vmatmul.mubr.f32.gmra.mrb[0].mxu0 %v1755
        %v1898 = vpop.f32.mrb[0].mxu0
        %v1899 = vadd.f32 %v1707, %v1898
        %v1900 = vpop.f32.mrb[0].mxu0
        %1901 = vdwg.mxu0
        %v1902 = vld [vmem:[%s531] sm:$0xff]
        %v1903 = vld [vmem:[%s531 + $0x8] sm:$0xff]
        %v1904 = vld [vmem:[%s531 + $0x10] sm:$0xff]
        %v1905 = vld [vmem:[%s531 + $0x18] sm:$0xff]
        %v1906 = vld [vmem:[%s531 + $0x20] sm:$0xff]
        %v1907 = vld [vmem:[%s531 + $0x28] sm:$0xff]
        %v1908 = vld [vmem:[%s531 + $0x30] sm:$0xff]
        %v1909 = vld [vmem:[%s531 + $0x38] sm:$0xff]
        %v1910 = vld [vmem:[%s531 + $0x40] sm:$0xff]
        %v1911 = vld [vmem:[%s531 + $0x48] sm:$0xff]
        %v1912 = vld [vmem:[%s531 + $0x50] sm:$0xff]
        %v1913 = vld [vmem:[%s531 + $0x58] sm:$0xff]
        %v1914 = vld [vmem:[%s531 + $0x60] sm:$0xff]
        %v1915 = vld [vmem:[%s531 + $0x68] sm:$0xff]
        %v1916 = vld [vmem:[%s531 + $0x70] sm:$0xff]
        %v1917 = vld [vmem:[%s531 + $0x78] sm:$0xff]
        %1919 = vset.pattern.permute.xlu0 0
        %1920 = vperm.xlu0 %1919, %v1902
        %v1921 = vpop.permute.xlu0 %1920
        %1924 = vset.pattern.permute.xlu0 0
        %1925 = vperm.xlu0 %1924, %v1903
        %v1926 = vpop.permute.xlu0 %1925
        %1929 = vset.pattern.permute.xlu0 0
        %1930 = vperm.xlu0 %1929, %v1904
        %v1931 = vpop.permute.xlu0 %1930
        %1934 = vset.pattern.permute.xlu0 0
        %1935 = vperm.xlu0 %1934, %v1905
        %v1936 = vpop.permute.xlu0 %1935
        %1939 = vset.pattern.permute.xlu0 0
        %1940 = vperm.xlu0 %1939, %v1906
        %v1941 = vpop.permute.xlu0 %1940
        %1944 = vset.pattern.permute.xlu0 0
        %1945 = vperm.xlu0 %1944, %v1907
        %v1946 = vpop.permute.xlu0 %1945
        %1949 = vset.pattern.permute.xlu0 0
        %1950 = vperm.xlu0 %1949, %v1908
        %v1951 = vpop.permute.xlu0 %1950
        %1954 = vset.pattern.permute.xlu0 0
        %1955 = vperm.xlu0 %1954, %v1909
        %v1956 = vpop.permute.xlu0 %1955
        %1959 = vset.pattern.permute.xlu0 0
        %1960 = vperm.xlu0 %1959, %v1910
        %v1961 = vpop.permute.xlu0 %1960
        %1964 = vset.pattern.permute.xlu0 0
        %1965 = vperm.xlu0 %1964, %v1911
        %v1966 = vpop.permute.xlu0 %1965
        %1969 = vset.pattern.permute.xlu0 0
        %1970 = vperm.xlu0 %1969, %v1912
        %v1971 = vpop.permute.xlu0 %1970
        %1974 = vset.pattern.permute.xlu0 0
        %1975 = vperm.xlu0 %1974, %v1913
        %v1976 = vpop.permute.xlu0 %1975
        %1979 = vset.pattern.permute.xlu0 0
        %1980 = vperm.xlu0 %1979, %v1914
        %v1981 = vpop.permute.xlu0 %1980
        %1984 = vset.pattern.permute.xlu0 0
        %1985 = vperm.xlu0 %1984, %v1915
        %v1986 = vpop.permute.xlu0 %1985
        %1989 = vset.pattern.permute.xlu0 0
        %1990 = vperm.xlu0 %1989, %v1916
        %v1991 = vpop.permute.xlu0 %1990
        %1994 = vset.pattern.permute.xlu0 0
        %1995 = vperm.xlu0 %1994, %v1917
        %v1996 = vpop.permute.xlu0 %1995
        %v1998 = vmul.f32 %v1921, %v1824
        %v1999 = vmul.f32 %v1926, %v1829
        %v2000 = vmul.f32 %v1931, %v1834
        %v2001 = vmul.f32 %v1936, %v1839
        %v2002 = vmul.f32 %v1941, %v1844
        %v2003 = vmul.f32 %v1946, %v1849
        %v2004 = vmul.f32 %v1951, %v1854
        %v2005 = vmul.f32 %v1956, %v1859
        %v2006 = vmul.f32 %v1961, %v1864
        %v2007 = vmul.f32 %v1966, %v1869
        %v2008 = vmul.f32 %v1971, %v1874
        %v2009 = vmul.f32 %v1976, %v1879
        %v2010 = vmul.f32 %v1981, %v1884
        %v2011 = vmul.f32 %v1986, %v1889
        %v2012 = vmul.f32 %v1991, %v1894
        %v2013 = vmul.f32 %v1996, %v1899
        %2014 = vset.pattern.permute.xlu0 1
        %2015 = vperm.xlu0 %2014, %v1902
        %v2016 = vpop.permute.xlu0 %2015
        %2018 = vset.pattern.permute.xlu0 1
        %2019 = vperm.xlu0 %2018, %v1903
        %v2020 = vpop.permute.xlu0 %2019
        %2022 = vset.pattern.permute.xlu0 1
        %2023 = vperm.xlu0 %2022, %v1904
        %v2024 = vpop.permute.xlu0 %2023
        %2026 = vset.pattern.permute.xlu0 1
        %2027 = vperm.xlu0 %2026, %v1905
        %v2028 = vpop.permute.xlu0 %2027
        %2030 = vset.pattern.permute.xlu0 1
        %2031 = vperm.xlu0 %2030, %v1906
        %v2032 = vpop.permute.xlu0 %2031
        %2034 = vset.pattern.permute.xlu0 1
        %2035 = vperm.xlu0 %2034, %v1907
        %v2036 = vpop.permute.xlu0 %2035
        %2038 = vset.pattern.permute.xlu0 1
        %2039 = vperm.xlu0 %2038, %v1908
        %v2040 = vpop.permute.xlu0 %2039
        %2042 = vset.pattern.permute.xlu0 1
        %2043 = vperm.xlu0 %2042, %v1909
        %v2044 = vpop.permute.xlu0 %2043
        %2046 = vset.pattern.permute.xlu0 1
        %2047 = vperm.xlu0 %2046, %v1910
        %v2048 = vpop.permute.xlu0 %2047
        %2050 = vset.pattern.permute.xlu0 1
        %2051 = vperm.xlu0 %2050, %v1911
        %v2052 = vpop.permute.xlu0 %2051
        %2054 = vset.pattern.permute.xlu0 1
        %2055 = vperm.xlu0 %2054, %v1912
        %v2056 = vpop.permute.xlu0 %2055
        %2058 = vset.pattern.permute.xlu0 1
        %2059 = vperm.xlu0 %2058, %v1913
        %v2060 = vpop.permute.xlu0 %2059
        %2062 = vset.pattern.permute.xlu0 1
        %2063 = vperm.xlu0 %2062, %v1914
        %v2064 = vpop.permute.xlu0 %2063
        %2066 = vset.pattern.permute.xlu0 1
        %2067 = vperm.xlu0 %2066, %v1915
        %v2068 = vpop.permute.xlu0 %2067
        %2070 = vset.pattern.permute.xlu0 1
        %2071 = vperm.xlu0 %2070, %v1916
        %v2072 = vpop.permute.xlu0 %2071
        %2074 = vset.pattern.permute.xlu0 1
        %2075 = vperm.xlu0 %2074, %v1917
        %v2076 = vpop.permute.xlu0 %2075
        %v2078 = vmul.f32 %v2016, %v1824
        %v2079 = vmul.f32 %v2020, %v1829
        %v2080 = vmul.f32 %v2024, %v1834
        %v2081 = vmul.f32 %v2028, %v1839
        %v2082 = vmul.f32 %v2032, %v1844
        %v2083 = vmul.f32 %v2036, %v1849
        %v2084 = vmul.f32 %v2040, %v1854
        %v2085 = vmul.f32 %v2044, %v1859
        %v2086 = vmul.f32 %v2048, %v1864
        %v2087 = vmul.f32 %v2052, %v1869
        %v2088 = vmul.f32 %v2056, %v1874
        %v2089 = vmul.f32 %v2060, %v1879
        %v2090 = vmul.f32 %v2064, %v1884
        %v2091 = vmul.f32 %v2068, %v1889
        %v2092 = vmul.f32 %v2072, %v1894
        %v2093 = vmul.f32 %v2076, %v1899
        %2110 = vrot.lane.b32.xlu0 %v2078, 112
        %v2111 = vpop.permute.xlu0 %2110
        %2112 = vrot.lane.b32.xlu0 %v2079, 112
        %v2113 = vpop.permute.xlu0 %2112
        %2114 = vrot.lane.b32.xlu0 %v2080, 112
        %v2115 = vpop.permute.xlu0 %2114
        %2116 = vrot.lane.b32.xlu0 %v2081, 112
        %v2117 = vpop.permute.xlu0 %2116
        %2118 = vrot.lane.b32.xlu0 %v2082, 112
        %v2119 = vpop.permute.xlu0 %2118
        %2120 = vrot.lane.b32.xlu0 %v2083, 112
        %v2121 = vpop.permute.xlu0 %2120
        %2122 = vrot.lane.b32.xlu0 %v2084, 112
        %v2123 = vpop.permute.xlu0 %2122
        %2124 = vrot.lane.b32.xlu0 %v2085, 112
        %v2125 = vpop.permute.xlu0 %2124
        %2126 = vrot.lane.b32.xlu0 %v2086, 112
        %v2127 = vpop.permute.xlu0 %2126
        %2128 = vrot.lane.b32.xlu0 %v2087, 112
        %v2129 = vpop.permute.xlu0 %2128
        %2130 = vrot.lane.b32.xlu0 %v2088, 112
        %v2131 = vpop.permute.xlu0 %2130
        %2132 = vrot.lane.b32.xlu0 %v2089, 112
        %v2133 = vpop.permute.xlu0 %2132
        %2134 = vrot.lane.b32.xlu0 %v2090, 112
        %v2135 = vpop.permute.xlu0 %2134
        %2136 = vrot.lane.b32.xlu0 %v2091, 112
        %v2137 = vpop.permute.xlu0 %2136
        %2138 = vrot.lane.b32.xlu0 %v2092, 112
        %v2139 = vpop.permute.xlu0 %2138
        %2140 = vrot.lane.b32.xlu0 %v2093, 112
        %v2141 = vpop.permute.xlu0 %2140
        %v2158 = vadd.f32 %v1998, %v2111
        %v2159 = vadd.f32 %v1999, %v2113
        %v2160 = vadd.f32 %v2000, %v2115
        %v2161 = vadd.f32 %v2001, %v2117
        %v2162 = vadd.f32 %v2002, %v2119
        %v2163 = vadd.f32 %v2003, %v2121
        %v2164 = vadd.f32 %v2004, %v2123
        %v2165 = vadd.f32 %v2005, %v2125
        %v2166 = vadd.f32 %v2006, %v2127
        %v2167 = vadd.f32 %v2007, %v2129
        %v2168 = vadd.f32 %v2008, %v2131
        %v2169 = vadd.f32 %v2009, %v2133
        %v2170 = vadd.f32 %v2010, %v2135
        %v2171 = vadd.f32 %v2011, %v2137
        %v2172 = vadd.f32 %v2012, %v2139
        %v2173 = vadd.f32 %v2013, %v2141
        %2174 = vset.pattern.permute.xlu0 2
        %2175 = vperm.xlu0 %2174, %v1902
        %v2176 = vpop.permute.xlu0 %2175
        %2178 = vset.pattern.permute.xlu0 2
        %2179 = vperm.xlu0 %2178, %v1903
        %v2180 = vpop.permute.xlu0 %2179
        %2182 = vset.pattern.permute.xlu0 2
        %2183 = vperm.xlu0 %2182, %v1904
        %v2184 = vpop.permute.xlu0 %2183
        %2186 = vset.pattern.permute.xlu0 2
        %2187 = vperm.xlu0 %2186, %v1905
        %v2188 = vpop.permute.xlu0 %2187
        %2190 = vset.pattern.permute.xlu0 2
        %2191 = vperm.xlu0 %2190, %v1906
        %v2192 = vpop.permute.xlu0 %2191
        %2194 = vset.pattern.permute.xlu0 2
        %2195 = vperm.xlu0 %2194, %v1907
        %v2196 = vpop.permute.xlu0 %2195
        %2198 = vset.pattern.permute.xlu0 2
        %2199 = vperm.xlu0 %2198, %v1908
        %v2200 = vpop.permute.xlu0 %2199
        %2202 = vset.pattern.permute.xlu0 2
        %2203 = vperm.xlu0 %2202, %v1909
        %v2204 = vpop.permute.xlu0 %2203
        %2206 = vset.pattern.permute.xlu0 2
        %2207 = vperm.xlu0 %2206, %v1910
        %v2208 = vpop.permute.xlu0 %2207
        %2210 = vset.pattern.permute.xlu0 2
        %2211 = vperm.xlu0 %2210, %v1911
        %v2212 = vpop.permute.xlu0 %2211
        %2214 = vset.pattern.permute.xlu0 2
        %2215 = vperm.xlu0 %2214, %v1912
        %v2216 = vpop.permute.xlu0 %2215
        %2218 = vset.pattern.permute.xlu0 2
        %2219 = vperm.xlu0 %2218, %v1913
        %v2220 = vpop.permute.xlu0 %2219
        %2222 = vset.pattern.permute.xlu0 2
        %2223 = vperm.xlu0 %2222, %v1914
        %v2224 = vpop.permute.xlu0 %2223
        %2226 = vset.pattern.permute.xlu0 2
        %2227 = vperm.xlu0 %2226, %v1915
        %v2228 = vpop.permute.xlu0 %2227
        %2230 = vset.pattern.permute.xlu0 2
        %2231 = vperm.xlu0 %2230, %v1916
        %v2232 = vpop.permute.xlu0 %2231
        %2234 = vset.pattern.permute.xlu0 2
        %2235 = vperm.xlu0 %2234, %v1917
        %v2236 = vpop.permute.xlu0 %2235
        %v2238 = vmul.f32 %v2176, %v1824
        %v2239 = vmul.f32 %v2180, %v1829
        %v2240 = vmul.f32 %v2184, %v1834
        %v2241 = vmul.f32 %v2188, %v1839
        %v2242 = vmul.f32 %v2192, %v1844
        %v2243 = vmul.f32 %v2196, %v1849
        %v2244 = vmul.f32 %v2200, %v1854
        %v2245 = vmul.f32 %v2204, %v1859
        %v2246 = vmul.f32 %v2208, %v1864
        %v2247 = vmul.f32 %v2212, %v1869
        %v2248 = vmul.f32 %v2216, %v1874
        %v2249 = vmul.f32 %v2220, %v1879
        %v2250 = vmul.f32 %v2224, %v1884
        %v2251 = vmul.f32 %v2228, %v1889
        %v2252 = vmul.f32 %v2232, %v1894
        %v2253 = vmul.f32 %v2236, %v1899
        %2270 = vrot.lane.b32.xlu0 %v2238, 96
        %v2271 = vpop.permute.xlu0 %2270
        %2272 = vrot.lane.b32.xlu0 %v2239, 96
        %v2273 = vpop.permute.xlu0 %2272
        %2274 = vrot.lane.b32.xlu0 %v2240, 96
        %v2275 = vpop.permute.xlu0 %2274
        %2276 = vrot.lane.b32.xlu0 %v2241, 96
        %v2277 = vpop.permute.xlu0 %2276
        %2278 = vrot.lane.b32.xlu0 %v2242, 96
        %v2279 = vpop.permute.xlu0 %2278
        %2280 = vrot.lane.b32.xlu0 %v2243, 96
        %v2281 = vpop.permute.xlu0 %2280
        %2282 = vrot.lane.b32.xlu0 %v2244, 96
        %v2283 = vpop.permute.xlu0 %2282
        %2284 = vrot.lane.b32.xlu0 %v2245, 96
        %v2285 = vpop.permute.xlu0 %2284
        %2286 = vrot.lane.b32.xlu0 %v2246, 96
        %v2287 = vpop.permute.xlu0 %2286
        %2288 = vrot.lane.b32.xlu0 %v2247, 96
        %v2289 = vpop.permute.xlu0 %2288
        %2290 = vrot.lane.b32.xlu0 %v2248, 96
        %v2291 = vpop.permute.xlu0 %2290
        %2292 = vrot.lane.b32.xlu0 %v2249, 96
        %v2293 = vpop.permute.xlu0 %2292
        %2294 = vrot.lane.b32.xlu0 %v2250, 96
        %v2295 = vpop.permute.xlu0 %2294
        %2296 = vrot.lane.b32.xlu0 %v2251, 96
        %v2297 = vpop.permute.xlu0 %2296
        %2298 = vrot.lane.b32.xlu0 %v2252, 96
        %v2299 = vpop.permute.xlu0 %2298
        %2300 = vrot.lane.b32.xlu0 %v2253, 96
        %v2301 = vpop.permute.xlu0 %2300
        %v2318 = vadd.f32 %v2158, %v2271
        %v2319 = vadd.f32 %v2159, %v2273
        %v2320 = vadd.f32 %v2160, %v2275
        %v2321 = vadd.f32 %v2161, %v2277
        %v2322 = vadd.f32 %v2162, %v2279
        %v2323 = vadd.f32 %v2163, %v2281
        %v2324 = vadd.f32 %v2164, %v2283
        %v2325 = vadd.f32 %v2165, %v2285
        %v2326 = vadd.f32 %v2166, %v2287
        %v2327 = vadd.f32 %v2167, %v2289
        %v2328 = vadd.f32 %v2168, %v2291
        %v2329 = vadd.f32 %v2169, %v2293
        %v2330 = vadd.f32 %v2170, %v2295
        %v2331 = vadd.f32 %v2171, %v2297
        %v2332 = vadd.f32 %v2172, %v2299
        %v2333 = vadd.f32 %v2173, %v2301
        %vm2334 = vcmask 130048
        %2335 = vst.msk [vmem:[#allocation2] sm:$0xff] %vm2334, %v2318
        %2336 = vst.msk [vmem:[#allocation2 + $0x10] sm:$0xff] %vm2334, %v2319
        %2337 = vst.msk [vmem:[#allocation2 + $0x20] sm:$0xff] %vm2334, %v2320
        %2338 = vst.msk [vmem:[#allocation2 + $0x30] sm:$0xff] %vm2334, %v2321
        %2339 = vst.msk [vmem:[#allocation2 + $0x40] sm:$0xff] %vm2334, %v2322
        %2340 = vst.msk [vmem:[#allocation2 + $0x50] sm:$0xff] %vm2334, %v2323
        %2341 = vst.msk [vmem:[#allocation2 + $0x60] sm:$0xff] %vm2334, %v2324
        %2342 = vst.msk [vmem:[#allocation2 + $0x70] sm:$0xff] %vm2334, %v2325
        %2343 = vst.msk [vmem:[#allocation2 + $0x80] sm:$0xff] %vm2334, %v2326
        %2344 = vst.msk [vmem:[#allocation2 + $0x90] sm:$0xff] %vm2334, %v2327
        %2345 = vst.msk [vmem:[#allocation2 + $0xa0] sm:$0xff] %vm2334, %v2328
        %2346 = vst.msk [vmem:[#allocation2 + $0xb0] sm:$0xff] %vm2334, %v2329
        %2347 = vst.msk [vmem:[#allocation2 + $0xc0] sm:$0xff] %vm2334, %v2330
        %2348 = vst.msk [vmem:[#allocation2 + $0xd0] sm:$0xff] %vm2334, %v2331
        %2349 = vst.msk [vmem:[#allocation2 + $0xe0] sm:$0xff] %vm2334, %v2332
        %2350 = vst.msk [vmem:[#allocation2 + $0xf0] sm:$0xff] %vm2334, %v2333
        %2351 = vset.pattern.permute.xlu0 3
        %2352 = vperm.xlu0 %2351, %v1902
        %v2353 = vpop.permute.xlu0 %2352
        %2355 = vset.pattern.permute.xlu0 3
        %2356 = vperm.xlu0 %2355, %v1903
        %v2357 = vpop.permute.xlu0 %2356
        %2359 = vset.pattern.permute.xlu0 3
        %2360 = vperm.xlu0 %2359, %v1904
        %v2361 = vpop.permute.xlu0 %2360
        %2363 = vset.pattern.permute.xlu0 3
        %2364 = vperm.xlu0 %2363, %v1905
        %v2365 = vpop.permute.xlu0 %2364
        %2367 = vset.pattern.permute.xlu0 3
        %2368 = vperm.xlu0 %2367, %v1906
        %v2369 = vpop.permute.xlu0 %2368
        %2371 = vset.pattern.permute.xlu0 3
        %2372 = vperm.xlu0 %2371, %v1907
        %v2373 = vpop.permute.xlu0 %2372
        %2375 = vset.pattern.permute.xlu0 3
        %2376 = vperm.xlu0 %2375, %v1908
        %v2377 = vpop.permute.xlu0 %2376
        %2379 = vset.pattern.permute.xlu0 3
        %2380 = vperm.xlu0 %2379, %v1909
        %v2381 = vpop.permute.xlu0 %2380
        %2383 = vset.pattern.permute.xlu0 3
        %2384 = vperm.xlu0 %2383, %v1910
        %v2385 = vpop.permute.xlu0 %2384
        %2387 = vset.pattern.permute.xlu0 3
        %2388 = vperm.xlu0 %2387, %v1911
        %v2389 = vpop.permute.xlu0 %2388
        %2391 = vset.pattern.permute.xlu0 3
        %2392 = vperm.xlu0 %2391, %v1912
        %v2393 = vpop.permute.xlu0 %2392
        %2395 = vset.pattern.permute.xlu0 3
        %2396 = vperm.xlu0 %2395, %v1913
        %v2397 = vpop.permute.xlu0 %2396
        %2399 = vset.pattern.permute.xlu0 3
        %2400 = vperm.xlu0 %2399, %v1914
        %v2401 = vpop.permute.xlu0 %2400
        %2403 = vset.pattern.permute.xlu0 3
        %2404 = vperm.xlu0 %2403, %v1915
        %v2405 = vpop.permute.xlu0 %2404
        %2407 = vset.pattern.permute.xlu0 3
        %2408 = vperm.xlu0 %2407, %v1916
        %v2409 = vpop.permute.xlu0 %2408
        %2411 = vset.pattern.permute.xlu0 3
        %2412 = vperm.xlu0 %2411, %v1917
        %v2413 = vpop.permute.xlu0 %2412
        %v2415 = vmul.f32 %v2353, %v1824
        %v2416 = vmul.f32 %v2357, %v1829
        %v2417 = vmul.f32 %v2361, %v1834
        %v2418 = vmul.f32 %v2365, %v1839
        %v2419 = vmul.f32 %v2369, %v1844
        %v2420 = vmul.f32 %v2373, %v1849
        %v2421 = vmul.f32 %v2377, %v1854
        %v2422 = vmul.f32 %v2381, %v1859
        %v2423 = vmul.f32 %v2385, %v1864
        %v2424 = vmul.f32 %v2389, %v1869
        %v2425 = vmul.f32 %v2393, %v1874
        %v2426 = vmul.f32 %v2397, %v1879
        %v2427 = vmul.f32 %v2401, %v1884
        %v2428 = vmul.f32 %v2405, %v1889
        %v2429 = vmul.f32 %v2409, %v1894
        %v2430 = vmul.f32 %v2413, %v1899
        %2431 = vset.pattern.permute.xlu0 4
        %2432 = vperm.xlu0 %2431, %v1902
        %v2433 = vpop.permute.xlu0 %2432
        %2435 = vset.pattern.permute.xlu0 4
        %2436 = vperm.xlu0 %2435, %v1903
        %v2437 = vpop.permute.xlu0 %2436
        %2439 = vset.pattern.permute.xlu0 4
        %2440 = vperm.xlu0 %2439, %v1904
        %v2441 = vpop.permute.xlu0 %2440
        %2443 = vset.pattern.permute.xlu0 4
        %2444 = vperm.xlu0 %2443, %v1905
        %v2445 = vpop.permute.xlu0 %2444
        %2447 = vset.pattern.permute.xlu0 4
        %2448 = vperm.xlu0 %2447, %v1906
        %v2449 = vpop.permute.xlu0 %2448
        %2451 = vset.pattern.permute.xlu0 4
        %2452 = vperm.xlu0 %2451, %v1907
        %v2453 = vpop.permute.xlu0 %2452
        %2455 = vset.pattern.permute.xlu0 4
        %2456 = vperm.xlu0 %2455, %v1908
        %v2457 = vpop.permute.xlu0 %2456
        %2459 = vset.pattern.permute.xlu0 4
        %2460 = vperm.xlu0 %2459, %v1909
        %v2461 = vpop.permute.xlu0 %2460
        %2463 = vset.pattern.permute.xlu0 4
        %2464 = vperm.xlu0 %2463, %v1910
        %v2465 = vpop.permute.xlu0 %2464
        %2467 = vset.pattern.permute.xlu0 4
        %2468 = vperm.xlu0 %2467, %v1911
        %v2469 = vpop.permute.xlu0 %2468
        %2471 = vset.pattern.permute.xlu0 4
        %2472 = vperm.xlu0 %2471, %v1912
        %v2473 = vpop.permute.xlu0 %2472
        %2475 = vset.pattern.permute.xlu0 4
        %2476 = vperm.xlu0 %2475, %v1913
        %v2477 = vpop.permute.xlu0 %2476
        %2479 = vset.pattern.permute.xlu0 4
        %2480 = vperm.xlu0 %2479, %v1914
        %v2481 = vpop.permute.xlu0 %2480
        %2483 = vset.pattern.permute.xlu0 4
        %2484 = vperm.xlu0 %2483, %v1915
        %v2485 = vpop.permute.xlu0 %2484
        %2487 = vset.pattern.permute.xlu0 4
        %2488 = vperm.xlu0 %2487, %v1916
        %v2489 = vpop.permute.xlu0 %2488
        %2491 = vset.pattern.permute.xlu0 4
        %2492 = vperm.xlu0 %2491, %v1917
        %v2493 = vpop.permute.xlu0 %2492
        %v2495 = vmul.f32 %v2433, %v1824
        %v2496 = vmul.f32 %v2437, %v1829
        %v2497 = vmul.f32 %v2441, %v1834
        %v2498 = vmul.f32 %v2445, %v1839
        %v2499 = vmul.f32 %v2449, %v1844
        %v2500 = vmul.f32 %v2453, %v1849
        %v2501 = vmul.f32 %v2457, %v1854
        %v2502 = vmul.f32 %v2461, %v1859
        %v2503 = vmul.f32 %v2465, %v1864
        %v2504 = vmul.f32 %v2469, %v1869
        %v2505 = vmul.f32 %v2473, %v1874
        %v2506 = vmul.f32 %v2477, %v1879
        %v2507 = vmul.f32 %v2481, %v1884
        %v2508 = vmul.f32 %v2485, %v1889
        %v2509 = vmul.f32 %v2489, %v1894
        %v2510 = vmul.f32 %v2493, %v1899
        %2527 = vrot.lane.b32.xlu0 %v2495, 112
        %v2528 = vpop.permute.xlu0 %2527
        %2529 = vrot.lane.b32.xlu0 %v2496, 112
        %v2530 = vpop.permute.xlu0 %2529
        %2531 = vrot.lane.b32.xlu0 %v2497, 112
        %v2532 = vpop.permute.xlu0 %2531
        %2533 = vrot.lane.b32.xlu0 %v2498, 112
        %v2534 = vpop.permute.xlu0 %2533
        %2535 = vrot.lane.b32.xlu0 %v2499, 112
        %v2536 = vpop.permute.xlu0 %2535
        %2537 = vrot.lane.b32.xlu0 %v2500, 112
        %v2538 = vpop.permute.xlu0 %2537
        %2539 = vrot.lane.b32.xlu0 %v2501, 112
        %v2540 = vpop.permute.xlu0 %2539
        %2541 = vrot.lane.b32.xlu0 %v2502, 112
        %v2542 = vpop.permute.xlu0 %2541
        %2543 = vrot.lane.b32.xlu0 %v2503, 112
        %v2544 = vpop.permute.xlu0 %2543
        %2545 = vrot.lane.b32.xlu0 %v2504, 112
        %v2546 = vpop.permute.xlu0 %2545
        %2547 = vrot.lane.b32.xlu0 %v2505, 112
        %v2548 = vpop.permute.xlu0 %2547
        %2549 = vrot.lane.b32.xlu0 %v2506, 112
        %v2550 = vpop.permute.xlu0 %2549
        %2551 = vrot.lane.b32.xlu0 %v2507, 112
        %v2552 = vpop.permute.xlu0 %2551
        %2553 = vrot.lane.b32.xlu0 %v2508, 112
        %v2554 = vpop.permute.xlu0 %2553
        %2555 = vrot.lane.b32.xlu0 %v2509, 112
        %v2556 = vpop.permute.xlu0 %2555
        %2557 = vrot.lane.b32.xlu0 %v2510, 112
        %v2558 = vpop.permute.xlu0 %2557
        %v2575 = vadd.f32 %v2415, %v2528
        %v2576 = vadd.f32 %v2416, %v2530
        %v2577 = vadd.f32 %v2417, %v2532
        %v2578 = vadd.f32 %v2418, %v2534
        %v2579 = vadd.f32 %v2419, %v2536
        %v2580 = vadd.f32 %v2420, %v2538
        %v2581 = vadd.f32 %v2421, %v2540
        %v2582 = vadd.f32 %v2422, %v2542
        %v2583 = vadd.f32 %v2423, %v2544
        %v2584 = vadd.f32 %v2424, %v2546
        %v2585 = vadd.f32 %v2425, %v2548
        %v2586 = vadd.f32 %v2426, %v2550
        %v2587 = vadd.f32 %v2427, %v2552
        %v2588 = vadd.f32 %v2428, %v2554
        %v2589 = vadd.f32 %v2429, %v2556
        %v2590 = vadd.f32 %v2430, %v2558
        %2591 = vset.pattern.permute.xlu0 5
        %2592 = vperm.xlu0 %2591, %v1902
        %v2593 = vpop.permute.xlu0 %2592
        %2595 = vset.pattern.permute.xlu0 5
        %2596 = vperm.xlu0 %2595, %v1903
        %v2597 = vpop.permute.xlu0 %2596
        %2599 = vset.pattern.permute.xlu0 5
        %2600 = vperm.xlu0 %2599, %v1904
        %v2601 = vpop.permute.xlu0 %2600
        %2603 = vset.pattern.permute.xlu0 5
        %2604 = vperm.xlu0 %2603, %v1905
        %v2605 = vpop.permute.xlu0 %2604
        %2607 = vset.pattern.permute.xlu0 5
        %2608 = vperm.xlu0 %2607, %v1906
        %v2609 = vpop.permute.xlu0 %2608
        %2611 = vset.pattern.permute.xlu0 5
        %2612 = vperm.xlu0 %2611, %v1907
        %v2613 = vpop.permute.xlu0 %2612
        %2615 = vset.pattern.permute.xlu0 5
        %2616 = vperm.xlu0 %2615, %v1908
        %v2617 = vpop.permute.xlu0 %2616
        %2619 = vset.pattern.permute.xlu0 5
        %2620 = vperm.xlu0 %2619, %v1909
        %v2621 = vpop.permute.xlu0 %2620
        %2623 = vset.pattern.permute.xlu0 5
        %2624 = vperm.xlu0 %2623, %v1910
        %v2625 = vpop.permute.xlu0 %2624
        %2627 = vset.pattern.permute.xlu0 5
        %2628 = vperm.xlu0 %2627, %v1911
        %v2629 = vpop.permute.xlu0 %2628
        %2631 = vset.pattern.permute.xlu0 5
        %2632 = vperm.xlu0 %2631, %v1912
        %v2633 = vpop.permute.xlu0 %2632
        %2635 = vset.pattern.permute.xlu0 5
        %2636 = vperm.xlu0 %2635, %v1913
        %v2637 = vpop.permute.xlu0 %2636
        %2639 = vset.pattern.permute.xlu0 5
        %2640 = vperm.xlu0 %2639, %v1914
        %v2641 = vpop.permute.xlu0 %2640
        %2643 = vset.pattern.permute.xlu0 5
        %2644 = vperm.xlu0 %2643, %v1915
        %v2645 = vpop.permute.xlu0 %2644
        %2647 = vset.pattern.permute.xlu0 5
        %2648 = vperm.xlu0 %2647, %v1916
        %v2649 = vpop.permute.xlu0 %2648
        %2651 = vset.pattern.permute.xlu0 5
        %2652 = vperm.xlu0 %2651, %v1917
        %v2653 = vpop.permute.xlu0 %2652
        %v2655 = vmul.f32 %v2593, %v1824
        %v2656 = vmul.f32 %v2597, %v1829
        %v2657 = vmul.f32 %v2601, %v1834
        %v2658 = vmul.f32 %v2605, %v1839
        %v2659 = vmul.f32 %v2609, %v1844
        %v2660 = vmul.f32 %v2613, %v1849
        %v2661 = vmul.f32 %v2617, %v1854
        %v2662 = vmul.f32 %v2621, %v1859
        %v2663 = vmul.f32 %v2625, %v1864
        %v2664 = vmul.f32 %v2629, %v1869
        %v2665 = vmul.f32 %v2633, %v1874
        %v2666 = vmul.f32 %v2637, %v1879
        %v2667 = vmul.f32 %v2641, %v1884
        %v2668 = vmul.f32 %v2645, %v1889
        %v2669 = vmul.f32 %v2649, %v1894
        %v2670 = vmul.f32 %v2653, %v1899
        %2687 = vrot.lane.b32.xlu0 %v2655, 96
        %v2688 = vpop.permute.xlu0 %2687
        %2689 = vrot.lane.b32.xlu0 %v2656, 96
        %v2690 = vpop.permute.xlu0 %2689
        %2691 = vrot.lane.b32.xlu0 %v2657, 96
        %v2692 = vpop.permute.xlu0 %2691
        %2693 = vrot.lane.b32.xlu0 %v2658, 96
        %v2694 = vpop.permute.xlu0 %2693
        %2695 = vrot.lane.b32.xlu0 %v2659, 96
        %v2696 = vpop.permute.xlu0 %2695
        %2697 = vrot.lane.b32.xlu0 %v2660, 96
        %v2698 = vpop.permute.xlu0 %2697
        %2699 = vrot.lane.b32.xlu0 %v2661, 96
        %v2700 = vpop.permute.xlu0 %2699
        %2701 = vrot.lane.b32.xlu0 %v2662, 96
        %v2702 = vpop.permute.xlu0 %2701
        %2703 = vrot.lane.b32.xlu0 %v2663, 96
        %v2704 = vpop.permute.xlu0 %2703
        %2705 = vrot.lane.b32.xlu0 %v2664, 96
        %v2706 = vpop.permute.xlu0 %2705
        %2707 = vrot.lane.b32.xlu0 %v2665, 96
        %v2708 = vpop.permute.xlu0 %2707
        %2709 = vrot.lane.b32.xlu0 %v2666, 96
        %v2710 = vpop.permute.xlu0 %2709
        %2711 = vrot.lane.b32.xlu0 %v2667, 96
        %v2712 = vpop.permute.xlu0 %2711
        %2713 = vrot.lane.b32.xlu0 %v2668, 96
        %v2714 = vpop.permute.xlu0 %2713
        %2715 = vrot.lane.b32.xlu0 %v2669, 96
        %v2716 = vpop.permute.xlu0 %2715
        %2717 = vrot.lane.b32.xlu0 %v2670, 96
        %v2718 = vpop.permute.xlu0 %2717
        %v2735 = vadd.f32 %v2575, %v2688
        %v2736 = vadd.f32 %v2576, %v2690
        %v2737 = vadd.f32 %v2577, %v2692
        %v2738 = vadd.f32 %v2578, %v2694
        %v2739 = vadd.f32 %v2579, %v2696
        %v2740 = vadd.f32 %v2580, %v2698
        %v2741 = vadd.f32 %v2581, %v2700
        %v2742 = vadd.f32 %v2582, %v2702
        %v2743 = vadd.f32 %v2583, %v2704
        %v2744 = vadd.f32 %v2584, %v2706
        %v2745 = vadd.f32 %v2585, %v2708
        %v2746 = vadd.f32 %v2586, %v2710
        %v2747 = vadd.f32 %v2587, %v2712
        %v2748 = vadd.f32 %v2588, %v2714
        %v2749 = vadd.f32 %v2589, %v2716
        %v2750 = vadd.f32 %v2590, %v2718
        %2767 = vrot.lane.b32.xlu0 %v2735, 16
        %v2768 = vpop.permute.xlu0 %2767
        %2769 = vrot.lane.b32.xlu0 %v2736, 16
        %v2770 = vpop.permute.xlu0 %2769
        %2771 = vrot.lane.b32.xlu0 %v2737, 16
        %v2772 = vpop.permute.xlu0 %2771
        %2773 = vrot.lane.b32.xlu0 %v2738, 16
        %v2774 = vpop.permute.xlu0 %2773
        %2775 = vrot.lane.b32.xlu0 %v2739, 16
        %v2776 = vpop.permute.xlu0 %2775
        %2777 = vrot.lane.b32.xlu0 %v2740, 16
        %v2778 = vpop.permute.xlu0 %2777
        %2779 = vrot.lane.b32.xlu0 %v2741, 16
        %v2780 = vpop.permute.xlu0 %2779
        %2781 = vrot.lane.b32.xlu0 %v2742, 16
        %v2782 = vpop.permute.xlu0 %2781
        %2783 = vrot.lane.b32.xlu0 %v2743, 16
        %v2784 = vpop.permute.xlu0 %2783
        %2785 = vrot.lane.b32.xlu0 %v2744, 16
        %v2786 = vpop.permute.xlu0 %2785
        %2787 = vrot.lane.b32.xlu0 %v2745, 16
        %v2788 = vpop.permute.xlu0 %2787
        %2789 = vrot.lane.b32.xlu0 %v2746, 16
        %v2790 = vpop.permute.xlu0 %2789
        %2791 = vrot.lane.b32.xlu0 %v2747, 16
        %v2792 = vpop.permute.xlu0 %2791
        %2793 = vrot.lane.b32.xlu0 %v2748, 16
        %v2794 = vpop.permute.xlu0 %2793
        %2795 = vrot.lane.b32.xlu0 %v2749, 16
        %v2796 = vpop.permute.xlu0 %2795
        %2797 = vrot.lane.b32.xlu0 %v2750, 16
        %v2798 = vpop.permute.xlu0 %2797
        %vm2815 = vcmask 261248
        %2816 = vst.msk [vmem:[#allocation2] sm:$0xff] %vm2815, %v2768
        %2817 = vst.msk [vmem:[#allocation2 + $0x10] sm:$0xff] %vm2815, %v2770
        %2818 = vst.msk [vmem:[#allocation2 + $0x20] sm:$0xff] %vm2815, %v2772
        %2819 = vst.msk [vmem:[#allocation2 + $0x30] sm:$0xff] %vm2815, %v2774
        %2820 = vst.msk [vmem:[#allocation2 + $0x40] sm:$0xff] %vm2815, %v2776
        %2821 = vst.msk [vmem:[#allocation2 + $0x50] sm:$0xff] %vm2815, %v2778
        %2822 = vst.msk [vmem:[#allocation2 + $0x60] sm:$0xff] %vm2815, %v2780
        %2823 = vst.msk [vmem:[#allocation2 + $0x70] sm:$0xff] %vm2815, %v2782
        %2824 = vst.msk [vmem:[#allocation2 + $0x80] sm:$0xff] %vm2815, %v2784
        %2825 = vst.msk [vmem:[#allocation2 + $0x90] sm:$0xff] %vm2815, %v2786
        %2826 = vst.msk [vmem:[#allocation2 + $0xa0] sm:$0xff] %vm2815, %v2788
        %2827 = vst.msk [vmem:[#allocation2 + $0xb0] sm:$0xff] %vm2815, %v2790
        %2828 = vst.msk [vmem:[#allocation2 + $0xc0] sm:$0xff] %vm2815, %v2792
        %2829 = vst.msk [vmem:[#allocation2 + $0xd0] sm:$0xff] %vm2815, %v2794
        %2830 = vst.msk [vmem:[#allocation2 + $0xe0] sm:$0xff] %vm2815, %v2796
        %2831 = vst.msk [vmem:[#allocation2 + $0xf0] sm:$0xff] %vm2815, %v2798
        %2832 = vset.pattern.permute.xlu0 6
        %2833 = vperm.xlu0 %2832, %v1902
        %v2834 = vpop.permute.xlu0 %2833
        %2836 = vset.pattern.permute.xlu0 6
        %2837 = vperm.xlu0 %2836, %v1903
        %v2838 = vpop.permute.xlu0 %2837
        %2840 = vset.pattern.permute.xlu0 6
        %2841 = vperm.xlu0 %2840, %v1904
        %v2842 = vpop.permute.xlu0 %2841
        %2844 = vset.pattern.permute.xlu0 6
        %2845 = vperm.xlu0 %2844, %v1905
        %v2846 = vpop.permute.xlu0 %2845
        %2848 = vset.pattern.permute.xlu0 6
        %2849 = vperm.xlu0 %2848, %v1906
        %v2850 = vpop.permute.xlu0 %2849
        %2852 = vset.pattern.permute.xlu0 6
        %2853 = vperm.xlu0 %2852, %v1907
        %v2854 = vpop.permute.xlu0 %2853
        %2856 = vset.pattern.permute.xlu0 6
        %2857 = vperm.xlu0 %2856, %v1908
        %v2858 = vpop.permute.xlu0 %2857
        %2860 = vset.pattern.permute.xlu0 6
        %2861 = vperm.xlu0 %2860, %v1909
        %v2862 = vpop.permute.xlu0 %2861
        %2864 = vset.pattern.permute.xlu0 6
        %2865 = vperm.xlu0 %2864, %v1910
        %v2866 = vpop.permute.xlu0 %2865
        %2868 = vset.pattern.permute.xlu0 6
        %2869 = vperm.xlu0 %2868, %v1911
        %v2870 = vpop.permute.xlu0 %2869
        %2872 = vset.pattern.permute.xlu0 6
        %2873 = vperm.xlu0 %2872, %v1912
        %v2874 = vpop.permute.xlu0 %2873
        %2876 = vset.pattern.permute.xlu0 6
        %2877 = vperm.xlu0 %2876, %v1913
        %v2878 = vpop.permute.xlu0 %2877
        %2880 = vset.pattern.permute.xlu0 6
        %2881 = vperm.xlu0 %2880, %v1914
        %v2882 = vpop.permute.xlu0 %2881
        %2884 = vset.pattern.permute.xlu0 6
        %2885 = vperm.xlu0 %2884, %v1915
        %v2886 = vpop.permute.xlu0 %2885
        %2888 = vset.pattern.permute.xlu0 6
        %2889 = vperm.xlu0 %2888, %v1916
        %v2890 = vpop.permute.xlu0 %2889
        %2892 = vset.pattern.permute.xlu0 6
        %2893 = vperm.xlu0 %2892, %v1917
        %v2894 = vpop.permute.xlu0 %2893
        %v2896 = vmul.f32 %v2834, %v1824
        %v2897 = vmul.f32 %v2838, %v1829
        %v2898 = vmul.f32 %v2842, %v1834
        %v2899 = vmul.f32 %v2846, %v1839
        %v2900 = vmul.f32 %v2850, %v1844
        %v2901 = vmul.f32 %v2854, %v1849
        %v2902 = vmul.f32 %v2858, %v1854
        %v2903 = vmul.f32 %v2862, %v1859
        %v2904 = vmul.f32 %v2866, %v1864
        %v2905 = vmul.f32 %v2870, %v1869
        %v2906 = vmul.f32 %v2874, %v1874
        %v2907 = vmul.f32 %v2878, %v1879
        %v2908 = vmul.f32 %v2882, %v1884
        %v2909 = vmul.f32 %v2886, %v1889
        %v2910 = vmul.f32 %v2890, %v1894
        %v2911 = vmul.f32 %v2894, %v1899
        %2912 = vset.pattern.permute.xlu0 7
        %2913 = vperm.xlu0 %2912, %v1902
        %v2914 = vpop.permute.xlu0 %2913
        %2916 = vset.pattern.permute.xlu0 7
        %2917 = vperm.xlu0 %2916, %v1903
        %v2918 = vpop.permute.xlu0 %2917
        %2920 = vset.pattern.permute.xlu0 7
        %2921 = vperm.xlu0 %2920, %v1904
        %v2922 = vpop.permute.xlu0 %2921
        %2924 = vset.pattern.permute.xlu0 7
        %2925 = vperm.xlu0 %2924, %v1905
        %v2926 = vpop.permute.xlu0 %2925
        %2928 = vset.pattern.permute.xlu0 7
        %2929 = vperm.xlu0 %2928, %v1906
        %v2930 = vpop.permute.xlu0 %2929
        %2932 = vset.pattern.permute.xlu0 7
        %2933 = vperm.xlu0 %2932, %v1907
        %v2934 = vpop.permute.xlu0 %2933
        %2936 = vset.pattern.permute.xlu0 7
        %2937 = vperm.xlu0 %2936, %v1908
        %v2938 = vpop.permute.xlu0 %2937
        %2940 = vset.pattern.permute.xlu0 7
        %2941 = vperm.xlu0 %2940, %v1909
        %v2942 = vpop.permute.xlu0 %2941
        %2944 = vset.pattern.permute.xlu0 7
        %2945 = vperm.xlu0 %2944, %v1910
        %v2946 = vpop.permute.xlu0 %2945
        %2948 = vset.pattern.permute.xlu0 7
        %2949 = vperm.xlu0 %2948, %v1911
        %v2950 = vpop.permute.xlu0 %2949
        %2952 = vset.pattern.permute.xlu0 7
        %2953 = vperm.xlu0 %2952, %v1912
        %v2954 = vpop.permute.xlu0 %2953
        %2956 = vset.pattern.permute.xlu0 7
        %2957 = vperm.xlu0 %2956, %v1913
        %v2958 = vpop.permute.xlu0 %2957
        %2960 = vset.pattern.permute.xlu0 7
        %2961 = vperm.xlu0 %2960, %v1914
        %v2962 = vpop.permute.xlu0 %2961
        %2964 = vset.pattern.permute.xlu0 7
        %2965 = vperm.xlu0 %2964, %v1915
        %v2966 = vpop.permute.xlu0 %2965
        %2968 = vset.pattern.permute.xlu0 7
        %2969 = vperm.xlu0 %2968, %v1916
        %v2970 = vpop.permute.xlu0 %2969
        %2972 = vset.pattern.permute.xlu0 7
        %2973 = vperm.xlu0 %2972, %v1917
        %v2974 = vpop.permute.xlu0 %2973
        %v2976 = vmul.f32 %v2914, %v1824
        %v2977 = vmul.f32 %v2918, %v1829
        %v2978 = vmul.f32 %v2922, %v1834
        %v2979 = vmul.f32 %v2926, %v1839
        %v2980 = vmul.f32 %v2930, %v1844
        %v2981 = vmul.f32 %v2934, %v1849
        %v2982 = vmul.f32 %v2938, %v1854
        %v2983 = vmul.f32 %v2942, %v1859
        %v2984 = vmul.f32 %v2946, %v1864
        %v2985 = vmul.f32 %v2950, %v1869
        %v2986 = vmul.f32 %v2954, %v1874
        %v2987 = vmul.f32 %v2958, %v1879
        %v2988 = vmul.f32 %v2962, %v1884
        %v2989 = vmul.f32 %v2966, %v1889
        %v2990 = vmul.f32 %v2970, %v1894
        %v2991 = vmul.f32 %v2974, %v1899
        %3008 = vrot.lane.b32.xlu0 %v2976, 112
        %v3009 = vpop.permute.xlu0 %3008
        %3010 = vrot.lane.b32.xlu0 %v2977, 112
        %v3011 = vpop.permute.xlu0 %3010
        %3012 = vrot.lane.b32.xlu0 %v2978, 112
        %v3013 = vpop.permute.xlu0 %3012
        %3014 = vrot.lane.b32.xlu0 %v2979, 112
        %v3015 = vpop.permute.xlu0 %3014
        %3016 = vrot.lane.b32.xlu0 %v2980, 112
        %v3017 = vpop.permute.xlu0 %3016
        %3018 = vrot.lane.b32.xlu0 %v2981, 112
        %v3019 = vpop.permute.xlu0 %3018
        %3020 = vrot.lane.b32.xlu0 %v2982, 112
        %v3021 = vpop.permute.xlu0 %3020
        %3022 = vrot.lane.b32.xlu0 %v2983, 112
        %v3023 = vpop.permute.xlu0 %3022
        %3024 = vrot.lane.b32.xlu0 %v2984, 112
        %v3025 = vpop.permute.xlu0 %3024
        %3026 = vrot.lane.b32.xlu0 %v2985, 112
        %v3027 = vpop.permute.xlu0 %3026
        %3028 = vrot.lane.b32.xlu0 %v2986, 112
        %v3029 = vpop.permute.xlu0 %3028
        %3030 = vrot.lane.b32.xlu0 %v2987, 112
        %v3031 = vpop.permute.xlu0 %3030
        %3032 = vrot.lane.b32.xlu0 %v2988, 112
        %v3033 = vpop.permute.xlu0 %3032
        %3034 = vrot.lane.b32.xlu0 %v2989, 112
        %v3035 = vpop.permute.xlu0 %3034
        %3036 = vrot.lane.b32.xlu0 %v2990, 112
        %v3037 = vpop.permute.xlu0 %3036
        %3038 = vrot.lane.b32.xlu0 %v2991, 112
        %v3039 = vpop.permute.xlu0 %3038
        %v3056 = vadd.f32 %v2896, %v3009
        %v3057 = vadd.f32 %v2897, %v3011
        %v3058 = vadd.f32 %v2898, %v3013
        %v3059 = vadd.f32 %v2899, %v3015
        %v3060 = vadd.f32 %v2900, %v3017
        %v3061 = vadd.f32 %v2901, %v3019
        %v3062 = vadd.f32 %v2902, %v3021
        %v3063 = vadd.f32 %v2903, %v3023
        %v3064 = vadd.f32 %v2904, %v3025
        %v3065 = vadd.f32 %v2905, %v3027
        %v3066 = vadd.f32 %v2906, %v3029
        %v3067 = vadd.f32 %v2907, %v3031
        %v3068 = vadd.f32 %v2908, %v3033
        %v3069 = vadd.f32 %v2909, %v3035
        %v3070 = vadd.f32 %v2910, %v3037
        %v3071 = vadd.f32 %v2911, %v3039
        %3072 = vset.pattern.permute.xlu0 8
        %3073 = vperm.xlu0 %3072, %v1902
        %v3074 = vpop.permute.xlu0 %3073
        %3076 = vset.pattern.permute.xlu0 8
        %3077 = vperm.xlu0 %3076, %v1903
        %v3078 = vpop.permute.xlu0 %3077
        %3080 = vset.pattern.permute.xlu0 8
        %3081 = vperm.xlu0 %3080, %v1904
        %v3082 = vpop.permute.xlu0 %3081
        %3084 = vset.pattern.permute.xlu0 8
        %3085 = vperm.xlu0 %3084, %v1905
        %v3086 = vpop.permute.xlu0 %3085
        %3088 = vset.pattern.permute.xlu0 8
        %3089 = vperm.xlu0 %3088, %v1906
        %v3090 = vpop.permute.xlu0 %3089
        %3092 = vset.pattern.permute.xlu0 8
        %3093 = vperm.xlu0 %3092, %v1907
        %v3094 = vpop.permute.xlu0 %3093
        %3096 = vset.pattern.permute.xlu0 8
        %3097 = vperm.xlu0 %3096, %v1908
        %v3098 = vpop.permute.xlu0 %3097
        %3100 = vset.pattern.permute.xlu0 8
        %3101 = vperm.xlu0 %3100, %v1909
        %v3102 = vpop.permute.xlu0 %3101
        %3104 = vset.pattern.permute.xlu0 8
        %3105 = vperm.xlu0 %3104, %v1910
        %v3106 = vpop.permute.xlu0 %3105
        %3108 = vset.pattern.permute.xlu0 8
        %3109 = vperm.xlu0 %3108, %v1911
        %v3110 = vpop.permute.xlu0 %3109
        %3112 = vset.pattern.permute.xlu0 8
        %3113 = vperm.xlu0 %3112, %v1912
        %v3114 = vpop.permute.xlu0 %3113
        %3116 = vset.pattern.permute.xlu0 8
        %3117 = vperm.xlu0 %3116, %v1913
        %v3118 = vpop.permute.xlu0 %3117
        %3120 = vset.pattern.permute.xlu0 8
        %3121 = vperm.xlu0 %3120, %v1914
        %v3122 = vpop.permute.xlu0 %3121
        %3124 = vset.pattern.permute.xlu0 8
        %3125 = vperm.xlu0 %3124, %v1915
        %v3126 = vpop.permute.xlu0 %3125
        %3128 = vset.pattern.permute.xlu0 8
        %3129 = vperm.xlu0 %3128, %v1916
        %v3130 = vpop.permute.xlu0 %3129
        %3132 = vset.pattern.permute.xlu0 8
        %3133 = vperm.xlu0 %3132, %v1917
        %v3134 = vpop.permute.xlu0 %3133
        %v3136 = vmul.f32 %v3074, %v1824
        %v3137 = vmul.f32 %v3078, %v1829
        %v3138 = vmul.f32 %v3082, %v1834
        %v3139 = vmul.f32 %v3086, %v1839
        %v3140 = vmul.f32 %v3090, %v1844
        %v3141 = vmul.f32 %v3094, %v1849
        %v3142 = vmul.f32 %v3098, %v1854
        %v3143 = vmul.f32 %v3102, %v1859
        %v3144 = vmul.f32 %v3106, %v1864
        %v3145 = vmul.f32 %v3110, %v1869
        %v3146 = vmul.f32 %v3114, %v1874
        %v3147 = vmul.f32 %v3118, %v1879
        %v3148 = vmul.f32 %v3122, %v1884
        %v3149 = vmul.f32 %v3126, %v1889
        %v3150 = vmul.f32 %v3130, %v1894
        %v3151 = vmul.f32 %v3134, %v1899
        %3168 = vrot.lane.b32.xlu0 %v3136, 96
        %v3169 = vpop.permute.xlu0 %3168
        %3170 = vrot.lane.b32.xlu0 %v3137, 96
        %v3171 = vpop.permute.xlu0 %3170
        %3172 = vrot.lane.b32.xlu0 %v3138, 96
        %v3173 = vpop.permute.xlu0 %3172
        %3174 = vrot.lane.b32.xlu0 %v3139, 96
        %v3175 = vpop.permute.xlu0 %3174
        %3176 = vrot.lane.b32.xlu0 %v3140, 96
        %v3177 = vpop.permute.xlu0 %3176
        %3178 = vrot.lane.b32.xlu0 %v3141, 96
        %v3179 = vpop.permute.xlu0 %3178
        %3180 = vrot.lane.b32.xlu0 %v3142, 96
        %v3181 = vpop.permute.xlu0 %3180
        %3182 = vrot.lane.b32.xlu0 %v3143, 96
        %v3183 = vpop.permute.xlu0 %3182
        %3184 = vrot.lane.b32.xlu0 %v3144, 96
        %v3185 = vpop.permute.xlu0 %3184
        %3186 = vrot.lane.b32.xlu0 %v3145, 96
        %v3187 = vpop.permute.xlu0 %3186
        %3188 = vrot.lane.b32.xlu0 %v3146, 96
        %v3189 = vpop.permute.xlu0 %3188
        %3190 = vrot.lane.b32.xlu0 %v3147, 96
        %v3191 = vpop.permute.xlu0 %3190
        %3192 = vrot.lane.b32.xlu0 %v3148, 96
        %v3193 = vpop.permute.xlu0 %3192
        %3194 = vrot.lane.b32.xlu0 %v3149, 96
        %v3195 = vpop.permute.xlu0 %3194
        %3196 = vrot.lane.b32.xlu0 %v3150, 96
        %v3197 = vpop.permute.xlu0 %3196
        %3198 = vrot.lane.b32.xlu0 %v3151, 96
        %v3199 = vpop.permute.xlu0 %3198
        %v3216 = vadd.f32 %v3056, %v3169
        %v3217 = vadd.f32 %v3057, %v3171
        %v3218 = vadd.f32 %v3058, %v3173
        %v3219 = vadd.f32 %v3059, %v3175
        %v3220 = vadd.f32 %v3060, %v3177
        %v3221 = vadd.f32 %v3061, %v3179
        %v3222 = vadd.f32 %v3062, %v3181
        %v3223 = vadd.f32 %v3063, %v3183
        %v3224 = vadd.f32 %v3064, %v3185
        %v3225 = vadd.f32 %v3065, %v3187
        %v3226 = vadd.f32 %v3066, %v3189
        %v3227 = vadd.f32 %v3067, %v3191
        %v3228 = vadd.f32 %v3068, %v3193
        %v3229 = vadd.f32 %v3069, %v3195
        %v3230 = vadd.f32 %v3070, %v3197
        %v3231 = vadd.f32 %v3071, %v3199
        %3248 = vrot.lane.b32.xlu0 %v3216, 32
        %v3249 = vpop.permute.xlu0 %3248
        %3250 = vrot.lane.b32.xlu0 %v3217, 32
        %v3251 = vpop.permute.xlu0 %3250
        %3252 = vrot.lane.b32.xlu0 %v3218, 32
        %v3253 = vpop.permute.xlu0 %3252
        %3254 = vrot.lane.b32.xlu0 %v3219, 32
        %v3255 = vpop.permute.xlu0 %3254
        %3256 = vrot.lane.b32.xlu0 %v3220, 32
        %v3257 = vpop.permute.xlu0 %3256
        %3258 = vrot.lane.b32.xlu0 %v3221, 32
        %v3259 = vpop.permute.xlu0 %3258
        %3260 = vrot.lane.b32.xlu0 %v3222, 32
        %v3261 = vpop.permute.xlu0 %3260
        %3262 = vrot.lane.b32.xlu0 %v3223, 32
        %v3263 = vpop.permute.xlu0 %3262
        %3264 = vrot.lane.b32.xlu0 %v3224, 32
        %v3265 = vpop.permute.xlu0 %3264
        %3266 = vrot.lane.b32.xlu0 %v3225, 32
        %v3267 = vpop.permute.xlu0 %3266
        %3268 = vrot.lane.b32.xlu0 %v3226, 32
        %v3269 = vpop.permute.xlu0 %3268
        %3270 = vrot.lane.b32.xlu0 %v3227, 32
        %v3271 = vpop.permute.xlu0 %3270
        %3272 = vrot.lane.b32.xlu0 %v3228, 32
        %v3273 = vpop.permute.xlu0 %3272
        %3274 = vrot.lane.b32.xlu0 %v3229, 32
        %v3275 = vpop.permute.xlu0 %3274
        %3276 = vrot.lane.b32.xlu0 %v3230, 32
        %v3277 = vpop.permute.xlu0 %3276
        %3278 = vrot.lane.b32.xlu0 %v3231, 32
        %v3279 = vpop.permute.xlu0 %3278
        %vm3296 = vcmask 392448
        %3297 = vst.msk [vmem:[#allocation2] sm:$0xff] %vm3296, %v3249
        %3298 = vst.msk [vmem:[#allocation2 + $0x10] sm:$0xff] %vm3296, %v3251
        %3299 = vst.msk [vmem:[#allocation2 + $0x20] sm:$0xff] %vm3296, %v3253
        %3300 = vst.msk [vmem:[#allocation2 + $0x30] sm:$0xff] %vm3296, %v3255
        %3301 = vst.msk [vmem:[#allocation2 + $0x40] sm:$0xff] %vm3296, %v3257
        %3302 = vst.msk [vmem:[#allocation2 + $0x50] sm:$0xff] %vm3296, %v3259
        %3303 = vst.msk [vmem:[#allocation2 + $0x60] sm:$0xff] %vm3296, %v3261
        %3304 = vst.msk [vmem:[#allocation2 + $0x70] sm:$0xff] %vm3296, %v3263
        %3305 = vst.msk [vmem:[#allocation2 + $0x80] sm:$0xff] %vm3296, %v3265
        %3306 = vst.msk [vmem:[#allocation2 + $0x90] sm:$0xff] %vm3296, %v3267
        %3307 = vst.msk [vmem:[#allocation2 + $0xa0] sm:$0xff] %vm3296, %v3269
        %3308 = vst.msk [vmem:[#allocation2 + $0xb0] sm:$0xff] %vm3296, %v3271
        %3309 = vst.msk [vmem:[#allocation2 + $0xc0] sm:$0xff] %vm3296, %v3273
        %3310 = vst.msk [vmem:[#allocation2 + $0xd0] sm:$0xff] %vm3296, %v3275
        %3311 = vst.msk [vmem:[#allocation2 + $0xe0] sm:$0xff] %vm3296, %v3277
        %3312 = vst.msk [vmem:[#allocation2 + $0xf0] sm:$0xff] %vm3296, %v3279
        %3313 = vset.pattern.permute.xlu0 9
        %3314 = vperm.xlu0 %3313, %v1902
        %v3315 = vpop.permute.xlu0 %3314
        %3317 = vset.pattern.permute.xlu0 9
        %3318 = vperm.xlu0 %3317, %v1903
        %v3319 = vpop.permute.xlu0 %3318
        %3321 = vset.pattern.permute.xlu0 9
        %3322 = vperm.xlu0 %3321, %v1904
        %v3323 = vpop.permute.xlu0 %3322
        %3325 = vset.pattern.permute.xlu0 9
        %3326 = vperm.xlu0 %3325, %v1905
        %v3327 = vpop.permute.xlu0 %3326
        %3329 = vset.pattern.permute.xlu0 9
        %3330 = vperm.xlu0 %3329, %v1906
        %v3331 = vpop.permute.xlu0 %3330
        %3333 = vset.pattern.permute.xlu0 9
        %3334 = vperm.xlu0 %3333, %v1907
        %v3335 = vpop.permute.xlu0 %3334
        %3337 = vset.pattern.permute.xlu0 9
        %3338 = vperm.xlu0 %3337, %v1908
        %v3339 = vpop.permute.xlu0 %3338
        %3341 = vset.pattern.permute.xlu0 9
        %3342 = vperm.xlu0 %3341, %v1909
        %v3343 = vpop.permute.xlu0 %3342
        %3345 = vset.pattern.permute.xlu0 9
        %3346 = vperm.xlu0 %3345, %v1910
        %v3347 = vpop.permute.xlu0 %3346
        %3349 = vset.pattern.permute.xlu0 9
        %3350 = vperm.xlu0 %3349, %v1911
        %v3351 = vpop.permute.xlu0 %3350
        %3353 = vset.pattern.permute.xlu0 9
        %3354 = vperm.xlu0 %3353, %v1912
        %v3355 = vpop.permute.xlu0 %3354
        %3357 = vset.pattern.permute.xlu0 9
        %3358 = vperm.xlu0 %3357, %v1913
        %v3359 = vpop.permute.xlu0 %3358
        %3361 = vset.pattern.permute.xlu0 9
        %3362 = vperm.xlu0 %3361, %v1914
        %v3363 = vpop.permute.xlu0 %3362
        %3365 = vset.pattern.permute.xlu0 9
        %3366 = vperm.xlu0 %3365, %v1915
        %v3367 = vpop.permute.xlu0 %3366
        %3369 = vset.pattern.permute.xlu0 9
        %3370 = vperm.xlu0 %3369, %v1916
        %v3371 = vpop.permute.xlu0 %3370
        %3373 = vset.pattern.permute.xlu0 9
        %3374 = vperm.xlu0 %3373, %v1917
        %v3375 = vpop.permute.xlu0 %3374
        %v3377 = vmul.f32 %v3315, %v1824
        %v3378 = vmul.f32 %v3319, %v1829
        %v3379 = vmul.f32 %v3323, %v1834
        %v3380 = vmul.f32 %v3327, %v1839
        %v3381 = vmul.f32 %v3331, %v1844
        %v3382 = vmul.f32 %v3335, %v1849
        %v3383 = vmul.f32 %v3339, %v1854
        %v3384 = vmul.f32 %v3343, %v1859
        %v3385 = vmul.f32 %v3347, %v1864
        %v3386 = vmul.f32 %v3351, %v1869
        %v3387 = vmul.f32 %v3355, %v1874
        %v3388 = vmul.f32 %v3359, %v1879
        %v3389 = vmul.f32 %v3363, %v1884
        %v3390 = vmul.f32 %v3367, %v1889
        %v3391 = vmul.f32 %v3371, %v1894
        %v3392 = vmul.f32 %v3375, %v1899
        %3393 = vset.pattern.permute.xlu0 10
        %3394 = vperm.xlu0 %3393, %v1902
        %v3395 = vpop.permute.xlu0 %3394
        %3397 = vset.pattern.permute.xlu0 10
        %3398 = vperm.xlu0 %3397, %v1903
        %v3399 = vpop.permute.xlu0 %3398
        %3401 = vset.pattern.permute.xlu0 10
        %3402 = vperm.xlu0 %3401, %v1904
        %v3403 = vpop.permute.xlu0 %3402
        %3405 = vset.pattern.permute.xlu0 10
        %3406 = vperm.xlu0 %3405, %v1905
        %v3407 = vpop.permute.xlu0 %3406
        %3409 = vset.pattern.permute.xlu0 10
        %3410 = vperm.xlu0 %3409, %v1906
        %v3411 = vpop.permute.xlu0 %3410
        %3413 = vset.pattern.permute.xlu0 10
        %3414 = vperm.xlu0 %3413, %v1907
        %v3415 = vpop.permute.xlu0 %3414
        %3417 = vset.pattern.permute.xlu0 10
        %3418 = vperm.xlu0 %3417, %v1908
        %v3419 = vpop.permute.xlu0 %3418
        %3421 = vset.pattern.permute.xlu0 10
        %3422 = vperm.xlu0 %3421, %v1909
        %v3423 = vpop.permute.xlu0 %3422
        %3425 = vset.pattern.permute.xlu0 10
        %3426 = vperm.xlu0 %3425, %v1910
        %v3427 = vpop.permute.xlu0 %3426
        %3429 = vset.pattern.permute.xlu0 10
        %3430 = vperm.xlu0 %3429, %v1911
        %v3431 = vpop.permute.xlu0 %3430
        %3433 = vset.pattern.permute.xlu0 10
        %3434 = vperm.xlu0 %3433, %v1912
        %v3435 = vpop.permute.xlu0 %3434
        %3437 = vset.pattern.permute.xlu0 10
        %3438 = vperm.xlu0 %3437, %v1913
        %v3439 = vpop.permute.xlu0 %3438
        %3441 = vset.pattern.permute.xlu0 10
        %3442 = vperm.xlu0 %3441, %v1914
        %v3443 = vpop.permute.xlu0 %3442
        %3445 = vset.pattern.permute.xlu0 10
        %3446 = vperm.xlu0 %3445, %v1915
        %v3447 = vpop.permute.xlu0 %3446
        %3449 = vset.pattern.permute.xlu0 10
        %3450 = vperm.xlu0 %3449, %v1916
        %v3451 = vpop.permute.xlu0 %3450
        %3453 = vset.pattern.permute.xlu0 10
        %3454 = vperm.xlu0 %3453, %v1917
        %v3455 = vpop.permute.xlu0 %3454
        %v3457 = vmul.f32 %v3395, %v1824
        %v3458 = vmul.f32 %v3399, %v1829
        %v3459 = vmul.f32 %v3403, %v1834
        %v3460 = vmul.f32 %v3407, %v1839
        %v3461 = vmul.f32 %v3411, %v1844
        %v3462 = vmul.f32 %v3415, %v1849
        %v3463 = vmul.f32 %v3419, %v1854
        %v3464 = vmul.f32 %v3423, %v1859
        %v3465 = vmul.f32 %v3427, %v1864
        %v3466 = vmul.f32 %v3431, %v1869
        %v3467 = vmul.f32 %v3435, %v1874
        %v3468 = vmul.f32 %v3439, %v1879
        %v3469 = vmul.f32 %v3443, %v1884
        %v3470 = vmul.f32 %v3447, %v1889
        %v3471 = vmul.f32 %v3451, %v1894
        %v3472 = vmul.f32 %v3455, %v1899
        %3489 = vrot.lane.b32.xlu0 %v3457, 112
        %v3490 = vpop.permute.xlu0 %3489
        %3491 = vrot.lane.b32.xlu0 %v3458, 112
        %v3492 = vpop.permute.xlu0 %3491
        %3493 = vrot.lane.b32.xlu0 %v3459, 112
        %v3494 = vpop.permute.xlu0 %3493
        %3495 = vrot.lane.b32.xlu0 %v3460, 112
        %v3496 = vpop.permute.xlu0 %3495
        %3497 = vrot.lane.b32.xlu0 %v3461, 112
        %v3498 = vpop.permute.xlu0 %3497
        %3499 = vrot.lane.b32.xlu0 %v3462, 112
        %v3500 = vpop.permute.xlu0 %3499
        %3501 = vrot.lane.b32.xlu0 %v3463, 112
        %v3502 = vpop.permute.xlu0 %3501
        %3503 = vrot.lane.b32.xlu0 %v3464, 112
        %v3504 = vpop.permute.xlu0 %3503
        %3505 = vrot.lane.b32.xlu0 %v3465, 112
        %v3506 = vpop.permute.xlu0 %3505
        %3507 = vrot.lane.b32.xlu0 %v3466, 112
        %v3508 = vpop.permute.xlu0 %3507
        %3509 = vrot.lane.b32.xlu0 %v3467, 112
        %v3510 = vpop.permute.xlu0 %3509
        %3511 = vrot.lane.b32.xlu0 %v3468, 112
        %v3512 = vpop.permute.xlu0 %3511
        %3513 = vrot.lane.b32.xlu0 %v3469, 112
        %v3514 = vpop.permute.xlu0 %3513
        %3515 = vrot.lane.b32.xlu0 %v3470, 112
        %v3516 = vpop.permute.xlu0 %3515
        %3517 = vrot.lane.b32.xlu0 %v3471, 112
        %v3518 = vpop.permute.xlu0 %3517
        %3519 = vrot.lane.b32.xlu0 %v3472, 112
        %v3520 = vpop.permute.xlu0 %3519
        %v3537 = vadd.f32 %v3377, %v3490
        %v3538 = vadd.f32 %v3378, %v3492
        %v3539 = vadd.f32 %v3379, %v3494
        %v3540 = vadd.f32 %v3380, %v3496
        %v3541 = vadd.f32 %v3381, %v3498
        %v3542 = vadd.f32 %v3382, %v3500
        %v3543 = vadd.f32 %v3383, %v3502
        %v3544 = vadd.f32 %v3384, %v3504
        %v3545 = vadd.f32 %v3385, %v3506
        %v3546 = vadd.f32 %v3386, %v3508
        %v3547 = vadd.f32 %v3387, %v3510
        %v3548 = vadd.f32 %v3388, %v3512
        %v3549 = vadd.f32 %v3389, %v3514
        %v3550 = vadd.f32 %v3390, %v3516
        %v3551 = vadd.f32 %v3391, %v3518
        %v3552 = vadd.f32 %v3392, %v3520
        %3553 = vset.pattern.permute.xlu0 11
        %3554 = vperm.xlu0 %3553, %v1902
        %v3555 = vpop.permute.xlu0 %3554
        %3557 = vset.pattern.permute.xlu0 11
        %3558 = vperm.xlu0 %3557, %v1903
        %v3559 = vpop.permute.xlu0 %3558
        %3561 = vset.pattern.permute.xlu0 11
        %3562 = vperm.xlu0 %3561, %v1904
        %v3563 = vpop.permute.xlu0 %3562
        %3565 = vset.pattern.permute.xlu0 11
        %3566 = vperm.xlu0 %3565, %v1905
        %v3567 = vpop.permute.xlu0 %3566
        %3569 = vset.pattern.permute.xlu0 11
        %3570 = vperm.xlu0 %3569, %v1906
        %v3571 = vpop.permute.xlu0 %3570
        %3573 = vset.pattern.permute.xlu0 11
        %3574 = vperm.xlu0 %3573, %v1907
        %v3575 = vpop.permute.xlu0 %3574
        %3577 = vset.pattern.permute.xlu0 11
        %3578 = vperm.xlu0 %3577, %v1908
        %v3579 = vpop.permute.xlu0 %3578
        %3581 = vset.pattern.permute.xlu0 11
        %3582 = vperm.xlu0 %3581, %v1909
        %v3583 = vpop.permute.xlu0 %3582
        %3585 = vset.pattern.permute.xlu0 11
        %3586 = vperm.xlu0 %3585, %v1910
        %v3587 = vpop.permute.xlu0 %3586
        %3589 = vset.pattern.permute.xlu0 11
        %3590 = vperm.xlu0 %3589, %v1911
        %v3591 = vpop.permute.xlu0 %3590
        %3593 = vset.pattern.permute.xlu0 11
        %3594 = vperm.xlu0 %3593, %v1912
        %v3595 = vpop.permute.xlu0 %3594
        %3597 = vset.pattern.permute.xlu0 11
        %3598 = vperm.xlu0 %3597, %v1913
        %v3599 = vpop.permute.xlu0 %3598
        %3601 = vset.pattern.permute.xlu0 11
        %3602 = vperm.xlu0 %3601, %v1914
        %v3603 = vpop.permute.xlu0 %3602
        %3605 = vset.pattern.permute.xlu0 11
        %3606 = vperm.xlu0 %3605, %v1915
        %v3607 = vpop.permute.xlu0 %3606
        %3609 = vset.pattern.permute.xlu0 11
        %3610 = vperm.xlu0 %3609, %v1916
        %v3611 = vpop.permute.xlu0 %3610
        %3613 = vset.pattern.permute.xlu0 11
        %3614 = vperm.xlu0 %3613, %v1917
        %v3615 = vpop.permute.xlu0 %3614
        %v3617 = vmul.f32 %v3555, %v1824
        %v3618 = vmul.f32 %v3559, %v1829
        %v3619 = vmul.f32 %v3563, %v1834
        %v3620 = vmul.f32 %v3567, %v1839
        %v3621 = vmul.f32 %v3571, %v1844
        %v3622 = vmul.f32 %v3575, %v1849
        %v3623 = vmul.f32 %v3579, %v1854
        %v3624 = vmul.f32 %v3583, %v1859
        %v3625 = vmul.f32 %v3587, %v1864
        %v3626 = vmul.f32 %v3591, %v1869
        %v3627 = vmul.f32 %v3595, %v1874
        %v3628 = vmul.f32 %v3599, %v1879
        %v3629 = vmul.f32 %v3603, %v1884
        %v3630 = vmul.f32 %v3607, %v1889
        %v3631 = vmul.f32 %v3611, %v1894
        %v3632 = vmul.f32 %v3615, %v1899
        %3649 = vrot.lane.b32.xlu0 %v3617, 96
        %v3650 = vpop.permute.xlu0 %3649
        %3651 = vrot.lane.b32.xlu0 %v3618, 96
        %v3652 = vpop.permute.xlu0 %3651
        %3653 = vrot.lane.b32.xlu0 %v3619, 96
        %v3654 = vpop.permute.xlu0 %3653
        %3655 = vrot.lane.b32.xlu0 %v3620, 96
        %v3656 = vpop.permute.xlu0 %3655
        %3657 = vrot.lane.b32.xlu0 %v3621, 96
        %v3658 = vpop.permute.xlu0 %3657
        %3659 = vrot.lane.b32.xlu0 %v3622, 96
        %v3660 = vpop.permute.xlu0 %3659
        %3661 = vrot.lane.b32.xlu0 %v3623, 96
        %v3662 = vpop.permute.xlu0 %3661
        %3663 = vrot.lane.b32.xlu0 %v3624, 96
        %v3664 = vpop.permute.xlu0 %3663
        %3665 = vrot.lane.b32.xlu0 %v3625, 96
        %v3666 = vpop.permute.xlu0 %3665
        %3667 = vrot.lane.b32.xlu0 %v3626, 96
        %v3668 = vpop.permute.xlu0 %3667
        %3669 = vrot.lane.b32.xlu0 %v3627, 96
        %v3670 = vpop.permute.xlu0 %3669
        %3671 = vrot.lane.b32.xlu0 %v3628, 96
        %v3672 = vpop.permute.xlu0 %3671
        %3673 = vrot.lane.b32.xlu0 %v3629, 96
        %v3674 = vpop.permute.xlu0 %3673
        %3675 = vrot.lane.b32.xlu0 %v3630, 96
        %v3676 = vpop.permute.xlu0 %3675
        %3677 = vrot.lane.b32.xlu0 %v3631, 96
        %v3678 = vpop.permute.xlu0 %3677
        %3679 = vrot.lane.b32.xlu0 %v3632, 96
        %v3680 = vpop.permute.xlu0 %3679
        %v3697 = vadd.f32 %v3537, %v3650
        %v3698 = vadd.f32 %v3538, %v3652
        %v3699 = vadd.f32 %v3539, %v3654
        %v3700 = vadd.f32 %v3540, %v3656
        %v3701 = vadd.f32 %v3541, %v3658
        %v3702 = vadd.f32 %v3542, %v3660
        %v3703 = vadd.f32 %v3543, %v3662
        %v3704 = vadd.f32 %v3544, %v3664
        %v3705 = vadd.f32 %v3545, %v3666
        %v3706 = vadd.f32 %v3546, %v3668
        %v3707 = vadd.f32 %v3547, %v3670
        %v3708 = vadd.f32 %v3548, %v3672
        %v3709 = vadd.f32 %v3549, %v3674
        %v3710 = vadd.f32 %v3550, %v3676
        %v3711 = vadd.f32 %v3551, %v3678
        %v3712 = vadd.f32 %v3552, %v3680
        %3729 = vrot.lane.b32.xlu0 %v3697, 48
        %v3730 = vpop.permute.xlu0 %3729
        %3731 = vrot.lane.b32.xlu0 %v3698, 48
        %v3732 = vpop.permute.xlu0 %3731
        %3733 = vrot.lane.b32.xlu0 %v3699, 48
        %v3734 = vpop.permute.xlu0 %3733
        %3735 = vrot.lane.b32.xlu0 %v3700, 48
        %v3736 = vpop.permute.xlu0 %3735
        %3737 = vrot.lane.b32.xlu0 %v3701, 48
        %v3738 = vpop.permute.xlu0 %3737
        %3739 = vrot.lane.b32.xlu0 %v3702, 48
        %v3740 = vpop.permute.xlu0 %3739
        %3741 = vrot.lane.b32.xlu0 %v3703, 48
        %v3742 = vpop.permute.xlu0 %3741
        %3743 = vrot.lane.b32.xlu0 %v3704, 48
        %v3744 = vpop.permute.xlu0 %3743
        %3745 = vrot.lane.b32.xlu0 %v3705, 48
        %v3746 = vpop.permute.xlu0 %3745
        %3747 = vrot.lane.b32.xlu0 %v3706, 48
        %v3748 = vpop.permute.xlu0 %3747
        %3749 = vrot.lane.b32.xlu0 %v3707, 48
        %v3750 = vpop.permute.xlu0 %3749
        %3751 = vrot.lane.b32.xlu0 %v3708, 48
        %v3752 = vpop.permute.xlu0 %3751
        %3753 = vrot.lane.b32.xlu0 %v3709, 48
        %v3754 = vpop.permute.xlu0 %3753
        %3755 = vrot.lane.b32.xlu0 %v3710, 48
        %v3756 = vpop.permute.xlu0 %3755
        %3757 = vrot.lane.b32.xlu0 %v3711, 48
        %v3758 = vpop.permute.xlu0 %3757
        %3759 = vrot.lane.b32.xlu0 %v3712, 48
        %v3760 = vpop.permute.xlu0 %3759
        %vm3777 = vcmask 523648
        %3778 = vst.msk [vmem:[#allocation2] sm:$0xff] %vm3777, %v3730
        %3779 = vst.msk [vmem:[#allocation2 + $0x10] sm:$0xff] %vm3777, %v3732
        %3780 = vst.msk [vmem:[#allocation2 + $0x20] sm:$0xff] %vm3777, %v3734
        %3781 = vst.msk [vmem:[#allocation2 + $0x30] sm:$0xff] %vm3777, %v3736
        %3782 = vst.msk [vmem:[#allocation2 + $0x40] sm:$0xff] %vm3777, %v3738
        %3783 = vst.msk [vmem:[#allocation2 + $0x50] sm:$0xff] %vm3777, %v3740
        %3784 = vst.msk [vmem:[#allocation2 + $0x60] sm:$0xff] %vm3777, %v3742
        %3785 = vst.msk [vmem:[#allocation2 + $0x70] sm:$0xff] %vm3777, %v3744
        %3786 = vst.msk [vmem:[#allocation2 + $0x80] sm:$0xff] %vm3777, %v3746
        %3787 = vst.msk [vmem:[#allocation2 + $0x90] sm:$0xff] %vm3777, %v3748
        %3788 = vst.msk [vmem:[#allocation2 + $0xa0] sm:$0xff] %vm3777, %v3750
        %3789 = vst.msk [vmem:[#allocation2 + $0xb0] sm:$0xff] %vm3777, %v3752
        %3790 = vst.msk [vmem:[#allocation2 + $0xc0] sm:$0xff] %vm3777, %v3754
        %3791 = vst.msk [vmem:[#allocation2 + $0xd0] sm:$0xff] %vm3777, %v3756
        %3792 = vst.msk [vmem:[#allocation2 + $0xe0] sm:$0xff] %vm3777, %v3758
        %3793 = vst.msk [vmem:[#allocation2 + $0xf0] sm:$0xff] %vm3777, %v3760
        %3794 = vset.pattern.permute.xlu0 12
        %3795 = vperm.xlu0 %3794, %v1902
        %v3796 = vpop.permute.xlu0 %3795
        %3798 = vset.pattern.permute.xlu0 12
        %3799 = vperm.xlu0 %3798, %v1903
        %v3800 = vpop.permute.xlu0 %3799
        %3802 = vset.pattern.permute.xlu0 12
        %3803 = vperm.xlu0 %3802, %v1904
        %v3804 = vpop.permute.xlu0 %3803
        %3806 = vset.pattern.permute.xlu0 12
        %3807 = vperm.xlu0 %3806, %v1905
        %v3808 = vpop.permute.xlu0 %3807
        %3810 = vset.pattern.permute.xlu0 12
        %3811 = vperm.xlu0 %3810, %v1906
        %v3812 = vpop.permute.xlu0 %3811
        %3814 = vset.pattern.permute.xlu0 12
        %3815 = vperm.xlu0 %3814, %v1907
        %v3816 = vpop.permute.xlu0 %3815
        %3818 = vset.pattern.permute.xlu0 12
        %3819 = vperm.xlu0 %3818, %v1908
        %v3820 = vpop.permute.xlu0 %3819
        %3822 = vset.pattern.permute.xlu0 12
        %3823 = vperm.xlu0 %3822, %v1909
        %v3824 = vpop.permute.xlu0 %3823
        %3826 = vset.pattern.permute.xlu0 12
        %3827 = vperm.xlu0 %3826, %v1910
        %v3828 = vpop.permute.xlu0 %3827
        %3830 = vset.pattern.permute.xlu0 12
        %3831 = vperm.xlu0 %3830, %v1911
        %v3832 = vpop.permute.xlu0 %3831
        %3834 = vset.pattern.permute.xlu0 12
        %3835 = vperm.xlu0 %3834, %v1912
        %v3836 = vpop.permute.xlu0 %3835
        %3838 = vset.pattern.permute.xlu0 12
        %3839 = vperm.xlu0 %3838, %v1913
        %v3840 = vpop.permute.xlu0 %3839
        %3842 = vset.pattern.permute.xlu0 12
        %3843 = vperm.xlu0 %3842, %v1914
        %v3844 = vpop.permute.xlu0 %3843
        %3846 = vset.pattern.permute.xlu0 12
        %3847 = vperm.xlu0 %3846, %v1915
        %v3848 = vpop.permute.xlu0 %3847
        %3850 = vset.pattern.permute.xlu0 12
        %3851 = vperm.xlu0 %3850, %v1916
        %v3852 = vpop.permute.xlu0 %3851
        %3854 = vset.pattern.permute.xlu0 12
        %3855 = vperm.xlu0 %3854, %v1917
        %v3856 = vpop.permute.xlu0 %3855
        %v3858 = vmul.f32 %v3796, %v1824
        %v3859 = vmul.f32 %v3800, %v1829
        %v3860 = vmul.f32 %v3804, %v1834
        %v3861 = vmul.f32 %v3808, %v1839
        %v3862 = vmul.f32 %v3812, %v1844
        %v3863 = vmul.f32 %v3816, %v1849
        %v3864 = vmul.f32 %v3820, %v1854
        %v3865 = vmul.f32 %v3824, %v1859
        %v3866 = vmul.f32 %v3828, %v1864
        %v3867 = vmul.f32 %v3832, %v1869
        %v3868 = vmul.f32 %v3836, %v1874
        %v3869 = vmul.f32 %v3840, %v1879
        %v3870 = vmul.f32 %v3844, %v1884
        %v3871 = vmul.f32 %v3848, %v1889
        %v3872 = vmul.f32 %v3852, %v1894
        %v3873 = vmul.f32 %v3856, %v1899
        %3874 = vset.pattern.permute.xlu0 13
        %3875 = vperm.xlu0 %3874, %v1902
        %v3876 = vpop.permute.xlu0 %3875
        %3878 = vset.pattern.permute.xlu0 13
        %3879 = vperm.xlu0 %3878, %v1903
        %v3880 = vpop.permute.xlu0 %3879
        %3882 = vset.pattern.permute.xlu0 13
        %3883 = vperm.xlu0 %3882, %v1904
        %v3884 = vpop.permute.xlu0 %3883
        %3886 = vset.pattern.permute.xlu0 13
        %3887 = vperm.xlu0 %3886, %v1905
        %v3888 = vpop.permute.xlu0 %3887
        %3890 = vset.pattern.permute.xlu0 13
        %3891 = vperm.xlu0 %3890, %v1906
        %v3892 = vpop.permute.xlu0 %3891
        %3894 = vset.pattern.permute.xlu0 13
        %3895 = vperm.xlu0 %3894, %v1907
        %v3896 = vpop.permute.xlu0 %3895
        %3898 = vset.pattern.permute.xlu0 13
        %3899 = vperm.xlu0 %3898, %v1908
        %v3900 = vpop.permute.xlu0 %3899
        %3902 = vset.pattern.permute.xlu0 13
        %3903 = vperm.xlu0 %3902, %v1909
        %v3904 = vpop.permute.xlu0 %3903
        %3906 = vset.pattern.permute.xlu0 13
        %3907 = vperm.xlu0 %3906, %v1910
        %v3908 = vpop.permute.xlu0 %3907
        %3910 = vset.pattern.permute.xlu0 13
        %3911 = vperm.xlu0 %3910, %v1911
        %v3912 = vpop.permute.xlu0 %3911
        %3914 = vset.pattern.permute.xlu0 13
        %3915 = vperm.xlu0 %3914, %v1912
        %v3916 = vpop.permute.xlu0 %3915
        %3918 = vset.pattern.permute.xlu0 13
        %3919 = vperm.xlu0 %3918, %v1913
        %v3920 = vpop.permute.xlu0 %3919
        %3922 = vset.pattern.permute.xlu0 13
        %3923 = vperm.xlu0 %3922, %v1914
        %v3924 = vpop.permute.xlu0 %3923
        %3926 = vset.pattern.permute.xlu0 13
        %3927 = vperm.xlu0 %3926, %v1915
        %v3928 = vpop.permute.xlu0 %3927
        %3930 = vset.pattern.permute.xlu0 13
        %3931 = vperm.xlu0 %3930, %v1916
        %v3932 = vpop.permute.xlu0 %3931
        %3934 = vset.pattern.permute.xlu0 13
        %3935 = vperm.xlu0 %3934, %v1917
        %v3936 = vpop.permute.xlu0 %3935
        %v3938 = vmul.f32 %v3876, %v1824
        %v3939 = vmul.f32 %v3880, %v1829
        %v3940 = vmul.f32 %v3884, %v1834
        %v3941 = vmul.f32 %v3888, %v1839
        %v3942 = vmul.f32 %v3892, %v1844
        %v3943 = vmul.f32 %v3896, %v1849
        %v3944 = vmul.f32 %v3900, %v1854
        %v3945 = vmul.f32 %v3904, %v1859
        %v3946 = vmul.f32 %v3908, %v1864
        %v3947 = vmul.f32 %v3912, %v1869
        %v3948 = vmul.f32 %v3916, %v1874
        %v3949 = vmul.f32 %v3920, %v1879
        %v3950 = vmul.f32 %v3924, %v1884
        %v3951 = vmul.f32 %v3928, %v1889
        %v3952 = vmul.f32 %v3932, %v1894
        %v3953 = vmul.f32 %v3936, %v1899
        %3970 = vrot.lane.b32.xlu0 %v3938, 112
        %v3971 = vpop.permute.xlu0 %3970
        %3972 = vrot.lane.b32.xlu0 %v3939, 112
        %v3973 = vpop.permute.xlu0 %3972
        %3974 = vrot.lane.b32.xlu0 %v3940, 112
        %v3975 = vpop.permute.xlu0 %3974
        %3976 = vrot.lane.b32.xlu0 %v3941, 112
        %v3977 = vpop.permute.xlu0 %3976
        %3978 = vrot.lane.b32.xlu0 %v3942, 112
        %v3979 = vpop.permute.xlu0 %3978
        %3980 = vrot.lane.b32.xlu0 %v3943, 112
        %v3981 = vpop.permute.xlu0 %3980
        %3982 = vrot.lane.b32.xlu0 %v3944, 112
        %v3983 = vpop.permute.xlu0 %3982
        %3984 = vrot.lane.b32.xlu0 %v3945, 112
        %v3985 = vpop.permute.xlu0 %3984
        %3986 = vrot.lane.b32.xlu0 %v3946, 112
        %v3987 = vpop.permute.xlu0 %3986
        %3988 = vrot.lane.b32.xlu0 %v3947, 112
        %v3989 = vpop.permute.xlu0 %3988
        %3990 = vrot.lane.b32.xlu0 %v3948, 112
        %v3991 = vpop.permute.xlu0 %3990
        %3992 = vrot.lane.b32.xlu0 %v3949, 112
        %v3993 = vpop.permute.xlu0 %3992
        %3994 = vrot.lane.b32.xlu0 %v3950, 112
        %v3995 = vpop.permute.xlu0 %3994
        %3996 = vrot.lane.b32.xlu0 %v3951, 112
        %v3997 = vpop.permute.xlu0 %3996
        %3998 = vrot.lane.b32.xlu0 %v3952, 112
        %v3999 = vpop.permute.xlu0 %3998
        %4000 = vrot.lane.b32.xlu0 %v3953, 112
        %v4001 = vpop.permute.xlu0 %4000
        %v4018 = vadd.f32 %v3858, %v3971
        %v4019 = vadd.f32 %v3859, %v3973
        %v4020 = vadd.f32 %v3860, %v3975
        %v4021 = vadd.f32 %v3861, %v3977
        %v4022 = vadd.f32 %v3862, %v3979
        %v4023 = vadd.f32 %v3863, %v3981
        %v4024 = vadd.f32 %v3864, %v3983
        %v4025 = vadd.f32 %v3865, %v3985
        %v4026 = vadd.f32 %v3866, %v3987
        %v4027 = vadd.f32 %v3867, %v3989
        %v4028 = vadd.f32 %v3868, %v3991
        %v4029 = vadd.f32 %v3869, %v3993
        %v4030 = vadd.f32 %v3870, %v3995
        %v4031 = vadd.f32 %v3871, %v3997
        %v4032 = vadd.f32 %v3872, %v3999
        %v4033 = vadd.f32 %v3873, %v4001
        %4034 = vset.pattern.permute.xlu0 14
        %4035 = vperm.xlu0 %4034, %v1902
        %v4036 = vpop.permute.xlu0 %4035
        %4038 = vset.pattern.permute.xlu0 14
        %4039 = vperm.xlu0 %4038, %v1903
        %v4040 = vpop.permute.xlu0 %4039
        %4042 = vset.pattern.permute.xlu0 14
        %4043 = vperm.xlu0 %4042, %v1904
        %v4044 = vpop.permute.xlu0 %4043
        %4046 = vset.pattern.permute.xlu0 14
        %4047 = vperm.xlu0 %4046, %v1905
        %v4048 = vpop.permute.xlu0 %4047
        %4050 = vset.pattern.permute.xlu0 14
        %4051 = vperm.xlu0 %4050, %v1906
        %v4052 = vpop.permute.xlu0 %4051
        %4054 = vset.pattern.permute.xlu0 14
        %4055 = vperm.xlu0 %4054, %v1907
        %v4056 = vpop.permute.xlu0 %4055
        %4058 = vset.pattern.permute.xlu0 14
        %4059 = vperm.xlu0 %4058, %v1908
        %v4060 = vpop.permute.xlu0 %4059
        %4062 = vset.pattern.permute.xlu0 14
        %4063 = vperm.xlu0 %4062, %v1909
        %v4064 = vpop.permute.xlu0 %4063
        %4066 = vset.pattern.permute.xlu0 14
        %4067 = vperm.xlu0 %4066, %v1910
        %v4068 = vpop.permute.xlu0 %4067
        %4070 = vset.pattern.permute.xlu0 14
        %4071 = vperm.xlu0 %4070, %v1911
        %v4072 = vpop.permute.xlu0 %4071
        %4074 = vset.pattern.permute.xlu0 14
        %4075 = vperm.xlu0 %4074, %v1912
        %v4076 = vpop.permute.xlu0 %4075
        %4078 = vset.pattern.permute.xlu0 14
        %4079 = vperm.xlu0 %4078, %v1913
        %v4080 = vpop.permute.xlu0 %4079
        %4082 = vset.pattern.permute.xlu0 14
        %4083 = vperm.xlu0 %4082, %v1914
        %v4084 = vpop.permute.xlu0 %4083
        %4086 = vset.pattern.permute.xlu0 14
        %4087 = vperm.xlu0 %4086, %v1915
        %v4088 = vpop.permute.xlu0 %4087
        %4090 = vset.pattern.permute.xlu0 14
        %4091 = vperm.xlu0 %4090, %v1916
        %v4092 = vpop.permute.xlu0 %4091
        %4094 = vset.pattern.permute.xlu0 14
        %4095 = vperm.xlu0 %4094, %v1917
        %v4096 = vpop.permute.xlu0 %4095
        %v4098 = vmul.f32 %v4036, %v1824
        %v4099 = vmul.f32 %v4040, %v1829
        %v4100 = vmul.f32 %v4044, %v1834
        %v4101 = vmul.f32 %v4048, %v1839
        %v4102 = vmul.f32 %v4052, %v1844
        %v4103 = vmul.f32 %v4056, %v1849
        %v4104 = vmul.f32 %v4060, %v1854
        %v4105 = vmul.f32 %v4064, %v1859
        %v4106 = vmul.f32 %v4068, %v1864
        %v4107 = vmul.f32 %v4072, %v1869
        %v4108 = vmul.f32 %v4076, %v1874
        %v4109 = vmul.f32 %v4080, %v1879
        %v4110 = vmul.f32 %v4084, %v1884
        %v4111 = vmul.f32 %v4088, %v1889
        %v4112 = vmul.f32 %v4092, %v1894
        %v4113 = vmul.f32 %v4096, %v1899
        %4130 = vrot.lane.b32.xlu0 %v4098, 96
        %v4131 = vpop.permute.xlu0 %4130
        %4132 = vrot.lane.b32.xlu0 %v4099, 96
        %v4133 = vpop.permute.xlu0 %4132
        %4134 = vrot.lane.b32.xlu0 %v4100, 96
        %v4135 = vpop.permute.xlu0 %4134
        %4136 = vrot.lane.b32.xlu0 %v4101, 96
        %v4137 = vpop.permute.xlu0 %4136
        %4138 = vrot.lane.b32.xlu0 %v4102, 96
        %v4139 = vpop.permute.xlu0 %4138
        %4140 = vrot.lane.b32.xlu0 %v4103, 96
        %v4141 = vpop.permute.xlu0 %4140
        %4142 = vrot.lane.b32.xlu0 %v4104, 96
        %v4143 = vpop.permute.xlu0 %4142
        %4144 = vrot.lane.b32.xlu0 %v4105, 96
        %v4145 = vpop.permute.xlu0 %4144
        %4146 = vrot.lane.b32.xlu0 %v4106, 96
        %v4147 = vpop.permute.xlu0 %4146
        %4148 = vrot.lane.b32.xlu0 %v4107, 96
        %v4149 = vpop.permute.xlu0 %4148
        %4150 = vrot.lane.b32.xlu0 %v4108, 96
        %v4151 = vpop.permute.xlu0 %4150
        %4152 = vrot.lane.b32.xlu0 %v4109, 96
        %v4153 = vpop.permute.xlu0 %4152
        %4154 = vrot.lane.b32.xlu0 %v4110, 96
        %v4155 = vpop.permute.xlu0 %4154
        %4156 = vrot.lane.b32.xlu0 %v4111, 96
        %v4157 = vpop.permute.xlu0 %4156
        %4158 = vrot.lane.b32.xlu0 %v4112, 96
        %v4159 = vpop.permute.xlu0 %4158
        %4160 = vrot.lane.b32.xlu0 %v4113, 96
        %v4161 = vpop.permute.xlu0 %4160
        %v4178 = vadd.f32 %v4018, %v4131
        %v4179 = vadd.f32 %v4019, %v4133
        %v4180 = vadd.f32 %v4020, %v4135
        %v4181 = vadd.f32 %v4021, %v4137
        %v4182 = vadd.f32 %v4022, %v4139
        %v4183 = vadd.f32 %v4023, %v4141
        %v4184 = vadd.f32 %v4024, %v4143
        %v4185 = vadd.f32 %v4025, %v4145
        %v4186 = vadd.f32 %v4026, %v4147
        %v4187 = vadd.f32 %v4027, %v4149
        %v4188 = vadd.f32 %v4028, %v4151
        %v4189 = vadd.f32 %v4029, %v4153
        %v4190 = vadd.f32 %v4030, %v4155
        %v4191 = vadd.f32 %v4031, %v4157
        %v4192 = vadd.f32 %v4032, %v4159
        %v4193 = vadd.f32 %v4033, %v4161
        %4210 = vrot.lane.b32.xlu0 %v4178, 64
        %v4211 = vpop.permute.xlu0 %4210
        %4212 = vrot.lane.b32.xlu0 %v4179, 64
        %v4213 = vpop.permute.xlu0 %4212
        %4214 = vrot.lane.b32.xlu0 %v4180, 64
        %v4215 = vpop.permute.xlu0 %4214
        %4216 = vrot.lane.b32.xlu0 %v4181, 64
        %v4217 = vpop.permute.xlu0 %4216
        %4218 = vrot.lane.b32.xlu0 %v4182, 64
        %v4219 = vpop.permute.xlu0 %4218
        %4220 = vrot.lane.b32.xlu0 %v4183, 64
        %v4221 = vpop.permute.xlu0 %4220
        %4222 = vrot.lane.b32.xlu0 %v4184, 64
        %v4223 = vpop.permute.xlu0 %4222
        %4224 = vrot.lane.b32.xlu0 %v4185, 64
        %v4225 = vpop.permute.xlu0 %4224
        %4226 = vrot.lane.b32.xlu0 %v4186, 64
        %v4227 = vpop.permute.xlu0 %4226
        %4228 = vrot.lane.b32.xlu0 %v4187, 64
        %v4229 = vpop.permute.xlu0 %4228
        %4230 = vrot.lane.b32.xlu0 %v4188, 64
        %v4231 = vpop.permute.xlu0 %4230
        %4232 = vrot.lane.b32.xlu0 %v4189, 64
        %v4233 = vpop.permute.xlu0 %4232
        %4234 = vrot.lane.b32.xlu0 %v4190, 64
        %v4235 = vpop.permute.xlu0 %4234
        %4236 = vrot.lane.b32.xlu0 %v4191, 64
        %v4237 = vpop.permute.xlu0 %4236
        %4238 = vrot.lane.b32.xlu0 %v4192, 64
        %v4239 = vpop.permute.xlu0 %4238
        %4240 = vrot.lane.b32.xlu0 %v4193, 64
        %v4241 = vpop.permute.xlu0 %4240
        %vm4258 = vcmask 654848
        %4259 = vst.msk [vmem:[#allocation2] sm:$0xff] %vm4258, %v4211
        %4260 = vst.msk [vmem:[#allocation2 + $0x10] sm:$0xff] %vm4258, %v4213
        %4261 = vst.msk [vmem:[#allocation2 + $0x20] sm:$0xff] %vm4258, %v4215
        %4262 = vst.msk [vmem:[#allocation2 + $0x30] sm:$0xff] %vm4258, %v4217
        %4263 = vst.msk [vmem:[#allocation2 + $0x40] sm:$0xff] %vm4258, %v4219
        %4264 = vst.msk [vmem:[#allocation2 + $0x50] sm:$0xff] %vm4258, %v4221
        %4265 = vst.msk [vmem:[#allocation2 + $0x60] sm:$0xff] %vm4258, %v4223
        %4266 = vst.msk [vmem:[#allocation2 + $0x70] sm:$0xff] %vm4258, %v4225
        %4267 = vst.msk [vmem:[#allocation2 + $0x80] sm:$0xff] %vm4258, %v4227
        %4268 = vst.msk [vmem:[#allocation2 + $0x90] sm:$0xff] %vm4258, %v4229
        %4269 = vst.msk [vmem:[#allocation2 + $0xa0] sm:$0xff] %vm4258, %v4231
        %4270 = vst.msk [vmem:[#allocation2 + $0xb0] sm:$0xff] %vm4258, %v4233
        %4271 = vst.msk [vmem:[#allocation2 + $0xc0] sm:$0xff] %vm4258, %v4235
        %4272 = vst.msk [vmem:[#allocation2 + $0xd0] sm:$0xff] %vm4258, %v4237
        %4273 = vst.msk [vmem:[#allocation2 + $0xe0] sm:$0xff] %vm4258, %v4239
        %4274 = vst.msk [vmem:[#allocation2 + $0xf0] sm:$0xff] %vm4258, %v4241
        %4275 = vset.pattern.permute.xlu0 15
        %4276 = vperm.xlu0 %4275, %v1902
        %v4277 = vpop.permute.xlu0 %4276
        %4279 = vset.pattern.permute.xlu0 15
        %4280 = vperm.xlu0 %4279, %v1903
        %v4281 = vpop.permute.xlu0 %4280
        %4283 = vset.pattern.permute.xlu0 15
        %4284 = vperm.xlu0 %4283, %v1904
        %v4285 = vpop.permute.xlu0 %4284
        %4287 = vset.pattern.permute.xlu0 15
        %4288 = vperm.xlu0 %4287, %v1905
        %v4289 = vpop.permute.xlu0 %4288
        %4291 = vset.pattern.permute.xlu0 15
        %4292 = vperm.xlu0 %4291, %v1906
        %v4293 = vpop.permute.xlu0 %4292
        %4295 = vset.pattern.permute.xlu0 15
        %4296 = vperm.xlu0 %4295, %v1907
        %v4297 = vpop.permute.xlu0 %4296
        %4299 = vset.pattern.permute.xlu0 15
        %4300 = vperm.xlu0 %4299, %v1908
        %v4301 = vpop.permute.xlu0 %4300
        %4303 = vset.pattern.permute.xlu0 15
        %4304 = vperm.xlu0 %4303, %v1909
        %v4305 = vpop.permute.xlu0 %4304
        %4307 = vset.pattern.permute.xlu0 15
        %4308 = vperm.xlu0 %4307, %v1910
        %v4309 = vpop.permute.xlu0 %4308
        %4311 = vset.pattern.permute.xlu0 15
        %4312 = vperm.xlu0 %4311, %v1911
        %v4313 = vpop.permute.xlu0 %4312
        %4315 = vset.pattern.permute.xlu0 15
        %4316 = vperm.xlu0 %4315, %v1912
        %v4317 = vpop.permute.xlu0 %4316
        %4319 = vset.pattern.permute.xlu0 15
        %4320 = vperm.xlu0 %4319, %v1913
        %v4321 = vpop.permute.xlu0 %4320
        %4323 = vset.pattern.permute.xlu0 15
        %4324 = vperm.xlu0 %4323, %v1914
        %v4325 = vpop.permute.xlu0 %4324
        %4327 = vset.pattern.permute.xlu0 15
        %4328 = vperm.xlu0 %4327, %v1915
        %v4329 = vpop.permute.xlu0 %4328
        %4331 = vset.pattern.permute.xlu0 15
        %4332 = vperm.xlu0 %4331, %v1916
        %v4333 = vpop.permute.xlu0 %4332
        %4335 = vset.pattern.permute.xlu0 15
        %4336 = vperm.xlu0 %4335, %v1917
        %v4337 = vpop.permute.xlu0 %4336
        %v4339 = vmul.f32 %v4277, %v1824
        %v4340 = vmul.f32 %v4281, %v1829
        %v4341 = vmul.f32 %v4285, %v1834
        %v4342 = vmul.f32 %v4289, %v1839
        %v4343 = vmul.f32 %v4293, %v1844
        %v4344 = vmul.f32 %v4297, %v1849
        %v4345 = vmul.f32 %v4301, %v1854
        %v4346 = vmul.f32 %v4305, %v1859
        %v4347 = vmul.f32 %v4309, %v1864
        %v4348 = vmul.f32 %v4313, %v1869
        %v4349 = vmul.f32 %v4317, %v1874
        %v4350 = vmul.f32 %v4321, %v1879
        %v4351 = vmul.f32 %v4325, %v1884
        %v4352 = vmul.f32 %v4329, %v1889
        %v4353 = vmul.f32 %v4333, %v1894
        %v4354 = vmul.f32 %v4337, %v1899
        %4355 = vset.pattern.permute.xlu0 16
        %4356 = vperm.xlu0 %4355, %v1902
        %v4357 = vpop.permute.xlu0 %4356
        %4359 = vset.pattern.permute.xlu0 16
        %4360 = vperm.xlu0 %4359, %v1903
        %v4361 = vpop.permute.xlu0 %4360
        %4363 = vset.pattern.permute.xlu0 16
        %4364 = vperm.xlu0 %4363, %v1904
        %v4365 = vpop.permute.xlu0 %4364
        %4367 = vset.pattern.permute.xlu0 16
        %4368 = vperm.xlu0 %4367, %v1905
        %v4369 = vpop.permute.xlu0 %4368
        %4371 = vset.pattern.permute.xlu0 16
        %4372 = vperm.xlu0 %4371, %v1906
        %v4373 = vpop.permute.xlu0 %4372
        %4375 = vset.pattern.permute.xlu0 16
        %4376 = vperm.xlu0 %4375, %v1907
        %v4377 = vpop.permute.xlu0 %4376
        %4379 = vset.pattern.permute.xlu0 16
        %4380 = vperm.xlu0 %4379, %v1908
        %v4381 = vpop.permute.xlu0 %4380
        %4383 = vset.pattern.permute.xlu0 16
        %4384 = vperm.xlu0 %4383, %v1909
        %v4385 = vpop.permute.xlu0 %4384
        %4387 = vset.pattern.permute.xlu0 16
        %4388 = vperm.xlu0 %4387, %v1910
        %v4389 = vpop.permute.xlu0 %4388
        %4391 = vset.pattern.permute.xlu0 16
        %4392 = vperm.xlu0 %4391, %v1911
        %v4393 = vpop.permute.xlu0 %4392
        %4395 = vset.pattern.permute.xlu0 16
        %4396 = vperm.xlu0 %4395, %v1912
        %v4397 = vpop.permute.xlu0 %4396
        %4399 = vset.pattern.permute.xlu0 16
        %4400 = vperm.xlu0 %4399, %v1913
        %v4401 = vpop.permute.xlu0 %4400
        %4403 = vset.pattern.permute.xlu0 16
        %4404 = vperm.xlu0 %4403, %v1914
        %v4405 = vpop.permute.xlu0 %4404
        %4407 = vset.pattern.permute.xlu0 16
        %4408 = vperm.xlu0 %4407, %v1915
        %v4409 = vpop.permute.xlu0 %4408
        %4411 = vset.pattern.permute.xlu0 16
        %4412 = vperm.xlu0 %4411, %v1916
        %v4413 = vpop.permute.xlu0 %4412
        %4415 = vset.pattern.permute.xlu0 16
        %4416 = vperm.xlu0 %4415, %v1917
        %v4417 = vpop.permute.xlu0 %4416
        %v4419 = vmul.f32 %v4357, %v1824
        %v4420 = vmul.f32 %v4361, %v1829
        %v4421 = vmul.f32 %v4365, %v1834
        %v4422 = vmul.f32 %v4369, %v1839
        %v4423 = vmul.f32 %v4373, %v1844
        %v4424 = vmul.f32 %v4377, %v1849
        %v4425 = vmul.f32 %v4381, %v1854
        %v4426 = vmul.f32 %v4385, %v1859
        %v4427 = vmul.f32 %v4389, %v1864
        %v4428 = vmul.f32 %v4393, %v1869
        %v4429 = vmul.f32 %v4397, %v1874
        %v4430 = vmul.f32 %v4401, %v1879
        %v4431 = vmul.f32 %v4405, %v1884
        %v4432 = vmul.f32 %v4409, %v1889
        %v4433 = vmul.f32 %v4413, %v1894
        %v4434 = vmul.f32 %v4417, %v1899
        %4451 = vrot.lane.b32.xlu0 %v4419, 112
        %v4452 = vpop.permute.xlu0 %4451
        %4453 = vrot.lane.b32.xlu0 %v4420, 112
        %v4454 = vpop.permute.xlu0 %4453
        %4455 = vrot.lane.b32.xlu0 %v4421, 112
        %v4456 = vpop.permute.xlu0 %4455
        %4457 = vrot.lane.b32.xlu0 %v4422, 112
        %v4458 = vpop.permute.xlu0 %4457
        %4459 = vrot.lane.b32.xlu0 %v4423, 112
        %v4460 = vpop.permute.xlu0 %4459
        %4461 = vrot.lane.b32.xlu0 %v4424, 112
        %v4462 = vpop.permute.xlu0 %4461
        %4463 = vrot.lane.b32.xlu0 %v4425, 112
        %v4464 = vpop.permute.xlu0 %4463
        %4465 = vrot.lane.b32.xlu0 %v4426, 112
        %v4466 = vpop.permute.xlu0 %4465
        %4467 = vrot.lane.b32.xlu0 %v4427, 112
        %v4468 = vpop.permute.xlu0 %4467
        %4469 = vrot.lane.b32.xlu0 %v4428, 112
        %v4470 = vpop.permute.xlu0 %4469
        %4471 = vrot.lane.b32.xlu0 %v4429, 112
        %v4472 = vpop.permute.xlu0 %4471
        %4473 = vrot.lane.b32.xlu0 %v4430, 112
        %v4474 = vpop.permute.xlu0 %4473
        %4475 = vrot.lane.b32.xlu0 %v4431, 112
        %v4476 = vpop.permute.xlu0 %4475
        %4477 = vrot.lane.b32.xlu0 %v4432, 112
        %v4478 = vpop.permute.xlu0 %4477
        %4479 = vrot.lane.b32.xlu0 %v4433, 112
        %v4480 = vpop.permute.xlu0 %4479
        %4481 = vrot.lane.b32.xlu0 %v4434, 112
        %v4482 = vpop.permute.xlu0 %4481
        %v4499 = vadd.f32 %v4339, %v4452
        %v4500 = vadd.f32 %v4340, %v4454
        %v4501 = vadd.f32 %v4341, %v4456
        %v4502 = vadd.f32 %v4342, %v4458
        %v4503 = vadd.f32 %v4343, %v4460
        %v4504 = vadd.f32 %v4344, %v4462
        %v4505 = vadd.f32 %v4345, %v4464
        %v4506 = vadd.f32 %v4346, %v4466
        %v4507 = vadd.f32 %v4347, %v4468
        %v4508 = vadd.f32 %v4348, %v4470
        %v4509 = vadd.f32 %v4349, %v4472
        %v4510 = vadd.f32 %v4350, %v4474
        %v4511 = vadd.f32 %v4351, %v4476
        %v4512 = vadd.f32 %v4352, %v4478
        %v4513 = vadd.f32 %v4353, %v4480
        %v4514 = vadd.f32 %v4354, %v4482
        %4515 = vset.pattern.permute.xlu0 17
        %4516 = vperm.xlu0 %4515, %v1902
        %v4517 = vpop.permute.xlu0 %4516
        %4519 = vset.pattern.permute.xlu0 17
        %4520 = vperm.xlu0 %4519, %v1903
        %v4521 = vpop.permute.xlu0 %4520
        %4523 = vset.pattern.permute.xlu0 17
        %4524 = vperm.xlu0 %4523, %v1904
        %v4525 = vpop.permute.xlu0 %4524
        %4527 = vset.pattern.permute.xlu0 17
        %4528 = vperm.xlu0 %4527, %v1905
        %v4529 = vpop.permute.xlu0 %4528
        %4531 = vset.pattern.permute.xlu0 17
        %4532 = vperm.xlu0 %4531, %v1906
        %v4533 = vpop.permute.xlu0 %4532
        %4535 = vset.pattern.permute.xlu0 17
        %4536 = vperm.xlu0 %4535, %v1907
        %v4537 = vpop.permute.xlu0 %4536
        %4539 = vset.pattern.permute.xlu0 17
        %4540 = vperm.xlu0 %4539, %v1908
        %v4541 = vpop.permute.xlu0 %4540
        %4543 = vset.pattern.permute.xlu0 17
        %4544 = vperm.xlu0 %4543, %v1909
        %v4545 = vpop.permute.xlu0 %4544
        %4547 = vset.pattern.permute.xlu0 17
        %4548 = vperm.xlu0 %4547, %v1910
        %v4549 = vpop.permute.xlu0 %4548
        %4551 = vset.pattern.permute.xlu0 17
        %4552 = vperm.xlu0 %4551, %v1911
        %v4553 = vpop.permute.xlu0 %4552
        %4555 = vset.pattern.permute.xlu0 17
        %4556 = vperm.xlu0 %4555, %v1912
        %v4557 = vpop.permute.xlu0 %4556
        %4559 = vset.pattern.permute.xlu0 17
        %4560 = vperm.xlu0 %4559, %v1913
        %v4561 = vpop.permute.xlu0 %4560
        %4563 = vset.pattern.permute.xlu0 17
        %4564 = vperm.xlu0 %4563, %v1914
        %v4565 = vpop.permute.xlu0 %4564
        %4567 = vset.pattern.permute.xlu0 17
        %4568 = vperm.xlu0 %4567, %v1915
        %v4569 = vpop.permute.xlu0 %4568
        %4571 = vset.pattern.permute.xlu0 17
        %4572 = vperm.xlu0 %4571, %v1916
        %v4573 = vpop.permute.xlu0 %4572
        %4575 = vset.pattern.permute.xlu0 17
        %4576 = vperm.xlu0 %4575, %v1917
        %v4577 = vpop.permute.xlu0 %4576
        %v4579 = vmul.f32 %v4517, %v1824
        %v4580 = vmul.f32 %v4521, %v1829
        %v4581 = vmul.f32 %v4525, %v1834
        %v4582 = vmul.f32 %v4529, %v1839
        %v4583 = vmul.f32 %v4533, %v1844
        %v4584 = vmul.f32 %v4537, %v1849
        %v4585 = vmul.f32 %v4541, %v1854
        %v4586 = vmul.f32 %v4545, %v1859
        %v4587 = vmul.f32 %v4549, %v1864
        %v4588 = vmul.f32 %v4553, %v1869
        %v4589 = vmul.f32 %v4557, %v1874
        %v4590 = vmul.f32 %v4561, %v1879
        %v4591 = vmul.f32 %v4565, %v1884
        %v4592 = vmul.f32 %v4569, %v1889
        %v4593 = vmul.f32 %v4573, %v1894
        %v4594 = vmul.f32 %v4577, %v1899
        %4611 = vrot.lane.b32.xlu0 %v4579, 96
        %v4612 = vpop.permute.xlu0 %4611
        %4613 = vrot.lane.b32.xlu0 %v4580, 96
        %v4614 = vpop.permute.xlu0 %4613
        %4615 = vrot.lane.b32.xlu0 %v4581, 96
        %v4616 = vpop.permute.xlu0 %4615
        %4617 = vrot.lane.b32.xlu0 %v4582, 96
        %v4618 = vpop.permute.xlu0 %4617
        %4619 = vrot.lane.b32.xlu0 %v4583, 96
        %v4620 = vpop.permute.xlu0 %4619
        %4621 = vrot.lane.b32.xlu0 %v4584, 96
        %v4622 = vpop.permute.xlu0 %4621
        %4623 = vrot.lane.b32.xlu0 %v4585, 96
        %v4624 = vpop.permute.xlu0 %4623
        %4625 = vrot.lane.b32.xlu0 %v4586, 96
        %v4626 = vpop.permute.xlu0 %4625
        %4627 = vrot.lane.b32.xlu0 %v4587, 96
        %v4628 = vpop.permute.xlu0 %4627
        %4629 = vrot.lane.b32.xlu0 %v4588, 96
        %v4630 = vpop.permute.xlu0 %4629
        %4631 = vrot.lane.b32.xlu0 %v4589, 96
        %v4632 = vpop.permute.xlu0 %4631
        %4633 = vrot.lane.b32.xlu0 %v4590, 96
        %v4634 = vpop.permute.xlu0 %4633
        %4635 = vrot.lane.b32.xlu0 %v4591, 96
        %v4636 = vpop.permute.xlu0 %4635
        %4637 = vrot.lane.b32.xlu0 %v4592, 96
        %v4638 = vpop.permute.xlu0 %4637
        %4639 = vrot.lane.b32.xlu0 %v4593, 96
        %v4640 = vpop.permute.xlu0 %4639
        %4641 = vrot.lane.b32.xlu0 %v4594, 96
        %v4642 = vpop.permute.xlu0 %4641
        %v4659 = vadd.f32 %v4499, %v4612
        %v4660 = vadd.f32 %v4500, %v4614
        %v4661 = vadd.f32 %v4501, %v4616
        %v4662 = vadd.f32 %v4502, %v4618
        %v4663 = vadd.f32 %v4503, %v4620
        %v4664 = vadd.f32 %v4504, %v4622
        %v4665 = vadd.f32 %v4505, %v4624
        %v4666 = vadd.f32 %v4506, %v4626
        %v4667 = vadd.f32 %v4507, %v4628
        %v4668 = vadd.f32 %v4508, %v4630
        %v4669 = vadd.f32 %v4509, %v4632
        %v4670 = vadd.f32 %v4510, %v4634
        %v4671 = vadd.f32 %v4511, %v4636
        %v4672 = vadd.f32 %v4512, %v4638
        %v4673 = vadd.f32 %v4513, %v4640
        %v4674 = vadd.f32 %v4514, %v4642
        %4691 = vrot.lane.b32.xlu0 %v4659, 80
        %v4692 = vpop.permute.xlu0 %4691
        %4693 = vrot.lane.b32.xlu0 %v4660, 80
        %v4694 = vpop.permute.xlu0 %4693
        %4695 = vrot.lane.b32.xlu0 %v4661, 80
        %v4696 = vpop.permute.xlu0 %4695
        %4697 = vrot.lane.b32.xlu0 %v4662, 80
        %v4698 = vpop.permute.xlu0 %4697
        %4699 = vrot.lane.b32.xlu0 %v4663, 80
        %v4700 = vpop.permute.xlu0 %4699
        %4701 = vrot.lane.b32.xlu0 %v4664, 80
        %v4702 = vpop.permute.xlu0 %4701
        %4703 = vrot.lane.b32.xlu0 %v4665, 80
        %v4704 = vpop.permute.xlu0 %4703
        %4705 = vrot.lane.b32.xlu0 %v4666, 80
        %v4706 = vpop.permute.xlu0 %4705
        %4707 = vrot.lane.b32.xlu0 %v4667, 80
        %v4708 = vpop.permute.xlu0 %4707
        %4709 = vrot.lane.b32.xlu0 %v4668, 80
        %v4710 = vpop.permute.xlu0 %4709
        %4711 = vrot.lane.b32.xlu0 %v4669, 80
        %v4712 = vpop.permute.xlu0 %4711
        %4713 = vrot.lane.b32.xlu0 %v4670, 80
        %v4714 = vpop.permute.xlu0 %4713
        %4715 = vrot.lane.b32.xlu0 %v4671, 80
        %v4716 = vpop.permute.xlu0 %4715
        %4717 = vrot.lane.b32.xlu0 %v4672, 80
        %v4718 = vpop.permute.xlu0 %4717
        %4719 = vrot.lane.b32.xlu0 %v4673, 80
        %v4720 = vpop.permute.xlu0 %4719
        %4721 = vrot.lane.b32.xlu0 %v4674, 80
        %v4722 = vpop.permute.xlu0 %4721
        %vm4739 = vcmask 786048
        %4740 = vst.msk [vmem:[#allocation2] sm:$0xff] %vm4739, %v4692
        %4741 = vst.msk [vmem:[#allocation2 + $0x10] sm:$0xff] %vm4739, %v4694
        %4742 = vst.msk [vmem:[#allocation2 + $0x20] sm:$0xff] %vm4739, %v4696
        %4743 = vst.msk [vmem:[#allocation2 + $0x30] sm:$0xff] %vm4739, %v4698
        %4744 = vst.msk [vmem:[#allocation2 + $0x40] sm:$0xff] %vm4739, %v4700
        %4745 = vst.msk [vmem:[#allocation2 + $0x50] sm:$0xff] %vm4739, %v4702
        %4746 = vst.msk [vmem:[#allocation2 + $0x60] sm:$0xff] %vm4739, %v4704
        %4747 = vst.msk [vmem:[#allocation2 + $0x70] sm:$0xff] %vm4739, %v4706
        %4748 = vst.msk [vmem:[#allocation2 + $0x80] sm:$0xff] %vm4739, %v4708
        %4749 = vst.msk [vmem:[#allocation2 + $0x90] sm:$0xff] %vm4739, %v4710
        %4750 = vst.msk [vmem:[#allocation2 + $0xa0] sm:$0xff] %vm4739, %v4712
        %4751 = vst.msk [vmem:[#allocation2 + $0xb0] sm:$0xff] %vm4739, %v4714
        %4752 = vst.msk [vmem:[#allocation2 + $0xc0] sm:$0xff] %vm4739, %v4716
        %4753 = vst.msk [vmem:[#allocation2 + $0xd0] sm:$0xff] %vm4739, %v4718
        %4754 = vst.msk [vmem:[#allocation2 + $0xe0] sm:$0xff] %vm4739, %v4720
        %4755 = vst.msk [vmem:[#allocation2 + $0xf0] sm:$0xff] %vm4739, %v4722
        %4756 = vset.pattern.permute.xlu0 18
        %4757 = vperm.xlu0 %4756, %v1902
        %v4758 = vpop.permute.xlu0 %4757
        %4760 = vset.pattern.permute.xlu0 18
        %4761 = vperm.xlu0 %4760, %v1903
        %v4762 = vpop.permute.xlu0 %4761
        %4764 = vset.pattern.permute.xlu0 18
        %4765 = vperm.xlu0 %4764, %v1904
        %v4766 = vpop.permute.xlu0 %4765
        %4768 = vset.pattern.permute.xlu0 18
        %4769 = vperm.xlu0 %4768, %v1905
        %v4770 = vpop.permute.xlu0 %4769
        %4772 = vset.pattern.permute.xlu0 18
        %4773 = vperm.xlu0 %4772, %v1906
        %v4774 = vpop.permute.xlu0 %4773
        %4776 = vset.pattern.permute.xlu0 18
        %4777 = vperm.xlu0 %4776, %v1907
        %v4778 = vpop.permute.xlu0 %4777
        %4780 = vset.pattern.permute.xlu0 18
        %4781 = vperm.xlu0 %4780, %v1908
        %v4782 = vpop.permute.xlu0 %4781
        %4784 = vset.pattern.permute.xlu0 18
        %4785 = vperm.xlu0 %4784, %v1909
        %v4786 = vpop.permute.xlu0 %4785
        %4788 = vset.pattern.permute.xlu0 18
        %4789 = vperm.xlu0 %4788, %v1910
        %v4790 = vpop.permute.xlu0 %4789
        %4792 = vset.pattern.permute.xlu0 18
        %4793 = vperm.xlu0 %4792, %v1911
        %v4794 = vpop.permute.xlu0 %4793
        %4796 = vset.pattern.permute.xlu0 18
        %4797 = vperm.xlu0 %4796, %v1912
        %v4798 = vpop.permute.xlu0 %4797
        %4800 = vset.pattern.permute.xlu0 18
        %4801 = vperm.xlu0 %4800, %v1913
        %v4802 = vpop.permute.xlu0 %4801
        %4804 = vset.pattern.permute.xlu0 18
        %4805 = vperm.xlu0 %4804, %v1914
        %v4806 = vpop.permute.xlu0 %4805
        %4808 = vset.pattern.permute.xlu0 18
        %4809 = vperm.xlu0 %4808, %v1915
        %v4810 = vpop.permute.xlu0 %4809
        %4812 = vset.pattern.permute.xlu0 18
        %4813 = vperm.xlu0 %4812, %v1916
        %v4814 = vpop.permute.xlu0 %4813
        %4816 = vset.pattern.permute.xlu0 18
        %4817 = vperm.xlu0 %4816, %v1917
        %v4818 = vpop.permute.xlu0 %4817
        %v4820 = vmul.f32 %v4758, %v1824
        %v4821 = vmul.f32 %v4762, %v1829
        %v4822 = vmul.f32 %v4766, %v1834
        %v4823 = vmul.f32 %v4770, %v1839
        %v4824 = vmul.f32 %v4774, %v1844
        %v4825 = vmul.f32 %v4778, %v1849
        %v4826 = vmul.f32 %v4782, %v1854
        %v4827 = vmul.f32 %v4786, %v1859
        %v4828 = vmul.f32 %v4790, %v1864
        %v4829 = vmul.f32 %v4794, %v1869
        %v4830 = vmul.f32 %v4798, %v1874
        %v4831 = vmul.f32 %v4802, %v1879
        %v4832 = vmul.f32 %v4806, %v1884
        %v4833 = vmul.f32 %v4810, %v1889
        %v4834 = vmul.f32 %v4814, %v1894
        %v4835 = vmul.f32 %v4818, %v1899
        %4836 = vset.pattern.permute.xlu0 19
        %4837 = vperm.xlu0 %4836, %v1902
        %v4838 = vpop.permute.xlu0 %4837
        %4840 = vset.pattern.permute.xlu0 19
        %4841 = vperm.xlu0 %4840, %v1903
        %v4842 = vpop.permute.xlu0 %4841
        %4844 = vset.pattern.permute.xlu0 19
        %4845 = vperm.xlu0 %4844, %v1904
        %v4846 = vpop.permute.xlu0 %4845
        %4848 = vset.pattern.permute.xlu0 19
        %4849 = vperm.xlu0 %4848, %v1905
        %v4850 = vpop.permute.xlu0 %4849
        %4852 = vset.pattern.permute.xlu0 19
        %4853 = vperm.xlu0 %4852, %v1906
        %v4854 = vpop.permute.xlu0 %4853
        %4856 = vset.pattern.permute.xlu0 19
        %4857 = vperm.xlu0 %4856, %v1907
        %v4858 = vpop.permute.xlu0 %4857
        %4860 = vset.pattern.permute.xlu0 19
        %4861 = vperm.xlu0 %4860, %v1908
        %v4862 = vpop.permute.xlu0 %4861
        %4864 = vset.pattern.permute.xlu0 19
        %4865 = vperm.xlu0 %4864, %v1909
        %v4866 = vpop.permute.xlu0 %4865
        %4868 = vset.pattern.permute.xlu0 19
        %4869 = vperm.xlu0 %4868, %v1910
        %v4870 = vpop.permute.xlu0 %4869
        %4872 = vset.pattern.permute.xlu0 19
        %4873 = vperm.xlu0 %4872, %v1911
        %v4874 = vpop.permute.xlu0 %4873
        %4876 = vset.pattern.permute.xlu0 19
        %4877 = vperm.xlu0 %4876, %v1912
        %v4878 = vpop.permute.xlu0 %4877
        %4880 = vset.pattern.permute.xlu0 19
        %4881 = vperm.xlu0 %4880, %v1913
        %v4882 = vpop.permute.xlu0 %4881
        %4884 = vset.pattern.permute.xlu0 19
        %4885 = vperm.xlu0 %4884, %v1914
        %v4886 = vpop.permute.xlu0 %4885
        %4888 = vset.pattern.permute.xlu0 19
        %4889 = vperm.xlu0 %4888, %v1915
        %v4890 = vpop.permute.xlu0 %4889
        %4892 = vset.pattern.permute.xlu0 19
        %4893 = vperm.xlu0 %4892, %v1916
        %v4894 = vpop.permute.xlu0 %4893
        %4896 = vset.pattern.permute.xlu0 19
        %4897 = vperm.xlu0 %4896, %v1917
        %v4898 = vpop.permute.xlu0 %4897
        %v4900 = vmul.f32 %v4838, %v1824
        %v4901 = vmul.f32 %v4842, %v1829
        %v4902 = vmul.f32 %v4846, %v1834
        %v4903 = vmul.f32 %v4850, %v1839
        %v4904 = vmul.f32 %v4854, %v1844
        %v4905 = vmul.f32 %v4858, %v1849
        %v4906 = vmul.f32 %v4862, %v1854
        %v4907 = vmul.f32 %v4866, %v1859
        %v4908 = vmul.f32 %v4870, %v1864
        %v4909 = vmul.f32 %v4874, %v1869
        %v4910 = vmul.f32 %v4878, %v1874
        %v4911 = vmul.f32 %v4882, %v1879
        %v4912 = vmul.f32 %v4886, %v1884
        %v4913 = vmul.f32 %v4890, %v1889
        %v4914 = vmul.f32 %v4894, %v1894
        %v4915 = vmul.f32 %v4898, %v1899
        %4932 = vrot.lane.b32.xlu0 %v4900, 112
        %v4933 = vpop.permute.xlu0 %4932
        %4934 = vrot.lane.b32.xlu0 %v4901, 112
        %v4935 = vpop.permute.xlu0 %4934
        %4936 = vrot.lane.b32.xlu0 %v4902, 112
        %v4937 = vpop.permute.xlu0 %4936
        %4938 = vrot.lane.b32.xlu0 %v4903, 112
        %v4939 = vpop.permute.xlu0 %4938
        %4940 = vrot.lane.b32.xlu0 %v4904, 112
        %v4941 = vpop.permute.xlu0 %4940
        %4942 = vrot.lane.b32.xlu0 %v4905, 112
        %v4943 = vpop.permute.xlu0 %4942
        %4944 = vrot.lane.b32.xlu0 %v4906, 112
        %v4945 = vpop.permute.xlu0 %4944
        %4946 = vrot.lane.b32.xlu0 %v4907, 112
        %v4947 = vpop.permute.xlu0 %4946
        %4948 = vrot.lane.b32.xlu0 %v4908, 112
        %v4949 = vpop.permute.xlu0 %4948
        %4950 = vrot.lane.b32.xlu0 %v4909, 112
        %v4951 = vpop.permute.xlu0 %4950
        %4952 = vrot.lane.b32.xlu0 %v4910, 112
        %v4953 = vpop.permute.xlu0 %4952
        %4954 = vrot.lane.b32.xlu0 %v4911, 112
        %v4955 = vpop.permute.xlu0 %4954
        %4956 = vrot.lane.b32.xlu0 %v4912, 112
        %v4957 = vpop.permute.xlu0 %4956
        %4958 = vrot.lane.b32.xlu0 %v4913, 112
        %v4959 = vpop.permute.xlu0 %4958
        %4960 = vrot.lane.b32.xlu0 %v4914, 112
        %v4961 = vpop.permute.xlu0 %4960
        %4962 = vrot.lane.b32.xlu0 %v4915, 112
        %v4963 = vpop.permute.xlu0 %4962
        %v4980 = vadd.f32 %v4820, %v4933
        %v4981 = vadd.f32 %v4821, %v4935
        %v4982 = vadd.f32 %v4822, %v4937
        %v4983 = vadd.f32 %v4823, %v4939
        %v4984 = vadd.f32 %v4824, %v4941
        %v4985 = vadd.f32 %v4825, %v4943
        %v4986 = vadd.f32 %v4826, %v4945
        %v4987 = vadd.f32 %v4827, %v4947
        %v4988 = vadd.f32 %v4828, %v4949
        %v4989 = vadd.f32 %v4829, %v4951
        %v4990 = vadd.f32 %v4830, %v4953
        %v4991 = vadd.f32 %v4831, %v4955
        %v4992 = vadd.f32 %v4832, %v4957
        %v4993 = vadd.f32 %v4833, %v4959
        %v4994 = vadd.f32 %v4834, %v4961
        %v4995 = vadd.f32 %v4835, %v4963
        %4996 = vset.pattern.permute.xlu0 20
        %4997 = vperm.xlu0 %4996, %v1902
        %v4998 = vpop.permute.xlu0 %4997
        %5000 = vset.pattern.permute.xlu0 20
        %5001 = vperm.xlu0 %5000, %v1903
        %v5002 = vpop.permute.xlu0 %5001
        %5004 = vset.pattern.permute.xlu0 20
        %5005 = vperm.xlu0 %5004, %v1904
        %v5006 = vpop.permute.xlu0 %5005
        %5008 = vset.pattern.permute.xlu0 20
        %5009 = vperm.xlu0 %5008, %v1905
        %v5010 = vpop.permute.xlu0 %5009
        %5012 = vset.pattern.permute.xlu0 20
        %5013 = vperm.xlu0 %5012, %v1906
        %v5014 = vpop.permute.xlu0 %5013
        %5016 = vset.pattern.permute.xlu0 20
        %5017 = vperm.xlu0 %5016, %v1907
        %v5018 = vpop.permute.xlu0 %5017
        %5020 = vset.pattern.permute.xlu0 20
        %5021 = vperm.xlu0 %5020, %v1908
        %v5022 = vpop.permute.xlu0 %5021
        %5024 = vset.pattern.permute.xlu0 20
        %5025 = vperm.xlu0 %5024, %v1909
        %v5026 = vpop.permute.xlu0 %5025
        %5028 = vset.pattern.permute.xlu0 20
        %5029 = vperm.xlu0 %5028, %v1910
        %v5030 = vpop.permute.xlu0 %5029
        %5032 = vset.pattern.permute.xlu0 20
        %5033 = vperm.xlu0 %5032, %v1911
        %v5034 = vpop.permute.xlu0 %5033
        %5036 = vset.pattern.permute.xlu0 20
        %5037 = vperm.xlu0 %5036, %v1912
        %v5038 = vpop.permute.xlu0 %5037
        %5040 = vset.pattern.permute.xlu0 20
        %5041 = vperm.xlu0 %5040, %v1913
        %v5042 = vpop.permute.xlu0 %5041
        %5044 = vset.pattern.permute.xlu0 20
        %5045 = vperm.xlu0 %5044, %v1914
        %v5046 = vpop.permute.xlu0 %5045
        %5048 = vset.pattern.permute.xlu0 20
        %5049 = vperm.xlu0 %5048, %v1915
        %v5050 = vpop.permute.xlu0 %5049
        %5052 = vset.pattern.permute.xlu0 20
        %5053 = vperm.xlu0 %5052, %v1916
        %v5054 = vpop.permute.xlu0 %5053
        %5056 = vset.pattern.permute.xlu0 20
        %5057 = vperm.xlu0 %5056, %v1917
        %v5058 = vpop.permute.xlu0 %5057
        %v5060 = vmul.f32 %v4998, %v1824
        %v5061 = vmul.f32 %v5002, %v1829
        %v5062 = vmul.f32 %v5006, %v1834
        %v5063 = vmul.f32 %v5010, %v1839
        %v5064 = vmul.f32 %v5014, %v1844
        %v5065 = vmul.f32 %v5018, %v1849
        %v5066 = vmul.f32 %v5022, %v1854
        %v5067 = vmul.f32 %v5026, %v1859
        %v5068 = vmul.f32 %v5030, %v1864
        %v5069 = vmul.f32 %v5034, %v1869
        %v5070 = vmul.f32 %v5038, %v1874
        %v5071 = vmul.f32 %v5042, %v1879
        %v5072 = vmul.f32 %v5046, %v1884
        %v5073 = vmul.f32 %v5050, %v1889
        %v5074 = vmul.f32 %v5054, %v1894
        %v5075 = vmul.f32 %v5058, %v1899
        %5092 = vrot.lane.b32.xlu0 %v5060, 96
        %v5093 = vpop.permute.xlu0 %5092
        %5094 = vrot.lane.b32.xlu0 %v5061, 96
        %v5095 = vpop.permute.xlu0 %5094
        %5096 = vrot.lane.b32.xlu0 %v5062, 96
        %v5097 = vpop.permute.xlu0 %5096
        %5098 = vrot.lane.b32.xlu0 %v5063, 96
        %v5099 = vpop.permute.xlu0 %5098
        %5100 = vrot.lane.b32.xlu0 %v5064, 96
        %v5101 = vpop.permute.xlu0 %5100
        %5102 = vrot.lane.b32.xlu0 %v5065, 96
        %v5103 = vpop.permute.xlu0 %5102
        %5104 = vrot.lane.b32.xlu0 %v5066, 96
        %v5105 = vpop.permute.xlu0 %5104
        %5106 = vrot.lane.b32.xlu0 %v5067, 96
        %v5107 = vpop.permute.xlu0 %5106
        %5108 = vrot.lane.b32.xlu0 %v5068, 96
        %v5109 = vpop.permute.xlu0 %5108
        %5110 = vrot.lane.b32.xlu0 %v5069, 96
        %v5111 = vpop.permute.xlu0 %5110
        %5112 = vrot.lane.b32.xlu0 %v5070, 96
        %v5113 = vpop.permute.xlu0 %5112
        %5114 = vrot.lane.b32.xlu0 %v5071, 96
        %v5115 = vpop.permute.xlu0 %5114
        %5116 = vrot.lane.b32.xlu0 %v5072, 96
        %v5117 = vpop.permute.xlu0 %5116
        %5118 = vrot.lane.b32.xlu0 %v5073, 96
        %v5119 = vpop.permute.xlu0 %5118
        %5120 = vrot.lane.b32.xlu0 %v5074, 96
        %v5121 = vpop.permute.xlu0 %5120
        %5122 = vrot.lane.b32.xlu0 %v5075, 96
        %v5123 = vpop.permute.xlu0 %5122
        %v5140 = vadd.f32 %v4980, %v5093
        %v5141 = vadd.f32 %v4981, %v5095
        %v5142 = vadd.f32 %v4982, %v5097
        %v5143 = vadd.f32 %v4983, %v5099
        %v5144 = vadd.f32 %v4984, %v5101
        %v5145 = vadd.f32 %v4985, %v5103
        %v5146 = vadd.f32 %v4986, %v5105
        %v5147 = vadd.f32 %v4987, %v5107
        %v5148 = vadd.f32 %v4988, %v5109
        %v5149 = vadd.f32 %v4989, %v5111
        %v5150 = vadd.f32 %v4990, %v5113
        %v5151 = vadd.f32 %v4991, %v5115
        %v5152 = vadd.f32 %v4992, %v5117
        %v5153 = vadd.f32 %v4993, %v5119
        %v5154 = vadd.f32 %v4994, %v5121
        %v5155 = vadd.f32 %v4995, %v5123
        %5172 = vrot.lane.b32.xlu0 %v5140, 96
        %v5173 = vpop.permute.xlu0 %5172
        %5174 = vrot.lane.b32.xlu0 %v5141, 96
        %v5175 = vpop.permute.xlu0 %5174
        %5176 = vrot.lane.b32.xlu0 %v5142, 96
        %v5177 = vpop.permute.xlu0 %5176
        %5178 = vrot.lane.b32.xlu0 %v5143, 96
        %v5179 = vpop.permute.xlu0 %5178
        %5180 = vrot.lane.b32.xlu0 %v5144, 96
        %v5181 = vpop.permute.xlu0 %5180
        %5182 = vrot.lane.b32.xlu0 %v5145, 96
        %v5183 = vpop.permute.xlu0 %5182
        %5184 = vrot.lane.b32.xlu0 %v5146, 96
        %v5185 = vpop.permute.xlu0 %5184
        %5186 = vrot.lane.b32.xlu0 %v5147, 96
        %v5187 = vpop.permute.xlu0 %5186
        %5188 = vrot.lane.b32.xlu0 %v5148, 96
        %v5189 = vpop.permute.xlu0 %5188
        %5190 = vrot.lane.b32.xlu0 %v5149, 96
        %v5191 = vpop.permute.xlu0 %5190
        %5192 = vrot.lane.b32.xlu0 %v5150, 96
        %v5193 = vpop.permute.xlu0 %5192
        %5194 = vrot.lane.b32.xlu0 %v5151, 96
        %v5195 = vpop.permute.xlu0 %5194
        %5196 = vrot.lane.b32.xlu0 %v5152, 96
        %v5197 = vpop.permute.xlu0 %5196
        %5198 = vrot.lane.b32.xlu0 %v5153, 96
        %v5199 = vpop.permute.xlu0 %5198
        %5200 = vrot.lane.b32.xlu0 %v5154, 96
        %v5201 = vpop.permute.xlu0 %5200
        %5202 = vrot.lane.b32.xlu0 %v5155, 96
        %v5203 = vpop.permute.xlu0 %5202
        %vm5220 = vcmask 917248
        %5221 = vst.msk [vmem:[#allocation2] sm:$0xff] %vm5220, %v5173
        %5222 = vst.msk [vmem:[#allocation2 + $0x10] sm:$0xff] %vm5220, %v5175
        %5223 = vst.msk [vmem:[#allocation2 + $0x20] sm:$0xff] %vm5220, %v5177
        %5224 = vst.msk [vmem:[#allocation2 + $0x30] sm:$0xff] %vm5220, %v5179
        %5225 = vst.msk [vmem:[#allocation2 + $0x40] sm:$0xff] %vm5220, %v5181
        %5226 = vst.msk [vmem:[#allocation2 + $0x50] sm:$0xff] %vm5220, %v5183
        %5227 = vst.msk [vmem:[#allocation2 + $0x60] sm:$0xff] %vm5220, %v5185
        %5228 = vst.msk [vmem:[#allocation2 + $0x70] sm:$0xff] %vm5220, %v5187
        %5229 = vst.msk [vmem:[#allocation2 + $0x80] sm:$0xff] %vm5220, %v5189
        %5230 = vst.msk [vmem:[#allocation2 + $0x90] sm:$0xff] %vm5220, %v5191
        %5231 = vst.msk [vmem:[#allocation2 + $0xa0] sm:$0xff] %vm5220, %v5193
        %5232 = vst.msk [vmem:[#allocation2 + $0xb0] sm:$0xff] %vm5220, %v5195
        %5233 = vst.msk [vmem:[#allocation2 + $0xc0] sm:$0xff] %vm5220, %v5197
        %5234 = vst.msk [vmem:[#allocation2 + $0xd0] sm:$0xff] %vm5220, %v5199
        %5235 = vst.msk [vmem:[#allocation2 + $0xe0] sm:$0xff] %vm5220, %v5201
        %5236 = vst.msk [vmem:[#allocation2 + $0xf0] sm:$0xff] %vm5220, %v5203
        %5237 = vset.pattern.permute.xlu0 21
        %5238 = vperm.xlu0 %5237, %v1902
        %v5239 = vpop.permute.xlu0 %5238
        %5241 = vset.pattern.permute.xlu0 21
        %5242 = vperm.xlu0 %5241, %v1903
        %v5243 = vpop.permute.xlu0 %5242
        %5245 = vset.pattern.permute.xlu0 21
        %5246 = vperm.xlu0 %5245, %v1904
        %v5247 = vpop.permute.xlu0 %5246
        %5249 = vset.pattern.permute.xlu0 21
        %5250 = vperm.xlu0 %5249, %v1905
        %v5251 = vpop.permute.xlu0 %5250
        %5253 = vset.pattern.permute.xlu0 21
        %5254 = vperm.xlu0 %5253, %v1906
        %v5255 = vpop.permute.xlu0 %5254
        %5257 = vset.pattern.permute.xlu0 21
        %5258 = vperm.xlu0 %5257, %v1907
        %v5259 = vpop.permute.xlu0 %5258
        %5261 = vset.pattern.permute.xlu0 21
        %5262 = vperm.xlu0 %5261, %v1908
        %v5263 = vpop.permute.xlu0 %5262
        %5265 = vset.pattern.permute.xlu0 21
        %5266 = vperm.xlu0 %5265, %v1909
        %v5267 = vpop.permute.xlu0 %5266
        %5269 = vset.pattern.permute.xlu0 21
        %5270 = vperm.xlu0 %5269, %v1910
        %v5271 = vpop.permute.xlu0 %5270
        %5273 = vset.pattern.permute.xlu0 21
        %5274 = vperm.xlu0 %5273, %v1911
        %v5275 = vpop.permute.xlu0 %5274
        %5277 = vset.pattern.permute.xlu0 21
        %5278 = vperm.xlu0 %5277, %v1912
        %v5279 = vpop.permute.xlu0 %5278
        %5281 = vset.pattern.permute.xlu0 21
        %5282 = vperm.xlu0 %5281, %v1913
        %v5283 = vpop.permute.xlu0 %5282
        %5285 = vset.pattern.permute.xlu0 21
        %5286 = vperm.xlu0 %5285, %v1914
        %v5287 = vpop.permute.xlu0 %5286
        %5289 = vset.pattern.permute.xlu0 21
        %5290 = vperm.xlu0 %5289, %v1915
        %v5291 = vpop.permute.xlu0 %5290
        %5293 = vset.pattern.permute.xlu0 21
        %5294 = vperm.xlu0 %5293, %v1916
        %v5295 = vpop.permute.xlu0 %5294
        %5297 = vset.pattern.permute.xlu0 21
        %5298 = vperm.xlu0 %5297, %v1917
        %v5299 = vpop.permute.xlu0 %5298
        %v5301 = vmul.f32 %v5239, %v1824
        %v5302 = vmul.f32 %v5243, %v1829
        %v5303 = vmul.f32 %v5247, %v1834
        %v5304 = vmul.f32 %v5251, %v1839
        %v5305 = vmul.f32 %v5255, %v1844
        %v5306 = vmul.f32 %v5259, %v1849
        %v5307 = vmul.f32 %v5263, %v1854
        %v5308 = vmul.f32 %v5267, %v1859
        %v5309 = vmul.f32 %v5271, %v1864
        %v5310 = vmul.f32 %v5275, %v1869
        %v5311 = vmul.f32 %v5279, %v1874
        %v5312 = vmul.f32 %v5283, %v1879
        %v5313 = vmul.f32 %v5287, %v1884
        %v5314 = vmul.f32 %v5291, %v1889
        %v5315 = vmul.f32 %v5295, %v1894
        %v5316 = vmul.f32 %v5299, %v1899
        %5317 = vset.pattern.permute.xlu0 22
        %5318 = vperm.xlu0 %5317, %v1902
        %v5319 = vpop.permute.xlu0 %5318
        %5321 = vset.pattern.permute.xlu0 22
        %5322 = vperm.xlu0 %5321, %v1903
        %v5323 = vpop.permute.xlu0 %5322
        %5325 = vset.pattern.permute.xlu0 22
        %5326 = vperm.xlu0 %5325, %v1904
        %v5327 = vpop.permute.xlu0 %5326
        %5329 = vset.pattern.permute.xlu0 22
        %5330 = vperm.xlu0 %5329, %v1905
        %v5331 = vpop.permute.xlu0 %5330
        %5333 = vset.pattern.permute.xlu0 22
        %5334 = vperm.xlu0 %5333, %v1906
        %v5335 = vpop.permute.xlu0 %5334
        %5337 = vset.pattern.permute.xlu0 22
        %5338 = vperm.xlu0 %5337, %v1907
        %v5339 = vpop.permute.xlu0 %5338
        %5341 = vset.pattern.permute.xlu0 22
        %5342 = vperm.xlu0 %5341, %v1908
        %v5343 = vpop.permute.xlu0 %5342
        %5345 = vset.pattern.permute.xlu0 22
        %5346 = vperm.xlu0 %5345, %v1909
        %v5347 = vpop.permute.xlu0 %5346
        %5349 = vset.pattern.permute.xlu0 22
        %5350 = vperm.xlu0 %5349, %v1910
        %v5351 = vpop.permute.xlu0 %5350
        %5353 = vset.pattern.permute.xlu0 22
        %5354 = vperm.xlu0 %5353, %v1911
        %v5355 = vpop.permute.xlu0 %5354
        %5357 = vset.pattern.permute.xlu0 22
        %5358 = vperm.xlu0 %5357, %v1912
        %v5359 = vpop.permute.xlu0 %5358
        %5361 = vset.pattern.permute.xlu0 22
        %5362 = vperm.xlu0 %5361, %v1913
        %v5363 = vpop.permute.xlu0 %5362
        %5365 = vset.pattern.permute.xlu0 22
        %5366 = vperm.xlu0 %5365, %v1914
        %v5367 = vpop.permute.xlu0 %5366
        %5369 = vset.pattern.permute.xlu0 22
        %5370 = vperm.xlu0 %5369, %v1915
        %v5371 = vpop.permute.xlu0 %5370
        %5373 = vset.pattern.permute.xlu0 22
        %5374 = vperm.xlu0 %5373, %v1916
        %v5375 = vpop.permute.xlu0 %5374
        %5377 = vset.pattern.permute.xlu0 22
        %5378 = vperm.xlu0 %5377, %v1917
        %v5379 = vpop.permute.xlu0 %5378
        %v5381 = vmul.f32 %v5319, %v1824
        %v5382 = vmul.f32 %v5323, %v1829
        %v5383 = vmul.f32 %v5327, %v1834
        %v5384 = vmul.f32 %v5331, %v1839
        %v5385 = vmul.f32 %v5335, %v1844
        %v5386 = vmul.f32 %v5339, %v1849
        %v5387 = vmul.f32 %v5343, %v1854
        %v5388 = vmul.f32 %v5347, %v1859
        %v5389 = vmul.f32 %v5351, %v1864
        %v5390 = vmul.f32 %v5355, %v1869
        %v5391 = vmul.f32 %v5359, %v1874
        %v5392 = vmul.f32 %v5363, %v1879
        %v5393 = vmul.f32 %v5367, %v1884
        %v5394 = vmul.f32 %v5371, %v1889
        %v5395 = vmul.f32 %v5375, %v1894
        %v5396 = vmul.f32 %v5379, %v1899
        %5413 = vrot.lane.b32.xlu0 %v5381, 112
        %v5414 = vpop.permute.xlu0 %5413
        %5415 = vrot.lane.b32.xlu0 %v5382, 112
        %v5416 = vpop.permute.xlu0 %5415
        %5417 = vrot.lane.b32.xlu0 %v5383, 112
        %v5418 = vpop.permute.xlu0 %5417
        %5419 = vrot.lane.b32.xlu0 %v5384, 112
        %v5420 = vpop.permute.xlu0 %5419
        %5421 = vrot.lane.b32.xlu0 %v5385, 112
        %v5422 = vpop.permute.xlu0 %5421
        %5423 = vrot.lane.b32.xlu0 %v5386, 112
        %v5424 = vpop.permute.xlu0 %5423
        %5425 = vrot.lane.b32.xlu0 %v5387, 112
        %v5426 = vpop.permute.xlu0 %5425
        %5427 = vrot.lane.b32.xlu0 %v5388, 112
        %v5428 = vpop.permute.xlu0 %5427
        %5429 = vrot.lane.b32.xlu0 %v5389, 112
        %v5430 = vpop.permute.xlu0 %5429
        %5431 = vrot.lane.b32.xlu0 %v5390, 112
        %v5432 = vpop.permute.xlu0 %5431
        %5433 = vrot.lane.b32.xlu0 %v5391, 112
        %v5434 = vpop.permute.xlu0 %5433
        %5435 = vrot.lane.b32.xlu0 %v5392, 112
        %v5436 = vpop.permute.xlu0 %5435
        %5437 = vrot.lane.b32.xlu0 %v5393, 112
        %v5438 = vpop.permute.xlu0 %5437
        %5439 = vrot.lane.b32.xlu0 %v5394, 112
        %v5440 = vpop.permute.xlu0 %5439
        %5441 = vrot.lane.b32.xlu0 %v5395, 112
        %v5442 = vpop.permute.xlu0 %5441
        %5443 = vrot.lane.b32.xlu0 %v5396, 112
        %v5444 = vpop.permute.xlu0 %5443
        %v5461 = vadd.f32 %v5301, %v5414
        %v5462 = vadd.f32 %v5302, %v5416
        %v5463 = vadd.f32 %v5303, %v5418
        %v5464 = vadd.f32 %v5304, %v5420
        %v5465 = vadd.f32 %v5305, %v5422
        %v5466 = vadd.f32 %v5306, %v5424
        %v5467 = vadd.f32 %v5307, %v5426
        %v5468 = vadd.f32 %v5308, %v5428
        %v5469 = vadd.f32 %v5309, %v5430
        %v5470 = vadd.f32 %v5310, %v5432
        %v5471 = vadd.f32 %v5311, %v5434
        %v5472 = vadd.f32 %v5312, %v5436
        %v5473 = vadd.f32 %v5313, %v5438
        %v5474 = vadd.f32 %v5314, %v5440
        %v5475 = vadd.f32 %v5315, %v5442
        %v5476 = vadd.f32 %v5316, %v5444
        %5477 = vset.pattern.permute.xlu0 23
        %5478 = vperm.xlu0 %5477, %v1902
        %v5479 = vpop.permute.xlu0 %5478
        %5481 = vset.pattern.permute.xlu0 23
        %5482 = vperm.xlu0 %5481, %v1903
        %v5483 = vpop.permute.xlu0 %5482
        %5485 = vset.pattern.permute.xlu0 23
        %5486 = vperm.xlu0 %5485, %v1904
        %v5487 = vpop.permute.xlu0 %5486
        %5489 = vset.pattern.permute.xlu0 23
        %5490 = vperm.xlu0 %5489, %v1905
        %v5491 = vpop.permute.xlu0 %5490
        %5493 = vset.pattern.permute.xlu0 23
        %5494 = vperm.xlu0 %5493, %v1906
        %v5495 = vpop.permute.xlu0 %5494
        %5497 = vset.pattern.permute.xlu0 23
        %5498 = vperm.xlu0 %5497, %v1907
        %v5499 = vpop.permute.xlu0 %5498
        %5501 = vset.pattern.permute.xlu0 23
        %5502 = vperm.xlu0 %5501, %v1908
        %v5503 = vpop.permute.xlu0 %5502
        %5505 = vset.pattern.permute.xlu0 23
        %5506 = vperm.xlu0 %5505, %v1909
        %v5507 = vpop.permute.xlu0 %5506
        %5509 = vset.pattern.permute.xlu0 23
        %5510 = vperm.xlu0 %5509, %v1910
        %v5511 = vpop.permute.xlu0 %5510
        %5513 = vset.pattern.permute.xlu0 23
        %5514 = vperm.xlu0 %5513, %v1911
        %v5515 = vpop.permute.xlu0 %5514
        %5517 = vset.pattern.permute.xlu0 23
        %5518 = vperm.xlu0 %5517, %v1912
        %v5519 = vpop.permute.xlu0 %5518
        %5521 = vset.pattern.permute.xlu0 23
        %5522 = vperm.xlu0 %5521, %v1913
        %v5523 = vpop.permute.xlu0 %5522
        %5525 = vset.pattern.permute.xlu0 23
        %5526 = vperm.xlu0 %5525, %v1914
        %v5527 = vpop.permute.xlu0 %5526
        %5529 = vset.pattern.permute.xlu0 23
        %5530 = vperm.xlu0 %5529, %v1915
        %v5531 = vpop.permute.xlu0 %5530
        %5533 = vset.pattern.permute.xlu0 23
        %5534 = vperm.xlu0 %5533, %v1916
        %v5535 = vpop.permute.xlu0 %5534
        %5537 = vset.pattern.permute.xlu0 23
        %5538 = vperm.xlu0 %5537, %v1917
        %v5539 = vpop.permute.xlu0 %5538
        %v5541 = vmul.f32 %v5479, %v1824
        %v5542 = vmul.f32 %v5483, %v1829
        %v5543 = vmul.f32 %v5487, %v1834
        %v5544 = vmul.f32 %v5491, %v1839
        %v5545 = vmul.f32 %v5495, %v1844
        %v5546 = vmul.f32 %v5499, %v1849
        %v5547 = vmul.f32 %v5503, %v1854
        %v5548 = vmul.f32 %v5507, %v1859
        %v5549 = vmul.f32 %v5511, %v1864
        %v5550 = vmul.f32 %v5515, %v1869
        %v5551 = vmul.f32 %v5519, %v1874
        %v5552 = vmul.f32 %v5523, %v1879
        %v5553 = vmul.f32 %v5527, %v1884
        %v5554 = vmul.f32 %v5531, %v1889
        %v5555 = vmul.f32 %v5535, %v1894
        %v5556 = vmul.f32 %v5539, %v1899
        %5573 = vrot.lane.b32.xlu0 %v5541, 96
        %v5574 = vpop.permute.xlu0 %5573
        %5575 = vrot.lane.b32.xlu0 %v5542, 96
        %v5576 = vpop.permute.xlu0 %5575
        %5577 = vrot.lane.b32.xlu0 %v5543, 96
        %v5578 = vpop.permute.xlu0 %5577
        %5579 = vrot.lane.b32.xlu0 %v5544, 96
        %v5580 = vpop.permute.xlu0 %5579
        %5581 = vrot.lane.b32.xlu0 %v5545, 96
        %v5582 = vpop.permute.xlu0 %5581
        %5583 = vrot.lane.b32.xlu0 %v5546, 96
        %v5584 = vpop.permute.xlu0 %5583
        %5585 = vrot.lane.b32.xlu0 %v5547, 96
        %v5586 = vpop.permute.xlu0 %5585
        %5587 = vrot.lane.b32.xlu0 %v5548, 96
        %v5588 = vpop.permute.xlu0 %5587
        %5589 = vrot.lane.b32.xlu0 %v5549, 96
        %v5590 = vpop.permute.xlu0 %5589
        %5591 = vrot.lane.b32.xlu0 %v5550, 96
        %v5592 = vpop.permute.xlu0 %5591
        %5593 = vrot.lane.b32.xlu0 %v5551, 96
        %v5594 = vpop.permute.xlu0 %5593
        %5595 = vrot.lane.b32.xlu0 %v5552, 96
        %v5596 = vpop.permute.xlu0 %5595
        %5597 = vrot.lane.b32.xlu0 %v5553, 96
        %v5598 = vpop.permute.xlu0 %5597
        %5599 = vrot.lane.b32.xlu0 %v5554, 96
        %v5600 = vpop.permute.xlu0 %5599
        %5601 = vrot.lane.b32.xlu0 %v5555, 96
        %v5602 = vpop.permute.xlu0 %5601
        %5603 = vrot.lane.b32.xlu0 %v5556, 96
        %v5604 = vpop.permute.xlu0 %5603
        %v5621 = vadd.f32 %v5461, %v5574
        %v5622 = vadd.f32 %v5462, %v5576
        %v5623 = vadd.f32 %v5463, %v5578
        %v5624 = vadd.f32 %v5464, %v5580
        %v5625 = vadd.f32 %v5465, %v5582
        %v5626 = vadd.f32 %v5466, %v5584
        %v5627 = vadd.f32 %v5467, %v5586
        %v5628 = vadd.f32 %v5468, %v5588
        %v5629 = vadd.f32 %v5469, %v5590
        %v5630 = vadd.f32 %v5470, %v5592
        %v5631 = vadd.f32 %v5471, %v5594
        %v5632 = vadd.f32 %v5472, %v5596
        %v5633 = vadd.f32 %v5473, %v5598
        %v5634 = vadd.f32 %v5474, %v5600
        %v5635 = vadd.f32 %v5475, %v5602
        %v5636 = vadd.f32 %v5476, %v5604
        %5653 = vrot.lane.b32.xlu0 %v5621, 112
        %v5654 = vpop.permute.xlu0 %5653
        %5655 = vrot.lane.b32.xlu0 %v5622, 112
        %v5656 = vpop.permute.xlu0 %5655
        %5657 = vrot.lane.b32.xlu0 %v5623, 112
        %v5658 = vpop.permute.xlu0 %5657
        %5659 = vrot.lane.b32.xlu0 %v5624, 112
        %v5660 = vpop.permute.xlu0 %5659
        %5661 = vrot.lane.b32.xlu0 %v5625, 112
        %v5662 = vpop.permute.xlu0 %5661
        %5663 = vrot.lane.b32.xlu0 %v5626, 112
        %v5664 = vpop.permute.xlu0 %5663
        %5665 = vrot.lane.b32.xlu0 %v5627, 112
        %v5666 = vpop.permute.xlu0 %5665
        %5667 = vrot.lane.b32.xlu0 %v5628, 112
        %v5668 = vpop.permute.xlu0 %5667
        %5669 = vrot.lane.b32.xlu0 %v5629, 112
        %v5670 = vpop.permute.xlu0 %5669
        %5671 = vrot.lane.b32.xlu0 %v5630, 112
        %v5672 = vpop.permute.xlu0 %5671
        %5673 = vrot.lane.b32.xlu0 %v5631, 112
        %v5674 = vpop.permute.xlu0 %5673
        %5675 = vrot.lane.b32.xlu0 %v5632, 112
        %v5676 = vpop.permute.xlu0 %5675
        %5677 = vrot.lane.b32.xlu0 %v5633, 112
        %v5678 = vpop.permute.xlu0 %5677
        %5679 = vrot.lane.b32.xlu0 %v5634, 112
        %v5680 = vpop.permute.xlu0 %5679
        %5681 = vrot.lane.b32.xlu0 %v5635, 112
        %v5682 = vpop.permute.xlu0 %5681
        %5683 = vrot.lane.b32.xlu0 %v5636, 112
        %v5684 = vpop.permute.xlu0 %5683
        %vm5701 = vcmask 1048448
        %5702 = vst.msk [vmem:[#allocation2] sm:$0xff] %vm5701, %v5654
        %5703 = vst.msk [vmem:[#allocation2 + $0x10] sm:$0xff] %vm5701, %v5656
        %5704 = vst.msk [vmem:[#allocation2 + $0x20] sm:$0xff] %vm5701, %v5658
        %5705 = vst.msk [vmem:[#allocation2 + $0x30] sm:$0xff] %vm5701, %v5660
        %5706 = vst.msk [vmem:[#allocation2 + $0x40] sm:$0xff] %vm5701, %v5662
        %5707 = vst.msk [vmem:[#allocation2 + $0x50] sm:$0xff] %vm5701, %v5664
        %5708 = vst.msk [vmem:[#allocation2 + $0x60] sm:$0xff] %vm5701, %v5666
        %5709 = vst.msk [vmem:[#allocation2 + $0x70] sm:$0xff] %vm5701, %v5668
        %5710 = vst.msk [vmem:[#allocation2 + $0x80] sm:$0xff] %vm5701, %v5670
        %5711 = vst.msk [vmem:[#allocation2 + $0x90] sm:$0xff] %vm5701, %v5672
        %5712 = vst.msk [vmem:[#allocation2 + $0xa0] sm:$0xff] %vm5701, %v5674
        %5713 = vst.msk [vmem:[#allocation2 + $0xb0] sm:$0xff] %vm5701, %v5676
        %5714 = vst.msk [vmem:[#allocation2 + $0xc0] sm:$0xff] %vm5701, %v5678
        %5715 = vst.msk [vmem:[#allocation2 + $0xd0] sm:$0xff] %vm5701, %v5680
        %5716 = vst.msk [vmem:[#allocation2 + $0xe0] sm:$0xff] %vm5701, %v5682
        %5717 = vst.msk [vmem:[#allocation2 + $0xf0] sm:$0xff] %vm5701, %v5684
        %5718 = vset.pattern.permute.xlu0 24
        %5719 = vperm.xlu0 %5718, %v1902
        %v5720 = vpop.permute.xlu0 %5719
        %5722 = vset.pattern.permute.xlu0 24
        %5723 = vperm.xlu0 %5722, %v1903
        %v5724 = vpop.permute.xlu0 %5723
        %5726 = vset.pattern.permute.xlu0 24
        %5727 = vperm.xlu0 %5726, %v1904
        %v5728 = vpop.permute.xlu0 %5727
        %5730 = vset.pattern.permute.xlu0 24
        %5731 = vperm.xlu0 %5730, %v1905
        %v5732 = vpop.permute.xlu0 %5731
        %5734 = vset.pattern.permute.xlu0 24
        %5735 = vperm.xlu0 %5734, %v1906
        %v5736 = vpop.permute.xlu0 %5735
        %5738 = vset.pattern.permute.xlu0 24
        %5739 = vperm.xlu0 %5738, %v1907
        %v5740 = vpop.permute.xlu0 %5739
        %5742 = vset.pattern.permute.xlu0 24
        %5743 = vperm.xlu0 %5742, %v1908
        %v5744 = vpop.permute.xlu0 %5743
        %5746 = vset.pattern.permute.xlu0 24
        %5747 = vperm.xlu0 %5746, %v1909
        %v5748 = vpop.permute.xlu0 %5747
        %5750 = vset.pattern.permute.xlu0 24
        %5751 = vperm.xlu0 %5750, %v1910
        %v5752 = vpop.permute.xlu0 %5751
        %5754 = vset.pattern.permute.xlu0 24
        %5755 = vperm.xlu0 %5754, %v1911
        %v5756 = vpop.permute.xlu0 %5755
        %5758 = vset.pattern.permute.xlu0 24
        %5759 = vperm.xlu0 %5758, %v1912
        %v5760 = vpop.permute.xlu0 %5759
        %5762 = vset.pattern.permute.xlu0 24
        %5763 = vperm.xlu0 %5762, %v1913
        %v5764 = vpop.permute.xlu0 %5763
        %5766 = vset.pattern.permute.xlu0 24
        %5767 = vperm.xlu0 %5766, %v1914
        %v5768 = vpop.permute.xlu0 %5767
        %5770 = vset.pattern.permute.xlu0 24
        %5771 = vperm.xlu0 %5770, %v1915
        %v5772 = vpop.permute.xlu0 %5771
        %5774 = vset.pattern.permute.xlu0 24
        %5775 = vperm.xlu0 %5774, %v1916
        %v5776 = vpop.permute.xlu0 %5775
        %5778 = vset.pattern.permute.xlu0 24
        %5779 = vperm.xlu0 %5778, %v1917
        %v5780 = vpop.permute.xlu0 %5779
        %v5782 = vmul.f32 %v5720, %v1824
        %v5783 = vmul.f32 %v5724, %v1829
        %v5784 = vmul.f32 %v5728, %v1834
        %v5785 = vmul.f32 %v5732, %v1839
        %v5786 = vmul.f32 %v5736, %v1844
        %v5787 = vmul.f32 %v5740, %v1849
        %v5788 = vmul.f32 %v5744, %v1854
        %v5789 = vmul.f32 %v5748, %v1859
        %v5790 = vmul.f32 %v5752, %v1864
        %v5791 = vmul.f32 %v5756, %v1869
        %v5792 = vmul.f32 %v5760, %v1874
        %v5793 = vmul.f32 %v5764, %v1879
        %v5794 = vmul.f32 %v5768, %v1884
        %v5795 = vmul.f32 %v5772, %v1889
        %v5796 = vmul.f32 %v5776, %v1894
        %v5797 = vmul.f32 %v5780, %v1899
        %5798 = vset.pattern.permute.xlu0 25
        %5799 = vperm.xlu0 %5798, %v1902
        %v5800 = vpop.permute.xlu0 %5799
        %5802 = vset.pattern.permute.xlu0 25
        %5803 = vperm.xlu0 %5802, %v1903
        %v5804 = vpop.permute.xlu0 %5803
        %5806 = vset.pattern.permute.xlu0 25
        %5807 = vperm.xlu0 %5806, %v1904
        %v5808 = vpop.permute.xlu0 %5807
        %5810 = vset.pattern.permute.xlu0 25
        %5811 = vperm.xlu0 %5810, %v1905
        %v5812 = vpop.permute.xlu0 %5811
        %5814 = vset.pattern.permute.xlu0 25
        %5815 = vperm.xlu0 %5814, %v1906
        %v5816 = vpop.permute.xlu0 %5815
        %5818 = vset.pattern.permute.xlu0 25
        %5819 = vperm.xlu0 %5818, %v1907
        %v5820 = vpop.permute.xlu0 %5819
        %5822 = vset.pattern.permute.xlu0 25
        %5823 = vperm.xlu0 %5822, %v1908
        %v5824 = vpop.permute.xlu0 %5823
        %5826 = vset.pattern.permute.xlu0 25
        %5827 = vperm.xlu0 %5826, %v1909
        %v5828 = vpop.permute.xlu0 %5827
        %5830 = vset.pattern.permute.xlu0 25
        %5831 = vperm.xlu0 %5830, %v1910
        %v5832 = vpop.permute.xlu0 %5831
        %5834 = vset.pattern.permute.xlu0 25
        %5835 = vperm.xlu0 %5834, %v1911
        %v5836 = vpop.permute.xlu0 %5835
        %5838 = vset.pattern.permute.xlu0 25
        %5839 = vperm.xlu0 %5838, %v1912
        %v5840 = vpop.permute.xlu0 %5839
        %5842 = vset.pattern.permute.xlu0 25
        %5843 = vperm.xlu0 %5842, %v1913
        %v5844 = vpop.permute.xlu0 %5843
        %5846 = vset.pattern.permute.xlu0 25
        %5847 = vperm.xlu0 %5846, %v1914
        %v5848 = vpop.permute.xlu0 %5847
        %5850 = vset.pattern.permute.xlu0 25
        %5851 = vperm.xlu0 %5850, %v1915
        %v5852 = vpop.permute.xlu0 %5851
        %5854 = vset.pattern.permute.xlu0 25
        %5855 = vperm.xlu0 %5854, %v1916
        %v5856 = vpop.permute.xlu0 %5855
        %5858 = vset.pattern.permute.xlu0 25
        %5859 = vperm.xlu0 %5858, %v1917
        %v5860 = vpop.permute.xlu0 %5859
        %v5862 = vmul.f32 %v5800, %v1824
        %v5863 = vmul.f32 %v5804, %v1829
        %v5864 = vmul.f32 %v5808, %v1834
        %v5865 = vmul.f32 %v5812, %v1839
        %v5866 = vmul.f32 %v5816, %v1844
        %v5867 = vmul.f32 %v5820, %v1849
        %v5868 = vmul.f32 %v5824, %v1854
        %v5869 = vmul.f32 %v5828, %v1859
        %v5870 = vmul.f32 %v5832, %v1864
        %v5871 = vmul.f32 %v5836, %v1869
        %v5872 = vmul.f32 %v5840, %v1874
        %v5873 = vmul.f32 %v5844, %v1879
        %v5874 = vmul.f32 %v5848, %v1884
        %v5875 = vmul.f32 %v5852, %v1889
        %v5876 = vmul.f32 %v5856, %v1894
        %v5877 = vmul.f32 %v5860, %v1899
        %5894 = vrot.lane.b32.xlu0 %v5862, 112
        %v5895 = vpop.permute.xlu0 %5894
        %5896 = vrot.lane.b32.xlu0 %v5863, 112
        %v5897 = vpop.permute.xlu0 %5896
        %5898 = vrot.lane.b32.xlu0 %v5864, 112
        %v5899 = vpop.permute.xlu0 %5898
        %5900 = vrot.lane.b32.xlu0 %v5865, 112
        %v5901 = vpop.permute.xlu0 %5900
        %5902 = vrot.lane.b32.xlu0 %v5866, 112
        %v5903 = vpop.permute.xlu0 %5902
        %5904 = vrot.lane.b32.xlu0 %v5867, 112
        %v5905 = vpop.permute.xlu0 %5904
        %5906 = vrot.lane.b32.xlu0 %v5868, 112
        %v5907 = vpop.permute.xlu0 %5906
        %5908 = vrot.lane.b32.xlu0 %v5869, 112
        %v5909 = vpop.permute.xlu0 %5908
        %5910 = vrot.lane.b32.xlu0 %v5870, 112
        %v5911 = vpop.permute.xlu0 %5910
        %5912 = vrot.lane.b32.xlu0 %v5871, 112
        %v5913 = vpop.permute.xlu0 %5912
        %5914 = vrot.lane.b32.xlu0 %v5872, 112
        %v5915 = vpop.permute.xlu0 %5914
        %5916 = vrot.lane.b32.xlu0 %v5873, 112
        %v5917 = vpop.permute.xlu0 %5916
        %5918 = vrot.lane.b32.xlu0 %v5874, 112
        %v5919 = vpop.permute.xlu0 %5918
        %5920 = vrot.lane.b32.xlu0 %v5875, 112
        %v5921 = vpop.permute.xlu0 %5920
        %5922 = vrot.lane.b32.xlu0 %v5876, 112
        %v5923 = vpop.permute.xlu0 %5922
        %5924 = vrot.lane.b32.xlu0 %v5877, 112
        %v5925 = vpop.permute.xlu0 %5924
        %v5942 = vadd.f32 %v5782, %v5895
        %v5943 = vadd.f32 %v5783, %v5897
        %v5944 = vadd.f32 %v5784, %v5899
        %v5945 = vadd.f32 %v5785, %v5901
        %v5946 = vadd.f32 %v5786, %v5903
        %v5947 = vadd.f32 %v5787, %v5905
        %v5948 = vadd.f32 %v5788, %v5907
        %v5949 = vadd.f32 %v5789, %v5909
        %v5950 = vadd.f32 %v5790, %v5911
        %v5951 = vadd.f32 %v5791, %v5913
        %v5952 = vadd.f32 %v5792, %v5915
        %v5953 = vadd.f32 %v5793, %v5917
        %v5954 = vadd.f32 %v5794, %v5919
        %v5955 = vadd.f32 %v5795, %v5921
        %v5956 = vadd.f32 %v5796, %v5923
        %v5957 = vadd.f32 %v5797, %v5925
        %5958 = vset.pattern.permute.xlu0 26
        %5959 = vperm.xlu0 %5958, %v1902
        %v5960 = vpop.permute.xlu0 %5959
        %5962 = vset.pattern.permute.xlu0 26
        %5963 = vperm.xlu0 %5962, %v1903
        %v5964 = vpop.permute.xlu0 %5963
        %5966 = vset.pattern.permute.xlu0 26
        %5967 = vperm.xlu0 %5966, %v1904
        %v5968 = vpop.permute.xlu0 %5967
        %5970 = vset.pattern.permute.xlu0 26
        %5971 = vperm.xlu0 %5970, %v1905
        %v5972 = vpop.permute.xlu0 %5971
        %5974 = vset.pattern.permute.xlu0 26
        %5975 = vperm.xlu0 %5974, %v1906
        %v5976 = vpop.permute.xlu0 %5975
        %5978 = vset.pattern.permute.xlu0 26
        %5979 = vperm.xlu0 %5978, %v1907
        %v5980 = vpop.permute.xlu0 %5979
        %5982 = vset.pattern.permute.xlu0 26
        %5983 = vperm.xlu0 %5982, %v1908
        %v5984 = vpop.permute.xlu0 %5983
        %5986 = vset.pattern.permute.xlu0 26
        %5987 = vperm.xlu0 %5986, %v1909
        %v5988 = vpop.permute.xlu0 %5987
        %5990 = vset.pattern.permute.xlu0 26
        %5991 = vperm.xlu0 %5990, %v1910
        %v5992 = vpop.permute.xlu0 %5991
        %5994 = vset.pattern.permute.xlu0 26
        %5995 = vperm.xlu0 %5994, %v1911
        %v5996 = vpop.permute.xlu0 %5995
        %5998 = vset.pattern.permute.xlu0 26
        %5999 = vperm.xlu0 %5998, %v1912
        %v6000 = vpop.permute.xlu0 %5999
        %6002 = vset.pattern.permute.xlu0 26
        %6003 = vperm.xlu0 %6002, %v1913
        %v6004 = vpop.permute.xlu0 %6003
        %6006 = vset.pattern.permute.xlu0 26
        %6007 = vperm.xlu0 %6006, %v1914
        %v6008 = vpop.permute.xlu0 %6007
        %6010 = vset.pattern.permute.xlu0 26
        %6011 = vperm.xlu0 %6010, %v1915
        %v6012 = vpop.permute.xlu0 %6011
        %6014 = vset.pattern.permute.xlu0 26
        %6015 = vperm.xlu0 %6014, %v1916
        %v6016 = vpop.permute.xlu0 %6015
        %6018 = vset.pattern.permute.xlu0 26
        %6019 = vperm.xlu0 %6018, %v1917
        %v6020 = vpop.permute.xlu0 %6019
        %v6022 = vmul.f32 %v5960, %v1824
        %v6023 = vmul.f32 %v5964, %v1829
        %v6024 = vmul.f32 %v5968, %v1834
        %v6025 = vmul.f32 %v5972, %v1839
        %v6026 = vmul.f32 %v5976, %v1844
        %v6027 = vmul.f32 %v5980, %v1849
        %v6028 = vmul.f32 %v5984, %v1854
        %v6029 = vmul.f32 %v5988, %v1859
        %v6030 = vmul.f32 %v5992, %v1864
        %v6031 = vmul.f32 %v5996, %v1869
        %v6032 = vmul.f32 %v6000, %v1874
        %v6033 = vmul.f32 %v6004, %v1879
        %v6034 = vmul.f32 %v6008, %v1884
        %v6035 = vmul.f32 %v6012, %v1889
        %v6036 = vmul.f32 %v6016, %v1894
        %v6037 = vmul.f32 %v6020, %v1899
        %6054 = vrot.lane.b32.xlu0 %v6022, 96
        %v6055 = vpop.permute.xlu0 %6054
        %6056 = vrot.lane.b32.xlu0 %v6023, 96
        %v6057 = vpop.permute.xlu0 %6056
        %6058 = vrot.lane.b32.xlu0 %v6024, 96
        %v6059 = vpop.permute.xlu0 %6058
        %6060 = vrot.lane.b32.xlu0 %v6025, 96
        %v6061 = vpop.permute.xlu0 %6060
        %6062 = vrot.lane.b32.xlu0 %v6026, 96
        %v6063 = vpop.permute.xlu0 %6062
        %6064 = vrot.lane.b32.xlu0 %v6027, 96
        %v6065 = vpop.permute.xlu0 %6064
        %6066 = vrot.lane.b32.xlu0 %v6028, 96
        %v6067 = vpop.permute.xlu0 %6066
        %6068 = vrot.lane.b32.xlu0 %v6029, 96
        %v6069 = vpop.permute.xlu0 %6068
        %6070 = vrot.lane.b32.xlu0 %v6030, 96
        %v6071 = vpop.permute.xlu0 %6070
        %6072 = vrot.lane.b32.xlu0 %v6031, 96
        %v6073 = vpop.permute.xlu0 %6072
        %6074 = vrot.lane.b32.xlu0 %v6032, 96
        %v6075 = vpop.permute.xlu0 %6074
        %6076 = vrot.lane.b32.xlu0 %v6033, 96
        %v6077 = vpop.permute.xlu0 %6076
        %6078 = vrot.lane.b32.xlu0 %v6034, 96
        %v6079 = vpop.permute.xlu0 %6078
        %6080 = vrot.lane.b32.xlu0 %v6035, 96
        %v6081 = vpop.permute.xlu0 %6080
        %6082 = vrot.lane.b32.xlu0 %v6036, 96
        %v6083 = vpop.permute.xlu0 %6082
        %6084 = vrot.lane.b32.xlu0 %v6037, 96
        %v6085 = vpop.permute.xlu0 %6084
        %v6102 = vadd.f32 %v5942, %v6055
        %v6103 = vadd.f32 %v5943, %v6057
        %v6104 = vadd.f32 %v5944, %v6059
        %v6105 = vadd.f32 %v5945, %v6061
        %v6106 = vadd.f32 %v5946, %v6063
        %v6107 = vadd.f32 %v5947, %v6065
        %v6108 = vadd.f32 %v5948, %v6067
        %v6109 = vadd.f32 %v5949, %v6069
        %v6110 = vadd.f32 %v5950, %v6071
        %v6111 = vadd.f32 %v5951, %v6073
        %v6112 = vadd.f32 %v5952, %v6075
        %v6113 = vadd.f32 %v5953, %v6077
        %v6114 = vadd.f32 %v5954, %v6079
        %v6115 = vadd.f32 %v5955, %v6081
        %v6116 = vadd.f32 %v5956, %v6083
        %v6117 = vadd.f32 %v5957, %v6085
        %6118 = vst.msk [vmem:[#allocation2 + $0x8] sm:$0xff] %vm2334, %v6102
        %6119 = vst.msk [vmem:[#allocation2 + $0x18] sm:$0xff] %vm2334, %v6103
        %6120 = vst.msk [vmem:[#allocation2 + $0x28] sm:$0xff] %vm2334, %v6104
        %6121 = vst.msk [vmem:[#allocation2 + $0x38] sm:$0xff] %vm2334, %v6105
        %6122 = vst.msk [vmem:[#allocation2 + $0x48] sm:$0xff] %vm2334, %v6106
        %6123 = vst.msk [vmem:[#allocation2 + $0x58] sm:$0xff] %vm2334, %v6107
        %6124 = vst.msk [vmem:[#allocation2 + $0x68] sm:$0xff] %vm2334, %v6108
        %6125 = vst.msk [vmem:[#allocation2 + $0x78] sm:$0xff] %vm2334, %v6109
        %6126 = vst.msk [vmem:[#allocation2 + $0x88] sm:$0xff] %vm2334, %v6110
        %6127 = vst.msk [vmem:[#allocation2 + $0x98] sm:$0xff] %vm2334, %v6111
        %6128 = vst.msk [vmem:[#allocation2 + $0xa8] sm:$0xff] %vm2334, %v6112
        %6129 = vst.msk [vmem:[#allocation2 + $0xb8] sm:$0xff] %vm2334, %v6113
        %6130 = vst.msk [vmem:[#allocation2 + $0xc8] sm:$0xff] %vm2334, %v6114
        %6131 = vst.msk [vmem:[#allocation2 + $0xd8] sm:$0xff] %vm2334, %v6115
        %6132 = vst.msk [vmem:[#allocation2 + $0xe8] sm:$0xff] %vm2334, %v6116
        %6133 = vst.msk [vmem:[#allocation2 + $0xf8] sm:$0xff] %vm2334, %v6117
        %v6134 = vld [vmem:[%s526] sm:$0x1]
        %v6135 = vmul.f32 %v6134, 0.2
        %v6136 = vmul.f32 %v6135, %v6135
        %v6137 = vmul.f32 %v6136, %v6136
        %v6138 = vmul.f32 %v6137, %v6135
        %v6139 = vmul.f32 %v6138, %v6135
        %v6140 = vmul.f32 %v6139, %v6135
        %vm6141 = vcmp.lt.f32.partialorder %v6135, 1.0
        %v6142 = vmul.f32 %v6138, -21.0
        %v6143 = vadd.f32 %v6142, 1.0
        %v6144 = vmul.f32 %v6139, 35.0
        %v6145 = vadd.f32 %v6143, %v6144
        %v6146 = vmul.f32 %v6140, -15.0
        %v6147 = vadd.f32 %v6145, %v6146
        %v6148 = vsel %vm6141, %v6147, 0.0
        %v6149 = vmul.f32 %v6148, 0.5
        %v6150 = vlaneseq
        %v6151 = vshrl.u32 %v6150, 7
        %v6152 = vld [vmem:[%s517] sm:$0x1]
        %v6153 = vlaneseq
        %v6154 = vshrl.u32 %v6153, 7
        %v6155 = vsub.s32 0, %v6154
        %v6156 = vrot.slane %v6152, %v6155
        %vm6157 = vcmp.eq.s32.totalorder %v6151, %v6156
        %v6159 = vlaneseq
        %v6160 = vshrl.u32 %v6159, 7
        %v6161 = vsub.s32 0, %v6160
        %v6162 = vrot.slane %v6149, %v6161
        %v6164 = vsel %vm6157, %v6162, 0.0
        %v6165 = vld [vmem:[#allocation3] sm:$0x3f]
        %v6166 = vld [vmem:[#allocation3 + $0x8] sm:$0x3f]
        %v6167 = vld [vmem:[#allocation2] sm:$0xff]
        %v6168 = vld [vmem:[#allocation2 + $0x8] sm:$0xff]
        %v6169 = vld [vmem:[#allocation2 + $0x10] sm:$0xff]
        %v6170 = vld [vmem:[#allocation2 + $0x18] sm:$0xff]
        %v6171 = vld [vmem:[#allocation2 + $0x20] sm:$0xff]
        %v6172 = vld [vmem:[#allocation2 + $0x28] sm:$0xff]
        %v6173 = vld [vmem:[#allocation2 + $0x30] sm:$0xff]
        %v6174 = vld [vmem:[#allocation2 + $0x38] sm:$0xff]
        %v6175 = vld [vmem:[#allocation2 + $0x40] sm:$0xff]
        %v6176 = vld [vmem:[#allocation2 + $0x48] sm:$0xff]
        %v6177 = vld [vmem:[#allocation2 + $0x50] sm:$0xff]
        %v6178 = vld [vmem:[#allocation2 + $0x58] sm:$0xff]
        %v6179 = vld [vmem:[#allocation2 + $0x60] sm:$0xff]
        %v6180 = vld [vmem:[#allocation2 + $0x68] sm:$0xff]
        %v6181 = vld [vmem:[#allocation2 + $0x70] sm:$0xff]
        %v6182 = vld [vmem:[#allocation2 + $0x78] sm:$0xff]
        %v6183 = vld [vmem:[#allocation2 + $0x80] sm:$0xff]
        %v6184 = vld [vmem:[#allocation2 + $0x88] sm:$0xff]
        %v6185 = vld [vmem:[#allocation2 + $0x90] sm:$0xff]
        %v6186 = vld [vmem:[#allocation2 + $0x98] sm:$0xff]
        %v6187 = vld [vmem:[#allocation2 + $0xa0] sm:$0xff]
        %v6188 = vld [vmem:[#allocation2 + $0xa8] sm:$0xff]
        %v6189 = vld [vmem:[#allocation2 + $0xb0] sm:$0xff]
        %v6190 = vld [vmem:[#allocation2 + $0xb8] sm:$0xff]
        %v6191 = vld [vmem:[#allocation2 + $0xc0] sm:$0xff]
        %v6192 = vld [vmem:[#allocation2 + $0xc8] sm:$0xff]
        %v6193 = vld [vmem:[#allocation2 + $0xd0] sm:$0xff]
        %v6194 = vld [vmem:[#allocation2 + $0xd8] sm:$0xff]
        %v6195 = vld [vmem:[#allocation2 + $0xe0] sm:$0xff]
        %v6196 = vld [vmem:[#allocation2 + $0xe8] sm:$0xff]
        %v6197 = vld [vmem:[#allocation2 + $0xf0] sm:$0xff]
        %v6198 = vld [vmem:[#allocation2 + $0xf8] sm:$0xff]
        %6199 = vmatprep.subr.mxu0 %v6168
        %6200 = vmatpush1.msra.mxu0 %v6167
        %6201 = vmatprep.subr.mxu0 %v6170
        %6202 = vmatpush1.msra.mxu0 %v6169
        %6203 = vmatprep.subr.mxu0 %v6172
        %6204 = vmatpush1.msra.mxu0 %v6171
        %6205 = vmatprep.subr.mxu0 %v6174
        %6206 = vmatpush1.msra.mxu0 %v6173
        %6207 = vmatprep.subr.mxu0 %v6176
        %6208 = vmatpush1.msra.mxu0 %v6175
        %6209 = vmatprep.subr.mxu0 %v6178
        %6210 = vmatpush1.msra.mxu0 %v6177
        %6211 = vmatprep.subr.mxu0 %v6180
        %6212 = vmatpush1.msra.mxu0 %v6179
        %6213 = vmatprep.subr.mxu0 %v6182
        %6214 = vmatpush1.msra.mxu0 %v6181
        %6215 = vmatprep.subr.mxu0 %v6184
        %6216 = vmatpush1.msra.mxu0 %v6183
        %6217 = vmatprep.subr.mxu0 %v6186
        %6218 = vmatpush1.msra.mxu0 %v6185
        %6219 = vmatprep.subr.mxu0 %v6188
        %6220 = vmatpush1.msra.mxu0 %v6187
        %6221 = vmatprep.subr.mxu0 %v6190
        %6222 = vmatpush1.msra.mxu0 %v6189
        %6223 = vmatprep.subr.mxu0 %v6192
        %6224 = vmatpush1.msra.mxu0 %v6191
        %6225 = vmatprep.subr.mxu0 %v6194
        %6226 = vmatpush1.msra.mxu0 %v6193
        %6227 = vmatprep.subr.mxu0 %v6196
        %6228 = vmatpush1.msra.mxu0 %v6195
        %6229 = vmatprep.subr.mxu0 %v6198
        %6230 = vmatpush1.msra.mxu0 %v6197
        %6231 = vmatprep.subr.mxu0 0.0
        %6232 = vmatpush1.msra.mxu0 0.0
        %6233 = vmatprep.subr.mxu0 0.0
        %6234 = vmatpush1.msra.mxu0 0.0
        %6235 = vmatprep.subr.mxu0 0.0
        %6236 = vmatpush1.msra.mxu0 0.0
        %6237 = vmatprep.subr.mxu0 0.0
        %6238 = vmatpush1.msra.mxu0 0.0
        %6239 = vmatprep.subr.mxu0 0.0
        %6240 = vmatpush1.msra.mxu0 0.0
        %6241 = vmatprep.subr.mxu0 0.0
        %6242 = vmatpush1.msra.mxu0 0.0
        %6243 = vmatprep.subr.mxu0 0.0
        %6244 = vmatpush1.msra.mxu0 0.0
        %6245 = vmatprep.subr.mxu0 0.0
        %6246 = vmatpush1.msra.mxu0 0.0
        %6247 = vmatprep.subr.mxu0 0.0
        %6248 = vmatpush1.msra.mxu0 0.0
        %6249 = vmatprep.subr.mxu0 0.0
        %6250 = vmatpush1.msra.mxu0 0.0
        %6251 = vmatprep.subr.mxu0 0.0
        %6252 = vmatpush1.msra.mxu0 0.0
        %6253 = vmatprep.subr.mxu0 0.0
        %6254 = vmatpush1.msra.mxu0 0.0
        %6255 = vmatprep.subr.mxu0 0.0
        %6256 = vmatpush1.msra.mxu0 0.0
        %6257 = vmatprep.subr.mxu0 0.0
        %6258 = vmatpush1.msra.mxu0 0.0
        %6259 = vmatprep.subr.mxu0 0.0
        %6260 = vmatpush1.msra.mxu0 0.0
        %6261 = vmatprep.subr.mxu0 0.0
        %6262 = vmatpush1.msra.mxu0 0.0
        %6263 = vmatprep.mubr.f32.mxu0 0.0
        %6264 = vmatmul.mubr.f32.gmra.mrb[0].mxu0 %v6164
        %v6265 = vpop.f32.mrb[0].mxu0
        %v6266 = vadd.f32 0.0, %v6265
        %v6267 = vpop.f32.mrb[0].mxu0
        %v6268 = vadd.f32 0.0, %v6267
        %6269 = vdwg.mxu0
        %v6270 = vadd.f32 %v6165, %v6266
        %v6271 = vadd.f32 %v6166, %v6268
        %6272 = vst [vmem:[#allocation3] sm:$0x3f] %v6270
        %vm6273 = vcmask 128000
        %6274 = vst.msk [vmem:[#allocation3 + $0x8] sm:$0x3f] %vm6273, %v6271
        // Predicated region
        $region85: #{tpu_custom_call.1} parent=79 // pred_check
          %p6275 = pneg %p375
        $region86: #{tpu_custom_call.1} parent=79 // pred_check_branch
          %6277 = sbr.rel (%p6275) target = $region88
        $region87: #{tpu_custom_call.1} parent=79 // pred_region
          %s6279 = ssub.s32 256, 256
          %6280 = vsyncadd [#allocation4], %s6279
          %s6282 = sshll.u32 [#allocation3], 4
          %s6283 = int_to_ptr.vmem [resolvable:$true] %s6282
          %6285 = dma.vmem_to_hbm [thread:$0]  %s6283, 256, %s15, [#allocation4]
        $region88: #{tpu_custom_call.1} parent=79 // pred_fallthru
          _
        // Predicated region
        $region89: #{tpu_custom_call.1} parent=79 // pred_check
          %p6286 = pneg %p375
        $region90: #{tpu_custom_call.1} parent=79 // pred_check_branch
          %6288 = sbr.rel (%p6286) target = $region92
        $region91: #{tpu_custom_call.1} parent=79 // pred_region
          %6289 = dma.done [#allocation4], 256
        $region92: #{tpu_custom_call.1} parent=79 // pred_fallthru
          _
      $region80: #{tpu_custom_call.1} parent=5 // pred_fallthru
        _
      %p6290 = scmp.le.s32.totalorder 2, %s22
      // Predicated region
      $region93: #{tpu_custom_call.1} parent=5 // pred_check
        %p6291 = pneg %p6290
      $region94: #{tpu_custom_call.1} parent=5 // pred_check_branch
        %6293 = sbr.rel (%p6291) target = $region96
      $region95: #{tpu_custom_call.1} parent=5 // pred_region
        %s6294 = ssub.s32 %s22, 2
      $region96: #{tpu_custom_call.1} parent=5 // pred_fallthru
        _
    $region6: #{tpu_custom_call.1} parent=1 // loop_footer
      %s26 = sadd.s32 1, %s22
    $region7: #{tpu_custom_call.1} parent=1 // loop_footer_branch
      %21 = sbr.rel target = $region3
    $region8: #{tpu_custom_call.1} parent=1 // loop_exit
      _
    %6295 = vsyncpa [#allocation4], 1
    %s6296 = scalar_lea.sflag [#allocation4], 1
    %6297 = vsyncpa %s6296, 1

</llo_original>
